<compile_context>
chip_gen: v5e
topology: v5e:2x2
jax: 0.10.0
libtpu: 0.0.40
codegen_flags: <defaults>
</compile_context>

<pallas_src>
import jax
import jax.numpy as jnp
from jax import lax
from jax.experimental import pallas as pl
from jax.experimental.pallas import tpu as pltpu


# ----------------------------------------------------------------------------
# Model constants
# ----------------------------------------------------------------------------
LATENT_DIM = 30
A1LEN, A2LEN = 8, 8
BLEN = LATENT_DIM - A1LEN - A2LEN
CLASS_NUM = 3
H, W = 128, 64            # ConvVAE inp_shape = (1, 128, 64)
ENC_HID = 128
CONV_CH = 8
ENC_K = CONV_CH * (H // 4) * (W // 4)   # 4096 flattened conv features
HEAD_PAD = 128                          # mu||logvar head padded to 128 lanes


# ----------------------------------------------------------------------------
# Kernel 1: fused VAE encoder.
#   grid over K tiles of w_enc; h1 accumulated in VMEM; on the last K step the
#   bias+ReLU and the fused (mu||logvar) head run as epilogue and write one
#   lane-dense (B, 128) output.
# ----------------------------------------------------------------------------
def _encoder_kernel(h0_ref, w_enc_ref, b_enc_ref, w_head_ref, b_head_ref,
                    o_ref, h1_acc):
    k = pl.program_id(0)

    @pl.when(k == 0)
    def _():
        h1_acc[...] = jnp.zeros_like(h1_acc)

    # bf16 x bf16 -> f32 accumulation on the MXU
    h1_acc[...] += jnp.dot(h0_ref[...], w_enc_ref[...],
                           preferred_element_type=jnp.float32)

    @pl.when(k == pl.num_programs(0) - 1)
    def _():
        h1 = jnp.maximum(h1_acc[...] + b_enc_ref[...], 0.0)
        o_ref[...] = (jnp.dot(h1, w_head_ref[...],
                              preferred_element_type=jnp.float32)
                      + b_head_ref[...])


def encoder_pallas(h0_bf16, w_enc_bf16, b_enc, w_head, b_head, *, tk=1024):
    B, K = h0_bf16.shape
    tk = tk if (K % tk == 0) else K
    grid = (K // tk,)
    return pl.pallas_call(
        _encoder_kernel,
        out_shape=jax.ShapeDtypeStruct((B, HEAD_PAD), jnp.float32),
        grid_spec=pltpu.PrefetchScalarGridSpec(
            num_scalar_prefetch=0,
            grid=grid,
            in_specs=[
                pl.BlockSpec((B, tk), lambda k: (0, k)),
                pl.BlockSpec((tk, ENC_HID), lambda k: (k, 0)),
                pl.BlockSpec((1, ENC_HID), lambda k: (0, 0)),
                pl.BlockSpec((ENC_HID, HEAD_PAD), lambda k: (0, 0)),
                pl.BlockSpec((1, HEAD_PAD), lambda k: (0, 0)),
            ],
            out_specs=pl.BlockSpec((B, HEAD_PAD), lambda k: (0, 0)),
            scratch_shapes=[pltpu.VMEM((B, ENC_HID), jnp.float32)]),
        compiler_params=pltpu.CompilerParams(
            dimension_semantics=("arbitrary",),
            vmem_limit_bytes=32 * 1024 * 1024),
    )(h0_bf16, w_enc_bf16, b_enc.reshape(1, ENC_HID),
      w_head, b_head.reshape(1, HEAD_PAD))


# ----------------------------------------------------------------------------
# Kernel 2: fused VAE decoder + reconstruction SSE.
#   grid over N tiles of w_dec2; d1 = ReLU(z @ w_dec1 + b) computed once at
#   n==0 and kept in VMEM; each step computes sigmoid(d1 @ w_dec2_tile + b)
#   and folds the (recon - x)^2 sum into a resident (1,1) accumulator output.
# ----------------------------------------------------------------------------
def _decoder_kernel(z_ref, w1_ref, b1_ref, w2_ref, b2_ref, x_ref,
                    sse_ref, d1_scr):
    n = pl.program_id(0)

    @pl.when(n == 0)
    def _():
        d1_scr[...] = jnp.maximum(
            jnp.dot(z_ref[...], w1_ref[...],
                    preferred_element_type=jnp.float32) + b1_ref[...], 0.0)
        sse_ref[...] = jnp.zeros_like(sse_ref)

    recon = jax.nn.sigmoid(
        jnp.dot(d1_scr[...].astype(jnp.bfloat16), w2_ref[...],
                preferred_element_type=jnp.float32) + b2_ref[...])
    diff = recon - x_ref[...]
    sse_ref[...] += jnp.sum(diff * diff, keepdims=True)


def decoder_sse_pallas(z, w_dec1, b_dec1, w_dec2_bf16, b_dec2, x_flat, *,
                       tn=2048):
    B, LD = z.shape
    HID = w_dec1.shape[1]
    N = w_dec2_bf16.shape[1]
    tn = tn if (N % tn == 0) else N
    grid = (N // tn,)
    sse = pl.pallas_call(
        _decoder_kernel,
        out_shape=jax.ShapeDtypeStruct((1, 1), jnp.float32),
        grid_spec=pltpu.PrefetchScalarGridSpec(
            num_scalar_prefetch=0,
            grid=grid,
            in_specs=[
                pl.BlockSpec((B, LD), lambda n: (0, 0)),
                pl.BlockSpec((LD, HID), lambda n: (0, 0)),
                pl.BlockSpec((1, HID), lambda n: (0, 0)),
                pl.BlockSpec((HID, tn), lambda n: (0, n)),
                pl.BlockSpec((1, tn), lambda n: (0, n)),
                pl.BlockSpec((B, tn), lambda n: (0, n)),
            ],
            out_specs=pl.BlockSpec((1, 1), lambda n: (0, 0)),
            scratch_shapes=[pltpu.VMEM((B, HID), jnp.float32)]),
        compiler_params=pltpu.CompilerParams(
            dimension_semantics=("arbitrary",),
            vmem_limit_bytes=32 * 1024 * 1024),
    )(z, w_dec1, b_dec1.reshape(1, HID), w_dec2_bf16,
      b_dec2.reshape(1, N), x_flat)
    return sse[0, 0]


# ----------------------------------------------------------------------------
# Kernel 3: Classifier = Linear + BatchNorm1d (training batch stats) + ReLU
#           + Linear head, fused into one launch.
# ----------------------------------------------------------------------------
def _classifier_kernel(x_ref, w1_ref, b1_ref, g_ref, beta_ref, w2_ref, b2_ref,
                       o_ref):
    y = jnp.dot(x_ref[...], w1_ref[...],
                preferred_element_type=jnp.float32) + b1_ref[...]
    mean = jnp.mean(y, axis=0, keepdims=True)
    var = jnp.mean((y - mean) ** 2, axis=0, keepdims=True)  # biased (BN train)
    feat = jnp.maximum((y - mean) * lax.rsqrt(var + 1e-5) * g_ref[...]
                       + beta_ref[...], 0.0)
    o_ref[...] = (jnp.dot(feat, w2_ref[...],
                          preferred_element_type=jnp.float32) + b2_ref[...])


def classifier_pallas(z_mu, w1, b1, gamma, beta, w2, b2):
    B = z_mu.shape[0]
    HIDC = w1.shape[1]
    C = w2.shape[1]
    return pl.pallas_call(
        _classifier_kernel,
        out_shape=jax.ShapeDtypeStruct((B, C), jnp.float32),
        in_specs=[pl.BlockSpec(memory_space=pltpu.MemorySpace.VMEM)] * 7,
        out_specs=pl.BlockSpec(memory_space=pltpu.MemorySpace.VMEM),
    )(z_mu, w1, b1.reshape(1, HIDC), gamma.reshape(1, HIDC),
      beta.reshape(1, HIDC), w2, b2.reshape(1, C))


# ----------------------------------------------------------------------------
# Plain-JAX micro-ops (launch overhead of a kernel would dominate these)
# ----------------------------------------------------------------------------
def ame_forward(p, attri, class_num, eps, em_dim):
    # TODO(synk): AME source not provided; modeled as one-hot(label) -> fused
    #             (mu||logvar) linear head + reparameterized sample.
    onehot = jax.nn.one_hot(attri, class_num, dtype=jnp.float32)
    mulv = onehot @ p["w_mulv"] + p["b_mulv"]
    mu, lv = mulv[:, :em_dim], mulv[:, em_dim:]
    z = mu + jnp.exp(0.5 * lv) * eps
    return mu, lv, z


def kl_2normal(mu_p, lv_p, mu_q, lv_q):
    # TODO(synk): reference kl_2normal not provided; mean element-wise KL(p||q).
    return jnp.mean(0.5 * (lv_q - lv_p
                           + (jnp.exp(lv_p) + (mu_p - mu_q) ** 2) / jnp.exp(lv_q)
                           - 1.0))


def pairwise_kl(mu, lv):
    # TODO(synk): reference pairwise_kl_loss not provided; KL(N_i || N_j) over
    #             all batch pairs, per-sample mean over j. Plain JAX: B is tiny.
    mu_i, mu_j = mu[:, None, :], mu[None, :, :]
    lv_i, lv_j = lv[:, None, :], lv[None, :, :]
    kl = 0.5 * jnp.sum(lv_j - lv_i
                       + (jnp.exp(lv_i) + (mu_i - mu_j) ** 2) * jnp.exp(-lv_j)
                       - 1.0, axis=-1)
    return jnp.mean(kl, axis=1)            # (B,)


def focal_loss(logits, labels, gamma=2.0):
    # TODO(synk): AGEDR.focal_loss not defined in the provided source;
    #             standard focal loss with gamma=2.
    log_p = jax.nn.log_softmax(logits, axis=-1)
    onehot = jax.nn.one_hot(labels, logits.shape[-1], dtype=logits.dtype)
    log_pt = jnp.sum(log_p * onehot, axis=-1)
    pt = jnp.exp(log_pt)
    return jnp.mean(-((1.0 - pt) ** gamma) * log_pt)


# ----------------------------------------------------------------------------
# Full AGEDR forward
# ----------------------------------------------------------------------------
def agedr_forward(params, x_input, attri1, attri2, y_lab, key):
    B = x_input.shape[0]
    vae_weight, cls_weight = 0.3, 2.0
    align_weight = 0.0025
    kl_attri_weight, kl_latent_weight = 0.01, 0.0125
    recon_weight = 0.05

    k_vae, k_a1, k_a2 = jax.random.split(key, 3)
    eps_z = jax.random.normal(k_vae, (B, LATENT_DIM), dtype=jnp.float32)
    eps_a1 = jax.random.normal(k_a1, (B, A1LEN), dtype=jnp.float32)
    eps_a2 = jax.random.normal(k_a2, (B, A2LEN), dtype=jnp.float32)

    # ---- ConvVAE front-end (plain JAX micro-op) ----
    # TODO(synk): ConvVAE source not provided; modeled as a 4x4/stride-4 conv
    #             (im2col matmul) + MLP encoder/decoder.
    # Patches flattened HWC-major; the channel-major permutation is baked into
    # w_enc's row order at init (no transpose needed here).
    vp = params["vae"]
    patches = (x_input.reshape(B, 1, H // 4, 4, W // 4, 4)
               .transpose(0, 2, 4, 1, 3, 5)
               .reshape(B, (H // 4) * (W // 4), 16))
    h0 = jax.nn.relu(jnp.einsum("bpk,kc->bpc", patches, vp["w_conv"])
                     + vp["b_conv"])
    h0 = h0.reshape(B, ENC_K).astype(jnp.bfloat16)

    # ---- fused encoder kernel: h1 + (mu||logvar) head ----
    mulv = encoder_pallas(h0, vp["w_enc"], vp["b_enc"],
                          vp["w_head"], vp["b_head"])
    z_mu = mulv[:, :LATENT_DIM]
    z_logvar = mulv[:, LATENT_DIM:2 * LATENT_DIM]
    z = z_mu + jnp.exp(0.5 * z_logvar) * eps_z

    # ---- fused decoder kernel: recon + SSE reduction (no recon writeback) ----
    x_flat = x_input.reshape(B, H * W)
    sse = decoder_sse_pallas(z, vp["w_dec1"], vp["b_dec1"],
                             vp["w_dec2"], vp["b_dec2"], x_flat)

    # ---- vae_loss_fn: sum-MSE recon + KL-to-prior, averaged over batch ----
    # TODO(synk): reference vae_loss_fn not provided; standard (SSE + KLD)/B.
    kld = -0.5 * jnp.sum(1.0 + z_logvar - z_mu * z_mu - jnp.exp(z_logvar))
    Loss_vae = 0.01 * vae_weight * ((sse + kld) / B)

    # ---- attribute encoders + alignment KL ----
    mu_a1, lv_a1, _ = ame_forward(params["ame1"], attri1, 3, eps_a1, A1LEN)
    mu_a2, lv_a2, _ = ame_forward(params["ame2"], attri2, 4, eps_a2, A2LEN)
    mu1_lat = z_mu[:, BLEN:BLEN + A1LEN]
    mu2_lat = z_mu[:, BLEN + A1LEN:BLEN + A1LEN + A2LEN]
    lv1_lat = z_logvar[:, BLEN:BLEN + A1LEN]
    lv2_lat = z_logvar[:, BLEN + A1LEN:BLEN + A1LEN + A2LEN]
    Loss_attri = kl_2normal(mu_a1, lv_a1, mu1_lat, lv1_lat)
    Loss_attri = Loss_attri + kl_2normal(mu_a2, lv_a2, mu2_lat, lv2_lat)
    Loss_attri = align_weight * Loss_attri

    # ---- disentanglement: pairwise KL + reconstruction MSE ----
    akl = (kl_latent_weight * pairwise_kl(z_mu[:, :BLEN], z_logvar[:, :BLEN])
           + kl_attri_weight * pairwise_kl(z_mu[:, BLEN:], z_logvar[:, BLEN:]))
    Loss_akl = akl.sum(-1)
    Loss_recon = recon_weight * (sse / (B * H * W))      # nn.MSELoss (mean)
    Loss_disen = Loss_akl + Loss_recon

    # ---- classifier (fused Linear+BN+ReLU+head kernel) + focal loss ----
    cp = params["classifier"]
    y_pred = classifier_pallas(z_mu, cp["w1"], cp["b1"], cp["gamma"],
                               cp["beta"], cp["w2"], cp["b2"])
    Loss_cls = cls_weight * focal_loss(y_pred, y_lab)

    return Loss_vae, Loss_attri, Loss_disen, Loss_cls


# ----------------------------------------------------------------------------
# Deterministic parameter init (synthetic; shapes follow the module __init__).
# The two large matrices (w_enc, w_dec2) are stored in bf16 (MXU-native on all
# TPU gens); the mu/logvar head is fused and zero-padded to 128 output lanes.
# ----------------------------------------------------------------------------
def init_params(key):
    ks = iter(jax.random.split(key, 16))

    def dense(shape):
        scale = 1.0 / jnp.sqrt(jnp.float32(shape[0]))
        return jax.random.normal(next(ks), shape, dtype=jnp.float32) * scale

    def zeros(shape):
        return jnp.zeros(shape, dtype=jnp.float32)

    w_head_core = dense((ENC_HID, 2 * LATENT_DIM))
    w_head = jnp.pad(w_head_core, ((0, 0), (0, HEAD_PAD - 2 * LATENT_DIM)))

    return {
        "ame1": {"w_mulv": dense((3, 2 * A1LEN)), "b_mulv": zeros((2 * A1LEN,))},
        "ame2": {"w_mulv": dense((4, 2 * A2LEN)), "b_mulv": zeros((2 * A2LEN,))},
        "vae": {
            "w_conv": dense((16, CONV_CH)), "b_conv": zeros((CONV_CH,)),
            # rows ordered (H/4, W/4, C)-major to match the HWC flattening
            "w_enc": dense((ENC_K, ENC_HID)).astype(jnp.bfloat16),
            "b_enc": zeros((ENC_HID,)),
            "w_head": w_head, "b_head": zeros((HEAD_PAD,)),
            "w_dec1": dense((LATENT_DIM, ENC_HID)), "b_dec1": zeros((ENC_HID,)),
            "w_dec2": dense((ENC_HID, H * W)).astype(jnp.bfloat16),
            "b_dec2": zeros((H * W,)),
        },
        "classifier": {
            "w1": dense((LATENT_DIM, 32)), "b1": zeros((32,)),
            "gamma": jnp.ones((32,), dtype=jnp.float32), "beta": zeros((32,)),
            "w2": dense((32, CLASS_NUM)), "b2": zeros((CLASS_NUM,)),
        },
    }


if __name__ == "__main__":
    key = jax.random.PRNGKey(0)
    kx, ka1, ka2, ky, kp, ke = jax.random.split(key, 6)

    B = 2
    x_input = jax.random.uniform(kx, (B, 1, H, W), dtype=jnp.float32)
    attri1 = jax.random.randint(ka1, (B,), 0, 3)
    attri2 = jax.random.randint(ka2, (B,), 0, 4)
    y_lab = jax.random.randint(ky, (B,), 0, CLASS_NUM)

    params = init_params(kp)

    fwd = jax.jit(agedr_forward)
    losses = fwd(params, x_input, attri1, attri2, y_lab, ke)
    jax.block_until_ready(losses)
    print("KERNEL_OK")
</pallas_src>

<mosaic_0001>
module attributes {stable_mosaic.version = 11 : i64} {
  func.func @_encoder_kernel(%arg0: i32, %arg1: memref<2x1024xbf16, #tpu.memory_space<vmem>>, %arg2: memref<1024x128xbf16, #tpu.memory_space<vmem>>, %arg3: memref<1x128xf32, #tpu.memory_space<vmem>>, %arg4: memref<128x128xf32, #tpu.memory_space<vmem>>, %arg5: memref<1x128xf32, #tpu.memory_space<vmem>>, %arg6: memref<2x128xf32, #tpu.memory_space<vmem>>, %arg7: memref<2x128xf32, #tpu.memory_space<vmem>>) attributes {dimension_semantics = [#tpu.dimension_semantics<arbitrary>], iteration_bounds = array<i64: 4>, scalar_prefetch = 0 : i64, scratch_operands = 1 : i64, tpu.core_type = #tpu.core_type<tc>, window_params = [{transform_indices = @transform_0, window_bounds = array<i64: 2, 1024>}, {transform_indices = @transform_1, window_bounds = array<i64: 1024, 128>}, {pipeline_mode = #tpu.pipeline_mode<synchronous>, transform_indices = @transform_2, window_bounds = array<i64: 1, 128>}, {pipeline_mode = #tpu.pipeline_mode<synchronous>, transform_indices = @transform_3, window_bounds = array<i64: 128, 128>}, {pipeline_mode = #tpu.pipeline_mode<synchronous>, transform_indices = @transform_4, window_bounds = array<i64: 1, 128>}, {pipeline_mode = #tpu.pipeline_mode<synchronous>, transform_indices = @transform_5, window_bounds = array<i64: 2, 128>}]} {
    %c0_i32 = arith.constant 0 : i32
    %0 = arith.cmpi eq, %arg0, %c0_i32 : i32
    %1 = arith.extui %0 : i1 to i32
    %c0_i32_0 = arith.constant 0 : i32
    %2 = arith.cmpi ne, %1, %c0_i32_0 : i32
    scf.if %2 {
      %cst_9 = arith.constant 0.000000e+00 : f32
      %12 = vector.broadcast %cst_9 : f32 to vector<2x128xf32>
      %c0_10 = arith.constant 0 : index
      %c0_11 = arith.constant 0 : index
      %13 = vector.load %arg7[%c0_10, %c0_11] : memref<2x128xf32, #tpu.memory_space<vmem>>, vector<2x128xf32>
      tpu.vector_store %arg7[%c0_10, %c0_11], %12 {strides = array<i32>} : memref<2x128xf32, #tpu.memory_space<vmem>>, vector<2x128xf32>,
    } else {
    }
    %c0 = arith.constant 0 : index
    %c0_1 = arith.constant 0 : index
    %3 = vector.load %arg7[%c0, %c0_1] : memref<2x128xf32, #tpu.memory_space<vmem>>, vector<2x128xf32>
    %c0_2 = arith.constant 0 : index
    %c0_3 = arith.constant 0 : index
    %4 = vector.load %arg1[%c0_2, %c0_3] : memref<2x1024xbf16, #tpu.memory_space<vmem>>, vector<2x1024xbf16>
    %c0_4 = arith.constant 0 : index
    %c0_5 = arith.constant 0 : index
    %5 = vector.load %arg2[%c0_4, %c0_5] : memref<1024x128xbf16, #tpu.memory_space<vmem>>, vector<1024x128xbf16>
    %cst = arith.constant dense<0.000000e+00> : vector<2x128xf32>
    %6 = tpu.matmul %4, %5, %cst {dimension_numbers = #tpu.dot_dimension_numbers<[1], [0], [0], [1], [0, 0, 1, 1], [], []>} : vector<2x1024xbf16>, vector<1024x128xbf16>, vector<2x128xf32> -> vector<2x128xf32>
    %7 = arith.addf %3, %6 : vector<2x128xf32>
    %c0_6 = arith.constant 0 : index
    %c0_7 = arith.constant 0 : index
    %8 = vector.load %arg7[%c0_6, %c0_7] : memref<2x128xf32, #tpu.memory_space<vmem>>, vector<2x128xf32>
    tpu.vector_store %arg7[%c0_6, %c0_7], %7 {strides = array<i32>} : memref<2x128xf32, #tpu.memory_space<vmem>>, vector<2x128xf32>,
    %c3_i32 = arith.constant 3 : i32
    %9 = arith.cmpi eq, %arg0, %c3_i32 : i32
    %10 = arith.extui %9 : i1 to i32
    %c0_i32_8 = arith.constant 0 : i32
    %11 = arith.cmpi ne, %10, %c0_i32_8 : i32
    scf.if %11 {
      %c0_9 = arith.constant 0 : index
      %c0_10 = arith.constant 0 : index
      %12 = vector.load %arg7[%c0_9, %c0_10] : memref<2x128xf32, #tpu.memory_space<vmem>>, vector<2x128xf32>
      %c0_11 = arith.constant 0 : index
      %c0_12 = arith.constant 0 : index
      %13 = vector.load %arg3[%c0_11, %c0_12] : memref<1x128xf32, #tpu.memory_space<vmem>>, vector<1x128xf32>
      %14 = vector.broadcast %13 : vector<1x128xf32> to vector<2x128xf32>
      %15 = arith.addf %12, %14 : vector<2x128xf32>
      %cst_13 = arith.constant 0.000000e+00 : f32
      %16 = vector.broadcast %cst_13 : f32 to vector<2x128xf32>
      %17 = arith.maximumf %15, %16 : vector<2x128xf32>
      %c0_14 = arith.constant 0 : index
      %c0_15 = arith.constant 0 : index
      %18 = vector.load %arg4[%c0_14, %c0_15] : memref<128x128xf32, #tpu.memory_space<vmem>>, vector<128x128xf32>
      %cst_16 = arith.constant dense<0.000000e+00> : vector<2x128xf32>
      %19 = tpu.matmul %17, %18, %cst_16 {dimension_numbers = #tpu.dot_dimension_numbers<[1], [0], [0], [1], [0, 0, 1, 1], [], []>} : vector<2x128xf32>, vector<128x128xf32>, vector<2x128xf32> -> vector<2x128xf32>
      %c0_17 = arith.constant 0 : index
      %c0_18 = arith.constant 0 : index
      %20 = vector.load %arg5[%c0_17, %c0_18] : memref<1x128xf32, #tpu.memory_space<vmem>>, vector<1x128xf32>
      %21 = vector.broadcast %20 : vector<1x128xf32> to vector<2x128xf32>
      %22 = arith.addf %19, %21 : vector<2x128xf32>
      %c0_19 = arith.constant 0 : index
      %c0_20 = arith.constant 0 : index
      %23 = vector.load %arg6[%c0_19, %c0_20] : memref<2x128xf32, #tpu.memory_space<vmem>>, vector<2x128xf32>
      tpu.vector_store %arg6[%c0_19, %c0_20], %22 {strides = array<i32>} : memref<2x128xf32, #tpu.memory_space<vmem>>, vector<2x128xf32>,
    } else {
    }
    return
  }
  func.func @transform_0(%arg0: i32) -> (i32, i32) {
    %c0_i32 = arith.constant 0 : i32
    %c0_i32_0 = arith.constant 0 : i32
    return %c0_i32, %arg0 : i32, i32
  }
  func.func @transform_1(%arg0: i32) -> (i32, i32) {
    %c0_i32 = arith.constant 0 : i32
    %c0_i32_0 = arith.constant 0 : i32
    return %arg0, %c0_i32 : i32, i32
  }
  func.func @transform_2(%arg0: i32) -> (i32, i32) {
    %c0_i32 = arith.constant 0 : i32
    %c0_i32_0 = arith.constant 0 : i32
    %c0_i32_1 = arith.constant 0 : i32
    return %c0_i32, %c0_i32_0 : i32, i32
  }
  func.func @transform_3(%arg0: i32) -> (i32, i32) {
    %c0_i32 = arith.constant 0 : i32
    %c0_i32_0 = arith.constant 0 : i32
    %c0_i32_1 = arith.constant 0 : i32
    return %c0_i32, %c0_i32_0 : i32, i32
  }
  func.func @transform_4(%arg0: i32) -> (i32, i32) {
    %c0_i32 = arith.constant 0 : i32
    %c0_i32_0 = arith.constant 0 : i32
    %c0_i32_1 = arith.constant 0 : i32
    return %c0_i32, %c0_i32_0 : i32, i32
  }
  func.func @transform_5(%arg0: i32) -> (i32, i32) {
    %c0_i32 = arith.constant 0 : i32
    %c0_i32_0 = arith.constant 0 : i32
    %c0_i32_1 = arith.constant 0 : i32
    return %c0_i32, %c0_i32_0 : i32, i32
  }
}

module attributes {stable_mosaic.version = 11 : i64} {
  func.func @_decoder_kernel(%arg0: i32, %arg1: memref<2x30xf32, #tpu.memory_space<vmem>>, %arg2: memref<30x128xf32, #tpu.memory_space<vmem>>, %arg3: memref<1x128xf32, #tpu.memory_space<vmem>>, %arg4: memref<128x2048xbf16, #tpu.memory_space<vmem>>, %arg5: memref<1x2048xf32, #tpu.memory_space<vmem>>, %arg6: memref<2x2048xf32, #tpu.memory_space<vmem>>, %arg7: memref<1x1xf32, #tpu.memory_space<vmem>>, %arg8: memref<2x128xf32, #tpu.memory_space<vmem>>) attributes {dimension_semantics = [#tpu.dimension_semantics<arbitrary>], iteration_bounds = array<i64: 4>, scalar_prefetch = 0 : i64, scratch_operands = 1 : i64, tpu.core_type = #tpu.core_type<tc>, window_params = [{pipeline_mode = #tpu.pipeline_mode<synchronous>, transform_indices = @transform_0, window_bounds = array<i64: 2, 30>}, {pipeline_mode = #tpu.pipeline_mode<synchronous>, transform_indices = @transform_1, window_bounds = array<i64: 30, 128>}, {pipeline_mode = #tpu.pipeline_mode<synchronous>, transform_indices = @transform_2, window_bounds = array<i64: 1, 128>}, {transform_indices = @transform_3, window_bounds = array<i64: 128, 2048>}, {transform_indices = @transform_4, window_bounds = array<i64: 1, 2048>}, {transform_indices = @transform_5, window_bounds = array<i64: 2, 2048>}, {pipeline_mode = #tpu.pipeline_mode<synchronous>, transform_indices = @transform_6, window_bounds = array<i64: 1, 1>}]} {
    %c0_i32 = arith.constant 0 : i32
    %0 = arith.cmpi eq, %arg0, %c0_i32 : i32
    %1 = arith.extui %0 : i1 to i32
    %c0_i32_0 = arith.constant 0 : i32
    %2 = arith.cmpi ne, %1, %c0_i32_0 : i32
    scf.if %2 {
      %c0_14 = arith.constant 0 : index
      %c0_15 = arith.constant 0 : index
      %26 = vector.load %arg1[%c0_14, %c0_15] : memref<2x30xf32, #tpu.memory_space<vmem>>, vector<2x30xf32>
      %c0_16 = arith.constant 0 : index
      %c0_17 = arith.constant 0 : index
      %27 = vector.load %arg2[%c0_16, %c0_17] : memref<30x128xf32, #tpu.memory_space<vmem>>, vector<30x128xf32>
      %cst_18 = arith.constant dense<0.000000e+00> : vector<2x128xf32>
      %28 = tpu.matmul %26, %27, %cst_18 {dimension_numbers = #tpu.dot_dimension_numbers<[1], [0], [0], [1], [0, 0, 1, 1], [], []>} : vector<2x30xf32>, vector<30x128xf32>, vector<2x128xf32> -> vector<2x128xf32>
      %c0_19 = arith.constant 0 : index
      %c0_20 = arith.constant 0 : index
      %29 = vector.load %arg3[%c0_19, %c0_20] : memref<1x128xf32, #tpu.memory_space<vmem>>, vector<1x128xf32>
      %30 = vector.broadcast %29 : vector<1x128xf32> to vector<2x128xf32>
      %31 = arith.addf %28, %30 : vector<2x128xf32>
      %cst_21 = arith.constant 0.000000e+00 : f32
      %32 = vector.broadcast %cst_21 : f32 to vector<2x128xf32>
      %33 = arith.maximumf %31, %32 : vector<2x128xf32>
      %c0_22 = arith.constant 0 : index
      %c0_23 = arith.constant 0 : index
      %34 = vector.load %arg8[%c0_22, %c0_23] : memref<2x128xf32, #tpu.memory_space<vmem>>, vector<2x128xf32>
      tpu.vector_store %arg8[%c0_22, %c0_23], %33 {strides = array<i32>} : memref<2x128xf32, #tpu.memory_space<vmem>>, vector<2x128xf32>,
      %cst_24 = arith.constant 0.000000e+00 : f32
      %35 = vector.broadcast %cst_24 : f32 to vector<1x1xf32>
      %c0_25 = arith.constant 0 : index
      %c0_26 = arith.constant 0 : index
      %36 = vector.load %arg7[%c0_25, %c0_26] : memref<1x1xf32, #tpu.memory_space<vmem>>, vector<1x1xf32>
      tpu.vector_store %arg7[%c0_25, %c0_26], %35 {strides = array<i32>} : memref<1x1xf32, #tpu.memory_space<vmem>>, vector<1x1xf32>,
    } else {
    }
    %c0 = arith.constant 0 : index
    %c0_1 = arith.constant 0 : index
    %3 = vector.load %arg8[%c0, %c0_1] : memref<2x128xf32, #tpu.memory_space<vmem>>, vector<2x128xf32>
    %4 = arith.truncf %3 : vector<2x128xf32> to vector<2x128xbf16>
    %c0_2 = arith.constant 0 : index
    %c0_3 = arith.constant 0 : index
    %5 = vector.load %arg4[%c0_2, %c0_3] : memref<128x2048xbf16, #tpu.memory_space<vmem>>, vector<128x2048xbf16>
    %cst = arith.constant dense<0.000000e+00> : vector<2x2048xf32>
    %6 = tpu.matmul %4, %5, %cst {dimension_numbers = #tpu.dot_dimension_numbers<[1], [0], [0], [1], [0, 0, 1, 1], [], []>} : vector<2x128xbf16>, vector<128x2048xbf16>, vector<2x2048xf32> -> vector<2x2048xf32>
    %c0_4 = arith.constant 0 : index
    %c0_5 = arith.constant 0 : index
    %7 = vector.load %arg5[%c0_4, %c0_5] : memref<1x2048xf32, #tpu.memory_space<vmem>>, vector<1x2048xf32>
    %8 = vector.broadcast %7 : vector<1x2048xf32> to vector<2x2048xf32>
    %9 = arith.addf %6, %8 : vector<2x2048xf32>
    %10 = arith.negf %9 : vector<2x2048xf32>
    %11 = math.exp %10 : vector<2x2048xf32>
    %cst_6 = arith.constant 1.000000e+00 : f32
    %12 = vector.broadcast %cst_6 : f32 to vector<2x2048xf32>
    %13 = arith.addf %12, %11 : vector<2x2048xf32>
    %14 = arith.divf %12, %13 : vector<2x2048xf32>
    %c0_7 = arith.constant 0 : index
    %c0_8 = arith.constant 0 : index
    %15 = vector.load %arg6[%c0_7, %c0_8] : memref<2x2048xf32, #tpu.memory_space<vmem>>, vector<2x2048xf32>
    %16 = arith.subf %14, %15 : vector<2x2048xf32>
    %c0_9 = arith.constant 0 : index
    %c0_10 = arith.constant 0 : index
    %17 = vector.load %arg7[%c0_9, %c0_10] : memref<1x1xf32, #tpu.memory_space<vmem>>, vector<1x1xf32>
    %18 = arith.mulf %16, %16 : vector<2x2048xf32>
    %19 = vector.shape_cast %18 : vector<2x2048xf32> to vector<1x2x2048xf32>
    %cst_11 = arith.constant dense<0.000000e+00> : vector<1xf32>
    %20 = vector.multi_reduction <add>, %19, %cst_11 [1, 2] : vector<1x2x2048xf32> to vector<1xf32>
    %21 = vector.shape_cast %20 : vector<1xf32> to vector<1x1x1xf32>
    %22 = vector.extract %21[0, 0, 0] : f32 from vector<1x1x1xf32>
    %23 = vector.broadcast %22 : f32 to vector<1x1xf32>
    %24 = arith.addf %17, %23 : vector<1x1xf32>
    %c0_12 = arith.constant 0 : index
    %c0_13 = arith.constant 0 : index
    %25 = vector.load %arg7[%c0_12, %c0_13] : memref<1x1xf32, #tpu.memory_space<vmem>>, vector<1x1xf32>
    tpu.vector_store %arg7[%c0_12, %c0_13], %24 {strides = array<i32>} : memref<1x1xf32, #tpu.memory_space<vmem>>, vector<1x1xf32>,
    return
  }
  func.func @transform_0(%arg0: i32) -> (i32, i32) {
    %c0_i32 = arith.constant 0 : i32
    %c0_i32_0 = arith.constant 0 : i32
    %c0_i32_1 = arith.constant 0 : i32
    return %c0_i32, %c0_i32_0 : i32, i32
  }
  func.func @transform_1(%arg0: i32) -> (i32, i32) {
    %c0_i32 = arith.constant 0 : i32
    %c0_i32_0 = arith.constant 0 : i32
    %c0_i32_1 = arith.constant 0 : i32
    return %c0_i32, %c0_i32_0 : i32, i32
  }
  func.func @transform_2(%arg0: i32) -> (i32, i32) {
    %c0_i32 = arith.constant 0 : i32
    %c0_i32_0 = arith.constant 0 : i32
    %c0_i32_1 = arith.constant 0 : i32
    return %c0_i32, %c0_i32_0 : i32, i32
  }
  func.func @transform_3(%arg0: i32) -> (i32, i32) {
    %c0_i32 = arith.constant 0 : i32
    %c0_i32_0 = arith.constant 0 : i32
    return %c0_i32, %arg0 : i32, i32
  }
  func.func @transform_4(%arg0: i32) -> (i32, i32) {
    %c0_i32 = arith.constant 0 : i32
    %c0_i32_0 = arith.constant 0 : i32
    return %c0_i32, %arg0 : i32, i32
  }
  func.func @transform_5(%arg0: i32) -> (i32, i32) {
    %c0_i32 = arith.constant 0 : i32
    %c0_i32_0 = arith.constant 0 : i32
    return %c0_i32, %arg0 : i32, i32
  }
  func.func @transform_6(%arg0: i32) -> (i32, i32) {
    %c0_i32 = arith.constant 0 : i32
    %c0_i32_0 = arith.constant 0 : i32
    %c0_i32_1 = arith.constant 0 : i32
    return %c0_i32, %c0_i32_0 : i32, i32
  }
}

module attributes {stable_mosaic.version = 11 : i64} {
  func.func @_classifier_kernel(%arg0: memref<2x30xf32, #tpu.memory_space<vmem>>, %arg1: memref<30x32xf32, #tpu.memory_space<vmem>>, %arg2: memref<1x32xf32, #tpu.memory_space<vmem>>, %arg3: memref<1x32xf32, #tpu.memory_space<vmem>>, %arg4: memref<1x32xf32, #tpu.memory_space<vmem>>, %arg5: memref<32x3xf32, #tpu.memory_space<vmem>>, %arg6: memref<1x3xf32, #tpu.memory_space<vmem>>, %arg7: memref<2x3xf32, #tpu.memory_space<vmem>>) attributes {dimension_semantics = [], scalar_prefetch = 0 : i64, scratch_operands = 0 : i64, tpu.core_type = #tpu.core_type<tc>} {
    %c0 = arith.constant 0 : index
    %c0_0 = arith.constant 0 : index
    %0 = vector.load %arg0[%c0, %c0_0] : memref<2x30xf32, #tpu.memory_space<vmem>>, vector<2x30xf32>
    %c0_1 = arith.constant 0 : index
    %c0_2 = arith.constant 0 : index
    %1 = vector.load %arg1[%c0_1, %c0_2] : memref<30x32xf32, #tpu.memory_space<vmem>>, vector<30x32xf32>
    %cst = arith.constant dense<0.000000e+00> : vector<2x32xf32>
    %2 = tpu.matmul %0, %1, %cst {dimension_numbers = #tpu.dot_dimension_numbers<[1], [0], [0], [1], [0, 0, 1, 1], [], []>} : vector<2x30xf32>, vector<30x32xf32>, vector<2x32xf32> -> vector<2x32xf32>
    %c0_3 = arith.constant 0 : index
    %c0_4 = arith.constant 0 : index
    %3 = vector.load %arg2[%c0_3, %c0_4] : memref<1x32xf32, #tpu.memory_space<vmem>>, vector<1x32xf32>
    %4 = vector.broadcast %3 : vector<1x32xf32> to vector<2x32xf32>
    %5 = arith.addf %2, %4 : vector<2x32xf32>
    %cst_5 = arith.constant dense<0.000000e+00> : vector<32xf32>
    %6 = vector.multi_reduction <add>, %5, %cst_5 [0] : vector<2x32xf32> to vector<32xf32>
    %7 = vector.shape_cast %6 : vector<32xf32> to vector<1x32xf32>
    %cst_6 = arith.constant 2.000000e+00 : f32
    %8 = vector.broadcast %cst_6 : f32 to vector<1x32xf32>
    %9 = arith.divf %7, %8 : vector<1x32xf32>
    %10 = vector.broadcast %9 : vector<1x32xf32> to vector<2x32xf32>
    %11 = arith.subf %5, %10 : vector<2x32xf32>
    %12 = arith.mulf %11, %11 : vector<2x32xf32>
    %cst_7 = arith.constant dense<0.000000e+00> : vector<32xf32>
    %13 = vector.multi_reduction <add>, %12, %cst_7 [0] : vector<2x32xf32> to vector<32xf32>
    %14 = vector.shape_cast %13 : vector<32xf32> to vector<1x32xf32>
    %cst_8 = arith.constant 2.000000e+00 : f32
    %15 = vector.broadcast %cst_8 : f32 to vector<1x32xf32>
    %16 = arith.divf %14, %15 : vector<1x32xf32>
    %17 = vector.broadcast %9 : vector<1x32xf32> to vector<2x32xf32>
    %18 = arith.subf %5, %17 : vector<2x32xf32>
    %cst_9 = arith.constant 9.99999974E-6 : f32
    %19 = vector.broadcast %cst_9 : f32 to vector<1x32xf32>
    %20 = arith.addf %16, %19 : vector<1x32xf32>
    %21 = math.rsqrt %20 : vector<1x32xf32>
    %22 = vector.broadcast %21 : vector<1x32xf32> to vector<2x32xf32>
    %23 = arith.mulf %18, %22 : vector<2x32xf32>
    %c0_10 = arith.constant 0 : index
    %c0_11 = arith.constant 0 : index
    %24 = vector.load %arg3[%c0_10, %c0_11] : memref<1x32xf32, #tpu.memory_space<vmem>>, vector<1x32xf32>
    %25 = vector.broadcast %24 : vector<1x32xf32> to vector<2x32xf32>
    %26 = arith.mulf %23, %25 : vector<2x32xf32>
    %c0_12 = arith.constant 0 : index
    %c0_13 = arith.constant 0 : index
    %27 = vector.load %arg4[%c0_12, %c0_13] : memref<1x32xf32, #tpu.memory_space<vmem>>, vector<1x32xf32>
    %28 = vector.broadcast %27 : vector<1x32xf32> to vector<2x32xf32>
    %29 = arith.addf %26, %28 : vector<2x32xf32>
    %cst_14 = arith.constant 0.000000e+00 : f32
    %30 = vector.broadcast %cst_14 : f32 to vector<2x32xf32>
    %31 = arith.maximumf %29, %30 : vector<2x32xf32>
    %c0_15 = arith.constant 0 : index
    %c0_16 = arith.constant 0 : index
    %32 = vector.load %arg5[%c0_15, %c0_16] : memref<32x3xf32, #tpu.memory_space<vmem>>, vector<32x3xf32>
    %cst_17 = arith.constant dense<0.000000e+00> : vector<2x3xf32>
    %33 = tpu.matmul %31, %32, %cst_17 {dimension_numbers = #tpu.dot_dimension_numbers<[1], [0], [0], [1], [0, 0, 1, 1], [], []>} : vector<2x32xf32>, vector<32x3xf32>, vector<2x3xf32> -> vector<2x3xf32>
    %c0_18 = arith.constant 0 : index
    %c0_19 = arith.constant 0 : index
    %34 = vector.load %arg6[%c0_18, %c0_19] : memref<1x3xf32, #tpu.memory_space<vmem>>, vector<1x3xf32>
    %35 = vector.broadcast %34 : vector<1x3xf32> to vector<2x3xf32>
    %36 = arith.addf %33, %35 : vector<2x3xf32>
    %c0_20 = arith.constant 0 : index
    %c0_21 = arith.constant 0 : index
    %37 = vector.load %arg7[%c0_20, %c0_21] : memref<2x3xf32, #tpu.memory_space<vmem>>, vector<2x3xf32>
    tpu.vector_store %arg7[%c0_20, %c0_21], %36 {strides = array<i32>} : memref<2x3xf32, #tpu.memory_space<vmem>>, vector<2x3xf32>,
    return
  }
}

</mosaic_0001>

<llo_original>
// kernel: agedr_forward.5
$region0: #{agedr_forward.5}
  #allocation0 [shape = 'u32[]', space=smem, size = 0x4, offset = 0x4, fixed_abs, tag = 'smem constant byte address 0x4 - core index']
  #allocation1 [shape = 'u32[72,128]{1,0:T(1,128)}', space=vmem, size = 0x9000, scoped, tag = 'internal scratch']
  #allocation2 [shape = 'f32[2,128]{1,0:T(2,128)}', space=vmem, size = 0x400, scoped, tag = 'scratch operand']
  %s0 = inlined_call_operand.vmem [shape: bf16[2,4096], index: 0, kind: input, shape index: {}]
  %s1 = inlined_call_operand.vmem [shape: bf16[4096,128], index: 1, kind: input, shape index: {}]
  %s2 = inlined_call_operand.vmem [shape: f32[1,128], index: 2, kind: input, shape index: {}]
  %s3 = inlined_call_operand.vmem [shape: f32[128,128], index: 3, kind: input, shape index: {}]
  %s4 = inlined_call_operand.vmem [shape: f32[1,128], index: 4, kind: input, shape index: {}]
  %s5 = inlined_call_operand.vmem [shape: f32[2,128], index: 5, kind: output, shape index: {}]
  %s6 = sld [smem:[#allocation0]]
  $region61: #{agedr_forward.5} parent=0
    _
  %s8 = ssub.s32 1, %s6
  %s9 = scalar_select 0, %s8, %s6
  loop: start=0, step=1, limit=6
  $region2: #{agedr_forward.5} parent=0 // loop_pre_header
    _
  $region3: #{agedr_forward.5} parent=0 // loop_header
    %s11 = sphi 0, %s15
    %p12 = scmp.ge.s32.totalorder %s11, 6
    %s21 = sphi 0, %s23
    %s24 = sphi 0, %s21
    %s25 = sphi 0, %s24
    %s41 = sphi 0, %s25
    %s47 = sphi 0, %s49
    %s50 = sphi 0, %s47
    %s51 = sphi 0, %s50
    %s67 = sphi 0, %s51
    %s71 = sphi 0, %s71
    %s73 = sphi 0, %s71
    %s74 = sphi 0, %s73
    %s88 = sphi 0, %s74
    %s92 = sphi 0, %s92
    %s94 = sphi 0, %s92
    %s95 = sphi 0, %s94
    %s109 = sphi 0, %s95
    %s113 = sphi 0, %s113
    %s115 = sphi 0, %s113
    %s116 = sphi 0, %s115
    %s130 = sphi 0, %s116
    %s134 = sphi 0, %s134
    %s136 = sphi 0, %s134
    %s137 = sphi 0, %s136
    %s151 = sphi 0, %s137
  $region4: #{agedr_forward.5} parent=0 // loop_header_branch
    %14 = sbr.rel (%p12) target = $region8
  $region5: #{agedr_forward.5} parent=0 // loop_body
    %s16 = ssub.s32 %s11, 1
    %s17 = ssub.s32 %s11, 2
    %s18 = sadd.s32 %s11, 1
    %s19 = ssub.s32 %s11, %s18
    %p20 = scmp.eq.s32.totalorder %s19, 0
    %s22 = sadd.s32 %s21, 1
    %s23 = scalar_select %p20, %s21, %s22
    %p26 = pneg %p20
    %p27 = scmp.eq.s32.totalorder %s11, 3
    %p28 = por %p26, %p27
    %p29 = scmp.ne.s32.totalorder %s21, %s24
    %p30 = scmp.eq.s32.totalorder %s11, 0
    %p31 = por %p29, %p30
    %p32 = scmp.ne.s32.totalorder %s21, %s24
    %p33 = scmp.eq.s32.totalorder %s16, 3
    %p34 = por %p32, %p33
    %p35 = scmp.ne.s32.totalorder %s24, %s25
    %p36 = scmp.eq.s32.totalorder %s16, 0
    %p37 = por %p35, %p36
    %p38 = scmp.ne.s32.totalorder %s24, %s25
    %p39 = scmp.eq.s32.totalorder %s17, 3
    %p40 = por %p38, %p39
    %p42 = scmp.ne.s32.totalorder %s25, %s41
    %p43 = scmp.eq.s32.totalorder %s17, 0
    %p44 = por %p42, %p43
    %s45 = ssub.s32 %s11, %s18
    %p46 = scmp.eq.s32.totalorder %s45, 0
    %s48 = sadd.s32 %s47, 1
    %s49 = scalar_select %p46, %s47, %s48
    %p52 = pneg %p46
    %p53 = scmp.eq.s32.totalorder %s11, 3
    %p54 = por %p52, %p53
    %p55 = scmp.ne.s32.totalorder %s47, %s50
    %p56 = scmp.eq.s32.totalorder %s11, 0
    %p57 = por %p55, %p56
    %p58 = scmp.ne.s32.totalorder %s47, %s50
    %p59 = scmp.eq.s32.totalorder %s16, 3
    %p60 = por %p58, %p59
    %p61 = scmp.ne.s32.totalorder %s50, %s51
    %p62 = scmp.eq.s32.totalorder %s16, 0
    %p63 = por %p61, %p62
    %p64 = scmp.ne.s32.totalorder %s50, %s51
    %p65 = scmp.eq.s32.totalorder %s17, 3
    %p66 = por %p64, %p65
    %p68 = scmp.ne.s32.totalorder %s51, %s67
    %p69 = scmp.eq.s32.totalorder %s17, 0
    %p70 = por %p68, %p69
    %s72 = sadd.s32 %s71, 1
    %p75 = scmp.eq.s32.totalorder %s11, 3
    %p76 = scmp.ne.s32.totalorder %s71, %s73
    %p77 = scmp.eq.s32.totalorder %s11, 0
    %p78 = por %p76, %p77
    %p79 = scmp.ne.s32.totalorder %s71, %s73
    %p80 = scmp.eq.s32.totalorder %s16, 3
    %p81 = por %p79, %p80
    %p82 = scmp.ne.s32.totalorder %s73, %s74
    %p83 = scmp.eq.s32.totalorder %s16, 0
    %p84 = por %p82, %p83
    %p85 = scmp.ne.s32.totalorder %s73, %s74
    %p86 = scmp.eq.s32.totalorder %s17, 3
    %p87 = por %p85, %p86
    %p89 = scmp.ne.s32.totalorder %s74, %s88
    %p90 = scmp.eq.s32.totalorder %s17, 0
    %p91 = por %p89, %p90
    %s93 = sadd.s32 %s92, 1
    %p96 = scmp.eq.s32.totalorder %s11, 3
    %p97 = scmp.ne.s32.totalorder %s92, %s94
    %p98 = scmp.eq.s32.totalorder %s11, 0
    %p99 = por %p97, %p98
    %p100 = scmp.ne.s32.totalorder %s92, %s94
    %p101 = scmp.eq.s32.totalorder %s16, 3
    %p102 = por %p100, %p101
    %p103 = scmp.ne.s32.totalorder %s94, %s95
    %p104 = scmp.eq.s32.totalorder %s16, 0
    %p105 = por %p103, %p104
    %p106 = scmp.ne.s32.totalorder %s94, %s95
    %p107 = scmp.eq.s32.totalorder %s17, 3
    %p108 = por %p106, %p107
    %p110 = scmp.ne.s32.totalorder %s95, %s109
    %p111 = scmp.eq.s32.totalorder %s17, 0
    %p112 = por %p110, %p111
    %s114 = sadd.s32 %s113, 1
    %p117 = scmp.eq.s32.totalorder %s11, 3
    %p118 = scmp.ne.s32.totalorder %s113, %s115
    %p119 = scmp.eq.s32.totalorder %s11, 0
    %p120 = por %p118, %p119
    %p121 = scmp.ne.s32.totalorder %s113, %s115
    %p122 = scmp.eq.s32.totalorder %s16, 3
    %p123 = por %p121, %p122
    %p124 = scmp.ne.s32.totalorder %s115, %s116
    %p125 = scmp.eq.s32.totalorder %s16, 0
    %p126 = por %p124, %p125
    %p127 = scmp.ne.s32.totalorder %s115, %s116
    %p128 = scmp.eq.s32.totalorder %s17, 3
    %p129 = por %p127, %p128
    %p131 = scmp.ne.s32.totalorder %s116, %s130
    %p132 = scmp.eq.s32.totalorder %s17, 0
    %p133 = por %p131, %p132
    %s135 = sadd.s32 %s134, 1
    %p138 = scmp.eq.s32.totalorder %s11, 3
    %p139 = scmp.ne.s32.totalorder %s134, %s136
    %p140 = scmp.eq.s32.totalorder %s11, 0
    %p141 = por %p139, %p140
    %p142 = scmp.ne.s32.totalorder %s134, %s136
    %p143 = scmp.eq.s32.totalorder %s16, 3
    %p144 = por %p142, %p143
    %p145 = scmp.ne.s32.totalorder %s136, %s137
    %p146 = scmp.eq.s32.totalorder %s16, 0
    %p147 = por %p145, %p146
    %p148 = scmp.ne.s32.totalorder %s136, %s137
    %p149 = scmp.eq.s32.totalorder %s17, 3
    %p150 = por %p148, %p149
    %p152 = scmp.ne.s32.totalorder %s137, %s151
    %p153 = scmp.eq.s32.totalorder %s17, 0
    %p154 = por %p152, %p153
    %p155 = scmp.le.s32.totalorder 1, %s11
    %p156 = scmp.lt.s32.totalorder %s11, 5
    %p157 = pnand %p155, %p156
    %p158 = pneg %p157
    // Predicated region
    $region9: #{agedr_forward.5} parent=5 // pred_check
      _
    $region10: #{agedr_forward.5} parent=5 // pred_check_branch
      %160 = sbr.rel (%p157) target = $region12
    $region11: #{agedr_forward.5} parent=5 // pred_region
      %s161 = ssub.s32 %s11, 1
      // Predicated region
      $region13: #{agedr_forward.5} parent=11 // pred_check
        %p162 = pneg %p84
      $region14: #{agedr_forward.5} parent=11 // pred_check_branch
        %164 = sbr.rel (%p162) target = $region16
      $region15: #{agedr_forward.5} parent=11 // pred_region
        _
      $region16: #{agedr_forward.5} parent=11 // pred_fallthru
        _
      // Predicated region
      $region17: #{agedr_forward.5} parent=11 // pred_check
        %p165 = pneg %p105
      $region18: #{agedr_forward.5} parent=11 // pred_check_branch
        %167 = sbr.rel (%p165) target = $region20
      $region19: #{agedr_forward.5} parent=11 // pred_region
        _
      $region20: #{agedr_forward.5} parent=11 // pred_fallthru
        _
      // Predicated region
      $region21: #{agedr_forward.5} parent=11 // pred_check
        %p168 = pneg %p126
      $region22: #{agedr_forward.5} parent=11 // pred_check_branch
        %170 = sbr.rel (%p168) target = $region24
      $region23: #{agedr_forward.5} parent=11 // pred_region
        _
      $region24: #{agedr_forward.5} parent=11 // pred_fallthru
        _
    $region12: #{agedr_forward.5} parent=5 // pred_fallthru
      _
    %p171 = scmp.lt.s32.totalorder %s11, 4
    // Predicated region
    $region25: #{agedr_forward.5} parent=5 // pred_check
      %p172 = pneg %p171
    $region26: #{agedr_forward.5} parent=5 // pred_check_branch
      %174 = sbr.rel (%p172) target = $region28
    $region27: #{agedr_forward.5} parent=5 // pred_region
      // Predicated region
      $region29: #{agedr_forward.5} parent=27 // pred_check
        %p175 = pneg %p31
      $region30: #{agedr_forward.5} parent=27 // pred_check_branch
        %177 = sbr.rel (%p175) target = $region32
      $region31: #{agedr_forward.5} parent=27 // pred_region
        %s178 = smul.u32 8, %s11
        %p179 = scmp.lt.s32.totalorder %s178, 31
        %s180 = scalar_select %p179, %s178, 31
        %s181 = scalar_lea.vmem %s0, %s180
        %s182 = smul.u32 8, %s11
      $region32: #{agedr_forward.5} parent=27 // pred_fallthru
        _
      // Predicated region
      $region33: #{agedr_forward.5} parent=27 // pred_check
        %p183 = pneg %p57
      $region34: #{agedr_forward.5} parent=27 // pred_check_branch
        %185 = sbr.rel (%p183) target = $region36
      $region35: #{agedr_forward.5} parent=27 // pred_region
        %s186 = smul.u32 128, %s11
        %p187 = scmp.lt.s32.totalorder %s186, 511
        %s188 = scalar_select %p187, %s186, 511
        %s189 = smul.addr %s188, 4
        %s190 = scalar_lea.vmem %s1, %s189
        %s191 = smul.u32 128, %s11
      $region36: #{agedr_forward.5} parent=27 // pred_fallthru
        _
    $region28: #{agedr_forward.5} parent=5 // pred_fallthru
      _
    %p192 = scmp.le.s32.totalorder 1, %s11
    %p193 = scmp.lt.s32.totalorder %s11, 5
    %p194 = pnand %p192, %p193
    %p195 = pneg %p194
    // Predicated region
    $region37: #{agedr_forward.5} parent=5 // pred_check
      _
    $region38: #{agedr_forward.5} parent=5 // pred_check_branch
      %197 = sbr.rel (%p194) target = $region40
    $region39: #{agedr_forward.5} parent=5 // pred_region
      %s198 = ssub.s32 %s11, 1
      %s199 = smul.u32 8, %s16
      %p200 = scmp.lt.s32.totalorder %s199, 31
      %s201 = scalar_select %p200, %s199, 31
      %s202 = scalar_lea.vmem %s0, %s201
      %p203 = pneg %p37
      %p204 = pneg %p34
      %s205 = smul.u32 128, %s16
      %p206 = scmp.lt.s32.totalorder %s205, 511
      %s207 = scalar_select %p206, %s205, 511
      %s208 = smul.addr %s207, 4
      %s209 = scalar_lea.vmem %s1, %s208
      %p210 = pneg %p63
      %p211 = pneg %p60
      %p212 = pneg %p84
      %p213 = pneg %p81
      %p214 = pneg %p105
      %p215 = pneg %p102
      %p216 = pneg %p126
      %p217 = pneg %p123
      %p218 = pneg %p147
      %p219 = pneg %p144
      %s220 = smul.u32 8, %s16
      %p221 = scmp.lt.s32.totalorder %s220, 31
      %s222 = scalar_select %p221, %s220, 31
      %s223 = scalar_lea.vmem %s0, %s222
      %s224 = smul.u32 8, %s16
      %s225 = smul.u32 128, %s16
      %p226 = scmp.lt.s32.totalorder %s225, 511
      %s227 = scalar_select %p226, %s225, 511
      %s228 = smul.addr %s227, 4
      %s229 = scalar_lea.vmem %s1, %s228
      %s230 = smul.u32 128, %s16
      %p231 = scmp.eq.s32.totalorder %s16, 0
      // Predicated region
      $region41: #{agedr_forward.5} parent=39 // pred_check
        %p232 = pneg %p231
      $region42: #{agedr_forward.5} parent=39 // pred_check_branch
        %234 = sbr.rel (%p232) target = $region44
      $region43: #{agedr_forward.5} parent=39 // pred_region
        %235 = vst [vmem:[#allocation2] sm:$0x3] 0.0
      $region44: #{agedr_forward.5} parent=39 // pred_fallthru
        _
      %v236 = vld [vmem:[#allocation2] sm:$0x3]
      %v237 = vld [vmem:[%s223] sm:$0xff]
      %v238 = vld [vmem:[%s229] sm:$0xf]
      %v239 = vld [vmem:[%s229 + $0x4] sm:$0xf]
      %v240 = vld [vmem:[%s229 + $0x8] sm:$0xf]
      %v241 = vld [vmem:[%s229 + $0xc] sm:$0xf]
      %v242 = vld [vmem:[%s229 + $0x10] sm:$0xf]
      %v243 = vld [vmem:[%s229 + $0x14] sm:$0xf]
      %v244 = vld [vmem:[%s229 + $0x18] sm:$0xf]
      %v245 = vld [vmem:[%s229 + $0x1c] sm:$0xf]
      %v246 = vld [vmem:[%s229 + $0x20] sm:$0xf]
      %v247 = vld [vmem:[%s229 + $0x24] sm:$0xf]
      %v248 = vld [vmem:[%s229 + $0x28] sm:$0xf]
      %v249 = vld [vmem:[%s229 + $0x2c] sm:$0xf]
      %v250 = vld [vmem:[%s229 + $0x30] sm:$0xf]
      %v251 = vld [vmem:[%s229 + $0x34] sm:$0xf]
      %v252 = vld [vmem:[%s229 + $0x38] sm:$0xf]
      %v253 = vld [vmem:[%s229 + $0x3c] sm:$0xf]
      %v254 = vld [vmem:[%s229 + $0x40] sm:$0xf]
      %v255 = vld [vmem:[%s229 + $0x44] sm:$0xf]
      %v256 = vld [vmem:[%s229 + $0x48] sm:$0xf]
      %v257 = vld [vmem:[%s229 + $0x4c] sm:$0xf]
      %v258 = vld [vmem:[%s229 + $0x50] sm:$0xf]
      %v259 = vld [vmem:[%s229 + $0x54] sm:$0xf]
      %v260 = vld [vmem:[%s229 + $0x58] sm:$0xf]
      %v261 = vld [vmem:[%s229 + $0x5c] sm:$0xf]
      %v262 = vld [vmem:[%s229 + $0x60] sm:$0xf]
      %v263 = vld [vmem:[%s229 + $0x64] sm:$0xf]
      %v264 = vld [vmem:[%s229 + $0x68] sm:$0xf]
      %v265 = vld [vmem:[%s229 + $0x6c] sm:$0xf]
      %v266 = vld [vmem:[%s229 + $0x70] sm:$0xf]
      %v267 = vld [vmem:[%s229 + $0x74] sm:$0xf]
      %v268 = vld [vmem:[%s229 + $0x78] sm:$0xf]
      %v269 = vld [vmem:[%s229 + $0x7c] sm:$0xf]
      %v270 = vld [vmem:[%s229 + $0x80] sm:$0xf]
      %v271 = vld [vmem:[%s229 + $0x84] sm:$0xf]
      %v272 = vld [vmem:[%s229 + $0x88] sm:$0xf]
      %v273 = vld [vmem:[%s229 + $0x8c] sm:$0xf]
      %v274 = vld [vmem:[%s229 + $0x90] sm:$0xf]
      %v275 = vld [vmem:[%s229 + $0x94] sm:$0xf]
      %v276 = vld [vmem:[%s229 + $0x98] sm:$0xf]
      %v277 = vld [vmem:[%s229 + $0x9c] sm:$0xf]
      %v278 = vld [vmem:[%s229 + $0xa0] sm:$0xf]
      %v279 = vld [vmem:[%s229 + $0xa4] sm:$0xf]
      %v280 = vld [vmem:[%s229 + $0xa8] sm:$0xf]
      %v281 = vld [vmem:[%s229 + $0xac] sm:$0xf]
      %v282 = vld [vmem:[%s229 + $0xb0] sm:$0xf]
      %v283 = vld [vmem:[%s229 + $0xb4] sm:$0xf]
      %v284 = vld [vmem:[%s229 + $0xb8] sm:$0xf]
      %v285 = vld [vmem:[%s229 + $0xbc] sm:$0xf]
      %v286 = vld [vmem:[%s229 + $0xc0] sm:$0xf]
      %v287 = vld [vmem:[%s229 + $0xc4] sm:$0xf]
      %v288 = vld [vmem:[%s229 + $0xc8] sm:$0xf]
      %v289 = vld [vmem:[%s229 + $0xcc] sm:$0xf]
      %v290 = vld [vmem:[%s229 + $0xd0] sm:$0xf]
      %v291 = vld [vmem:[%s229 + $0xd4] sm:$0xf]
      %v292 = vld [vmem:[%s229 + $0xd8] sm:$0xf]
      %v293 = vld [vmem:[%s229 + $0xdc] sm:$0xf]
      %v294 = vld [vmem:[%s229 + $0xe0] sm:$0xf]
      %v295 = vld [vmem:[%s229 + $0xe4] sm:$0xf]
      %v296 = vld [vmem:[%s229 + $0xe8] sm:$0xf]
      %v297 = vld [vmem:[%s229 + $0xec] sm:$0xf]
      %v298 = vld [vmem:[%s229 + $0xf0] sm:$0xf]
      %v299 = vld [vmem:[%s229 + $0xf4] sm:$0xf]
      %v300 = vld [vmem:[%s229 + $0xf8] sm:$0xf]
      %v301 = vld [vmem:[%s229 + $0xfc] sm:$0xf]
      %v302 = vld [vmem:[%s229 + $0x100] sm:$0xf]
      %v303 = vld [vmem:[%s229 + $0x104] sm:$0xf]
      %v304 = vld [vmem:[%s229 + $0x108] sm:$0xf]
      %v305 = vld [vmem:[%s229 + $0x10c] sm:$0xf]
      %v306 = vld [vmem:[%s229 + $0x110] sm:$0xf]
      %v307 = vld [vmem:[%s229 + $0x114] sm:$0xf]
      %v308 = vld [vmem:[%s229 + $0x118] sm:$0xf]
      %v309 = vld [vmem:[%s229 + $0x11c] sm:$0xf]
      %v310 = vld [vmem:[%s229 + $0x120] sm:$0xf]
      %v311 = vld [vmem:[%s229 + $0x124] sm:$0xf]
      %v312 = vld [vmem:[%s229 + $0x128] sm:$0xf]
      %v313 = vld [vmem:[%s229 + $0x12c] sm:$0xf]
      %v314 = vld [vmem:[%s229 + $0x130] sm:$0xf]
      %v315 = vld [vmem:[%s229 + $0x134] sm:$0xf]
      %v316 = vld [vmem:[%s229 + $0x138] sm:$0xf]
      %v317 = vld [vmem:[%s229 + $0x13c] sm:$0xf]
      %v318 = vld [vmem:[%s229 + $0x140] sm:$0xf]
      %v319 = vld [vmem:[%s229 + $0x144] sm:$0xf]
      %v320 = vld [vmem:[%s229 + $0x148] sm:$0xf]
      %v321 = vld [vmem:[%s229 + $0x14c] sm:$0xf]
      %v322 = vld [vmem:[%s229 + $0x150] sm:$0xf]
      %v323 = vld [vmem:[%s229 + $0x154] sm:$0xf]
      %v324 = vld [vmem:[%s229 + $0x158] sm:$0xf]
      %v325 = vld [vmem:[%s229 + $0x15c] sm:$0xf]
      %v326 = vld [vmem:[%s229 + $0x160] sm:$0xf]
      %v327 = vld [vmem:[%s229 + $0x164] sm:$0xf]
      %v328 = vld [vmem:[%s229 + $0x168] sm:$0xf]
      %v329 = vld [vmem:[%s229 + $0x16c] sm:$0xf]
      %v330 = vld [vmem:[%s229 + $0x170] sm:$0xf]
      %v331 = vld [vmem:[%s229 + $0x174] sm:$0xf]
      %v332 = vld [vmem:[%s229 + $0x178] sm:$0xf]
      %v333 = vld [vmem:[%s229 + $0x17c] sm:$0xf]
      %v334 = vld [vmem:[%s229 + $0x180] sm:$0xf]
      %v335 = vld [vmem:[%s229 + $0x184] sm:$0xf]
      %v336 = vld [vmem:[%s229 + $0x188] sm:$0xf]
      %v337 = vld [vmem:[%s229 + $0x18c] sm:$0xf]
      %v338 = vld [vmem:[%s229 + $0x190] sm:$0xf]
      %v339 = vld [vmem:[%s229 + $0x194] sm:$0xf]
      %v340 = vld [vmem:[%s229 + $0x198] sm:$0xf]
      %v341 = vld [vmem:[%s229 + $0x19c] sm:$0xf]
      %v342 = vld [vmem:[%s229 + $0x1a0] sm:$0xf]
      %v343 = vld [vmem:[%s229 + $0x1a4] sm:$0xf]
      %v344 = vld [vmem:[%s229 + $0x1a8] sm:$0xf]
      %v345 = vld [vmem:[%s229 + $0x1ac] sm:$0xf]
      %v346 = vld [vmem:[%s229 + $0x1b0] sm:$0xf]
      %v347 = vld [vmem:[%s229 + $0x1b4] sm:$0xf]
      %v348 = vld [vmem:[%s229 + $0x1b8] sm:$0xf]
      %v349 = vld [vmem:[%s229 + $0x1bc] sm:$0xf]
      %v350 = vld [vmem:[%s229 + $0x1c0] sm:$0xf]
      %v351 = vld [vmem:[%s229 + $0x1c4] sm:$0xf]
      %v352 = vld [vmem:[%s229 + $0x1c8] sm:$0xf]
      %v353 = vld [vmem:[%s229 + $0x1cc] sm:$0xf]
      %v354 = vld [vmem:[%s229 + $0x1d0] sm:$0xf]
      %v355 = vld [vmem:[%s229 + $0x1d4] sm:$0xf]
      %v356 = vld [vmem:[%s229 + $0x1d8] sm:$0xf]
      %v357 = vld [vmem:[%s229 + $0x1dc] sm:$0xf]
      %v358 = vld [vmem:[%s229 + $0x1e0] sm:$0xf]
      %v359 = vld [vmem:[%s229 + $0x1e4] sm:$0xf]
      %v360 = vld [vmem:[%s229 + $0x1e8] sm:$0xf]
      %v361 = vld [vmem:[%s229 + $0x1ec] sm:$0xf]
      %v362 = vld [vmem:[%s229 + $0x1f0] sm:$0xf]
      %v363 = vld [vmem:[%s229 + $0x1f4] sm:$0xf]
      %v364 = vld [vmem:[%s229 + $0x1f8] sm:$0xf]
      %v365 = vld [vmem:[%s229 + $0x1fc] sm:$0xf]
      %367 = vst [vmem:[#allocation1] ss:$9 sm:$0xff] %v237
      %v368 = vld [vmem:[#allocation1] sm:$0xff]
      %v369 = vld [vmem:[#allocation1 + $0x9] sm:$0xff]
      %v370 = vld [vmem:[#allocation1 + $0x12] sm:$0xff]
      %v371 = vld [vmem:[#allocation1 + $0x1b] sm:$0xff]
      %v372 = vld [vmem:[#allocation1 + $0x24] sm:$0xff]
      %v373 = vld [vmem:[#allocation1 + $0x2d] sm:$0xff]
      %v374 = vld [vmem:[#allocation1 + $0x36] sm:$0xff]
      %v375 = vld [vmem:[#allocation1 + $0x3f] sm:$0xff]
      %v512 = vunpack.c.l.b16 %v238
      %v513 = vunpack.c.l.b16 %v239
      %v514 = vunpack.c.l.b16 %v240
      %v515 = vunpack.c.l.b16 %v241
      %v516 = vunpack.c.l.b16 %v242
      %v517 = vunpack.c.l.b16 %v243
      %v518 = vunpack.c.l.b16 %v244
      %v519 = vunpack.c.l.b16 %v245
      %v520 = vunpack.c.l.b16 %v246
      %v521 = vunpack.c.l.b16 %v247
      %v522 = vunpack.c.l.b16 %v248
      %v523 = vunpack.c.l.b16 %v249
      %v524 = vunpack.c.l.b16 %v250
      %v525 = vunpack.c.l.b16 %v251
      %v526 = vunpack.c.l.b16 %v252
      %v527 = vunpack.c.l.b16 %v253
      %v528 = vunpack.c.l.b16 %v254
      %v529 = vunpack.c.l.b16 %v255
      %v530 = vunpack.c.l.b16 %v256
      %v531 = vunpack.c.l.b16 %v257
      %v532 = vunpack.c.l.b16 %v258
      %v533 = vunpack.c.l.b16 %v259
      %v534 = vunpack.c.l.b16 %v260
      %v535 = vunpack.c.l.b16 %v261
      %v536 = vunpack.c.l.b16 %v262
      %v537 = vunpack.c.l.b16 %v263
      %v538 = vunpack.c.l.b16 %v264
      %v539 = vunpack.c.l.b16 %v265
      %v540 = vunpack.c.l.b16 %v266
      %v541 = vunpack.c.l.b16 %v267
      %v542 = vunpack.c.l.b16 %v268
      %v543 = vunpack.c.l.b16 %v269
      %v544 = vunpack.c.l.b16 %v270
      %v545 = vunpack.c.l.b16 %v271
      %v546 = vunpack.c.l.b16 %v272
      %v547 = vunpack.c.l.b16 %v273
      %v548 = vunpack.c.l.b16 %v274
      %v549 = vunpack.c.l.b16 %v275
      %v550 = vunpack.c.l.b16 %v276
      %v551 = vunpack.c.l.b16 %v277
      %v552 = vunpack.c.l.b16 %v278
      %v553 = vunpack.c.l.b16 %v279
      %v554 = vunpack.c.l.b16 %v280
      %v555 = vunpack.c.l.b16 %v281
      %v556 = vunpack.c.l.b16 %v282
      %v557 = vunpack.c.l.b16 %v283
      %v558 = vunpack.c.l.b16 %v284
      %v559 = vunpack.c.l.b16 %v285
      %v560 = vunpack.c.l.b16 %v286
      %v561 = vunpack.c.l.b16 %v287
      %v562 = vunpack.c.l.b16 %v288
      %v563 = vunpack.c.l.b16 %v289
      %v564 = vunpack.c.l.b16 %v290
      %v565 = vunpack.c.l.b16 %v291
      %v566 = vunpack.c.l.b16 %v292
      %v567 = vunpack.c.l.b16 %v293
      %v568 = vunpack.c.l.b16 %v294
      %v569 = vunpack.c.l.b16 %v295
      %v570 = vunpack.c.l.b16 %v296
      %v571 = vunpack.c.l.b16 %v297
      %v572 = vunpack.c.l.b16 %v298
      %v573 = vunpack.c.l.b16 %v299
      %v574 = vunpack.c.l.b16 %v300
      %v575 = vunpack.c.l.b16 %v301
      %v576 = vunpack.c.l.b16 %v302
      %v577 = vunpack.c.l.b16 %v303
      %v578 = vunpack.c.l.b16 %v304
      %v579 = vunpack.c.l.b16 %v305
      %v580 = vunpack.c.l.b16 %v306
      %v581 = vunpack.c.l.b16 %v307
      %v582 = vunpack.c.l.b16 %v308
      %v583 = vunpack.c.l.b16 %v309
      %v584 = vunpack.c.l.b16 %v310
      %v585 = vunpack.c.l.b16 %v311
      %v586 = vunpack.c.l.b16 %v312
      %v587 = vunpack.c.l.b16 %v313
      %v588 = vunpack.c.l.b16 %v314
      %v589 = vunpack.c.l.b16 %v315
      %v590 = vunpack.c.l.b16 %v316
      %v591 = vunpack.c.l.b16 %v317
      %v592 = vunpack.c.l.b16 %v318
      %v593 = vunpack.c.l.b16 %v319
      %v594 = vunpack.c.l.b16 %v320
      %v595 = vunpack.c.l.b16 %v321
      %v596 = vunpack.c.l.b16 %v322
      %v597 = vunpack.c.l.b16 %v323
      %v598 = vunpack.c.l.b16 %v324
      %v599 = vunpack.c.l.b16 %v325
      %v600 = vunpack.c.l.b16 %v326
      %v601 = vunpack.c.l.b16 %v327
      %v602 = vunpack.c.l.b16 %v328
      %v603 = vunpack.c.l.b16 %v329
      %v604 = vunpack.c.l.b16 %v330
      %v605 = vunpack.c.l.b16 %v331
      %v606 = vunpack.c.l.b16 %v332
      %v607 = vunpack.c.l.b16 %v333
      %v608 = vunpack.c.l.b16 %v334
      %v609 = vunpack.c.l.b16 %v335
      %v610 = vunpack.c.l.b16 %v336
      %v611 = vunpack.c.l.b16 %v337
      %v612 = vunpack.c.l.b16 %v338
      %v613 = vunpack.c.l.b16 %v339
      %v614 = vunpack.c.l.b16 %v340
      %v615 = vunpack.c.l.b16 %v341
      %v616 = vunpack.c.l.b16 %v342
      %v617 = vunpack.c.l.b16 %v343
      %v618 = vunpack.c.l.b16 %v344
      %v619 = vunpack.c.l.b16 %v345
      %v620 = vunpack.c.l.b16 %v346
      %v621 = vunpack.c.l.b16 %v347
      %v622 = vunpack.c.l.b16 %v348
      %v623 = vunpack.c.l.b16 %v349
      %v624 = vunpack.c.l.b16 %v350
      %v625 = vunpack.c.l.b16 %v351
      %v626 = vunpack.c.l.b16 %v352
      %v627 = vunpack.c.l.b16 %v353
      %v628 = vunpack.c.l.b16 %v354
      %v629 = vunpack.c.l.b16 %v355
      %v630 = vunpack.c.l.b16 %v356
      %v631 = vunpack.c.l.b16 %v357
      %v632 = vunpack.c.l.b16 %v358
      %v633 = vunpack.c.l.b16 %v359
      %v634 = vunpack.c.l.b16 %v360
      %v635 = vunpack.c.l.b16 %v361
      %v636 = vunpack.c.l.b16 %v362
      %v637 = vunpack.c.l.b16 %v363
      %v638 = vunpack.c.l.b16 %v364
      %v639 = vunpack.c.l.b16 %v365
      %v640 = vpack.c.b16 %v513, %v512
      %v641 = vpack.c.b16 %v515, %v514
      %v642 = vpack.c.b16 %v517, %v516
      %v643 = vpack.c.b16 %v519, %v518
      %v644 = vpack.c.b16 %v521, %v520
      %v645 = vpack.c.b16 %v523, %v522
      %v646 = vpack.c.b16 %v525, %v524
      %v647 = vpack.c.b16 %v527, %v526
      %v648 = vpack.c.b16 %v529, %v528
      %v649 = vpack.c.b16 %v531, %v530
      %v650 = vpack.c.b16 %v533, %v532
      %v651 = vpack.c.b16 %v535, %v534
      %v652 = vpack.c.b16 %v537, %v536
      %v653 = vpack.c.b16 %v539, %v538
      %v654 = vpack.c.b16 %v541, %v540
      %v655 = vpack.c.b16 %v543, %v542
      %v656 = vpack.c.b16 %v545, %v544
      %v657 = vpack.c.b16 %v547, %v546
      %v658 = vpack.c.b16 %v549, %v548
      %v659 = vpack.c.b16 %v551, %v550
      %v660 = vpack.c.b16 %v553, %v552
      %v661 = vpack.c.b16 %v555, %v554
      %v662 = vpack.c.b16 %v557, %v556
      %v663 = vpack.c.b16 %v559, %v558
      %v664 = vpack.c.b16 %v561, %v560
      %v665 = vpack.c.b16 %v563, %v562
      %v666 = vpack.c.b16 %v565, %v564
      %v667 = vpack.c.b16 %v567, %v566
      %v668 = vpack.c.b16 %v569, %v568
      %v669 = vpack.c.b16 %v571, %v570
      %v670 = vpack.c.b16 %v573, %v572
      %v671 = vpack.c.b16 %v575, %v574
      %v672 = vpack.c.b16 %v577, %v576
      %v673 = vpack.c.b16 %v579, %v578
      %v674 = vpack.c.b16 %v581, %v580
      %v675 = vpack.c.b16 %v583, %v582
      %v676 = vpack.c.b16 %v585, %v584
      %v677 = vpack.c.b16 %v587, %v586
      %v678 = vpack.c.b16 %v589, %v588
      %v679 = vpack.c.b16 %v591, %v590
      %v680 = vpack.c.b16 %v593, %v592
      %v681 = vpack.c.b16 %v595, %v594
      %v682 = vpack.c.b16 %v597, %v596
      %v683 = vpack.c.b16 %v599, %v598
      %v684 = vpack.c.b16 %v601, %v600
      %v685 = vpack.c.b16 %v603, %v602
      %v686 = vpack.c.b16 %v605, %v604
      %v687 = vpack.c.b16 %v607, %v606
      %v688 = vpack.c.b16 %v609, %v608
      %v689 = vpack.c.b16 %v611, %v610
      %v690 = vpack.c.b16 %v613, %v612
      %v691 = vpack.c.b16 %v615, %v614
      %v692 = vpack.c.b16 %v617, %v616
      %v693 = vpack.c.b16 %v619, %v618
      %v694 = vpack.c.b16 %v621, %v620
      %v695 = vpack.c.b16 %v623, %v622
      %v696 = vpack.c.b16 %v625, %v624
      %v697 = vpack.c.b16 %v627, %v626
      %v698 = vpack.c.b16 %v629, %v628
      %v699 = vpack.c.b16 %v631, %v630
      %v700 = vpack.c.b16 %v633, %v632
      %v701 = vpack.c.b16 %v635, %v634
      %v702 = vpack.c.b16 %v637, %v636
      %v703 = vpack.c.b16 %v639, %v638
      %768 = vmatpush.bf16.msra.mxu0 %v647
      %769 = vmatpush.bf16.msra.mxu0 %v646
      %770 = vmatpush.bf16.msra.mxu0 %v645
      %771 = vmatpush.bf16.msra.mxu0 %v644
      %772 = vmatpush.bf16.msra.mxu0 %v643
      %773 = vmatpush.bf16.msra.mxu0 %v642
      %774 = vmatpush.bf16.msra.mxu0 %v641
      %775 = vmatpush.bf16.msra.mxu0 %v640
      %776 = vmatmul.bf16.gmra.mxu0 %v368
      %v777 = vpop.f32.mrf.mxu0
      %v778 = vadd.f32 0.0, %v777
      %v779 = vpop.f32.mrf.mxu0
      %780 = vdwg.mxu0
      %781 = vmatpush.bf16.msra.mxu0 %v655
      %782 = vmatpush.bf16.msra.mxu0 %v654
      %783 = vmatpush.bf16.msra.mxu0 %v653
      %784 = vmatpush.bf16.msra.mxu0 %v652
      %785 = vmatpush.bf16.msra.mxu0 %v651
      %786 = vmatpush.bf16.msra.mxu0 %v650
      %787 = vmatpush.bf16.msra.mxu0 %v649
      %788 = vmatpush.bf16.msra.mxu0 %v648
      %789 = vmatmul.bf16.gmra.mxu0 %v369
      %v790 = vpop.f32.mrf.mxu0
      %v791 = vadd.f32 %v778, %v790
      %v792 = vpop.f32.mrf.mxu0
      %793 = vdwg.mxu0
      %794 = vmatpush.bf16.msra.mxu0 %v663
      %795 = vmatpush.bf16.msra.mxu0 %v662
      %796 = vmatpush.bf16.msra.mxu0 %v661
      %797 = vmatpush.bf16.msra.mxu0 %v660
      %798 = vmatpush.bf16.msra.mxu0 %v659
      %799 = vmatpush.bf16.msra.mxu0 %v658
      %800 = vmatpush.bf16.msra.mxu0 %v657
      %801 = vmatpush.bf16.msra.mxu0 %v656
      %802 = vmatmul.bf16.gmra.mxu0 %v370
      %v803 = vpop.f32.mrf.mxu0
      %v804 = vadd.f32 %v791, %v803
      %v805 = vpop.f32.mrf.mxu0
      %806 = vdwg.mxu0
      %807 = vmatpush.bf16.msra.mxu0 %v671
      %808 = vmatpush.bf16.msra.mxu0 %v670
      %809 = vmatpush.bf16.msra.mxu0 %v669
      %810 = vmatpush.bf16.msra.mxu0 %v668
      %811 = vmatpush.bf16.msra.mxu0 %v667
      %812 = vmatpush.bf16.msra.mxu0 %v666
      %813 = vmatpush.bf16.msra.mxu0 %v665
      %814 = vmatpush.bf16.msra.mxu0 %v664
      %815 = vmatmul.bf16.gmra.mxu0 %v371
      %v816 = vpop.f32.mrf.mxu0
      %v817 = vadd.f32 %v804, %v816
      %v818 = vpop.f32.mrf.mxu0
      %819 = vdwg.mxu0
      %820 = vmatpush.bf16.msra.mxu0 %v679
      %821 = vmatpush.bf16.msra.mxu0 %v678
      %822 = vmatpush.bf16.msra.mxu0 %v677
      %823 = vmatpush.bf16.msra.mxu0 %v676
      %824 = vmatpush.bf16.msra.mxu0 %v675
      %825 = vmatpush.bf16.msra.mxu0 %v674
      %826 = vmatpush.bf16.msra.mxu0 %v673
      %827 = vmatpush.bf16.msra.mxu0 %v672
      %828 = vmatmul.bf16.gmra.mxu0 %v372
      %v829 = vpop.f32.mrf.mxu0
      %v830 = vadd.f32 %v817, %v829
      %v831 = vpop.f32.mrf.mxu0
      %832 = vdwg.mxu0
      %833 = vmatpush.bf16.msra.mxu0 %v687
      %834 = vmatpush.bf16.msra.mxu0 %v686
      %835 = vmatpush.bf16.msra.mxu0 %v685
      %836 = vmatpush.bf16.msra.mxu0 %v684
      %837 = vmatpush.bf16.msra.mxu0 %v683
      %838 = vmatpush.bf16.msra.mxu0 %v682
      %839 = vmatpush.bf16.msra.mxu0 %v681
      %840 = vmatpush.bf16.msra.mxu0 %v680
      %841 = vmatmul.bf16.gmra.mxu0 %v373
      %v842 = vpop.f32.mrf.mxu0
      %v843 = vadd.f32 %v830, %v842
      %v844 = vpop.f32.mrf.mxu0
      %845 = vdwg.mxu0
      %846 = vmatpush.bf16.msra.mxu0 %v695
      %847 = vmatpush.bf16.msra.mxu0 %v694
      %848 = vmatpush.bf16.msra.mxu0 %v693
      %849 = vmatpush.bf16.msra.mxu0 %v692
      %850 = vmatpush.bf16.msra.mxu0 %v691
      %851 = vmatpush.bf16.msra.mxu0 %v690
      %852 = vmatpush.bf16.msra.mxu0 %v689
      %853 = vmatpush.bf16.msra.mxu0 %v688
      %854 = vmatmul.bf16.gmra.mxu0 %v374
      %v855 = vpop.f32.mrf.mxu0
      %v856 = vadd.f32 %v843, %v855
      %v857 = vpop.f32.mrf.mxu0
      %858 = vdwg.mxu0
      %859 = vmatpush.bf16.msra.mxu0 %v703
      %860 = vmatpush.bf16.msra.mxu0 %v702
      %861 = vmatpush.bf16.msra.mxu0 %v701
      %862 = vmatpush.bf16.msra.mxu0 %v700
      %863 = vmatpush.bf16.msra.mxu0 %v699
      %864 = vmatpush.bf16.msra.mxu0 %v698
      %865 = vmatpush.bf16.msra.mxu0 %v697
      %866 = vmatpush.bf16.msra.mxu0 %v696
      %867 = vmatmul.bf16.gmra.mxu0 %v375
      %v868 = vpop.f32.mrf.mxu0
      %v869 = vadd.f32 %v856, %v868
      %v870 = vpop.f32.mrf.mxu0
      %871 = vdwg.mxu0
      %v872 = vadd.f32 %v236, %v869
      %873 = vst [vmem:[#allocation2] sm:$0x3] %v872
      %p874 = scmp.eq.s32.totalorder %s16, 3
      // Predicated region
      $region45: #{agedr_forward.5} parent=39 // pred_check
        %p875 = pneg %p874
      $region46: #{agedr_forward.5} parent=39 // pred_check_branch
        %877 = sbr.rel (%p875) target = $region48
      $region47: #{agedr_forward.5} parent=39 // pred_region
        %v878 = vld [vmem:[#allocation2] sm:$0x3]
        %v879 = vld [vmem:[%s2] sm:$0x1]
        %v881 = vperm.slane %v879, 0
        %v883 = vadd.f32 %v878, %v881
        %v884 = vmax.f32 %v883, 0.0
        %v885 = vld [vmem:[%s3] sm:$0xff]
        %v886 = vld [vmem:[%s3 + $0x8] sm:$0xff]
        %v887 = vld [vmem:[%s3 + $0x10] sm:$0xff]
        %v888 = vld [vmem:[%s3 + $0x18] sm:$0xff]
        %v889 = vld [vmem:[%s3 + $0x20] sm:$0xff]
        %v890 = vld [vmem:[%s3 + $0x28] sm:$0xff]
        %v891 = vld [vmem:[%s3 + $0x30] sm:$0xff]
        %v892 = vld [vmem:[%s3 + $0x38] sm:$0xff]
        %v893 = vld [vmem:[%s3 + $0x40] sm:$0xff]
        %v894 = vld [vmem:[%s3 + $0x48] sm:$0xff]
        %v895 = vld [vmem:[%s3 + $0x50] sm:$0xff]
        %v896 = vld [vmem:[%s3 + $0x58] sm:$0xff]
        %v897 = vld [vmem:[%s3 + $0x60] sm:$0xff]
        %v898 = vld [vmem:[%s3 + $0x68] sm:$0xff]
        %v899 = vld [vmem:[%s3 + $0x70] sm:$0xff]
        %v900 = vld [vmem:[%s3 + $0x78] sm:$0xff]
        %v901 = vld [vmem:[%s4] sm:$0x1]
        %v903 = vperm.slane %v901, 0
        %905 = vmatpush.msra.mxu0 %v900
        %906 = vmatpush.msra.mxu0 %v899
        %907 = vmatpush.msra.mxu0 %v898
        %908 = vmatpush.msra.mxu0 %v897
        %909 = vmatpush.msra.mxu0 %v896
        %910 = vmatpush.msra.mxu0 %v895
        %911 = vmatpush.msra.mxu0 %v894
        %912 = vmatpush.msra.mxu0 %v893
        %913 = vmatpush.msra.mxu0 %v892
        %914 = vmatpush.msra.mxu0 %v891
        %915 = vmatpush.msra.mxu0 %v890
        %916 = vmatpush.msra.mxu0 %v889
        %917 = vmatpush.msra.mxu0 %v888
        %918 = vmatpush.msra.mxu0 %v887
        %919 = vmatpush.msra.mxu0 %v886
        %920 = vmatpush.msra.mxu0 %v885
        %921 = vmatmul.f32.gmra.mxu0 %v884
        %v922 = vpop.f32.mrf.mxu0
        %v923 = vadd.f32 %v903, %v922
        %924 = vdwg.mxu0
        %925 = vst [vmem:[%s5] sm:$0x3] %v923
      $region48: #{agedr_forward.5} parent=39 // pred_fallthru
        _
      // Predicated region
      $region49: #{agedr_forward.5} parent=39 // pred_check
        %p926 = pneg %p144
      $region50: #{agedr_forward.5} parent=39 // pred_check_branch
        %928 = sbr.rel (%p926) target = $region52
      $region51: #{agedr_forward.5} parent=39 // pred_region
        _
      $region52: #{agedr_forward.5} parent=39 // pred_fallthru
        _
      // Predicated region
      $region53: #{agedr_forward.5} parent=39 // pred_check
        %p929 = pneg %p144
      $region54: #{agedr_forward.5} parent=39 // pred_check_branch
        %931 = sbr.rel (%p929) target = $region56
      $region55: #{agedr_forward.5} parent=39 // pred_region
        _
      $region56: #{agedr_forward.5} parent=39 // pred_fallthru
        _
    $region40: #{agedr_forward.5} parent=5 // pred_fallthru
      _
    %p932 = scmp.le.s32.totalorder 2, %s11
    // Predicated region
    $region57: #{agedr_forward.5} parent=5 // pred_check
      %p933 = pneg %p932
    $region58: #{agedr_forward.5} parent=5 // pred_check_branch
      %935 = sbr.rel (%p933) target = $region60
    $region59: #{agedr_forward.5} parent=5 // pred_region
      %s936 = ssub.s32 %s11, 2
    $region60: #{agedr_forward.5} parent=5 // pred_fallthru
      _
  $region6: #{agedr_forward.5} parent=0 // loop_footer
    %s15 = sadd.s32 1, %s11
  $region7: #{agedr_forward.5} parent=0 // loop_footer_branch
    %10 = sbr.rel target = $region3
  $region8: #{agedr_forward.5} parent=0 // loop_exit
    _

// kernel: agedr_forward.6
$region0: #{agedr_forward.6}
  #allocation0 [shape = 'u32[]', space=smem, size = 0x4, offset = 0x4, fixed_abs, tag = 'smem constant byte address 0x4 - core index']
  #allocation1 [shape = 'u32[72,128]{1,0:T(1,128)}', space=vmem, size = 0x9000, scoped, tag = 'internal scratch']
  #allocation2 [shape = 'f32[2,128]{1,0:T(2,128)}', space=vmem, size = 0x400, scoped, tag = 'scratch operand']
  %s0 = inlined_call_operand.vmem [shape: f32[2,30], index: 0, kind: input, shape index: {}]
  %s1 = inlined_call_operand.vmem [shape: f32[30,128], index: 1, kind: input, shape index: {}]
  %s2 = inlined_call_operand.vmem [shape: f32[1,128], index: 2, kind: input, shape index: {}]
  %s3 = inlined_call_operand.vmem [shape: bf16[128,8192], index: 3, kind: input, shape index: {}]
  %s4 = inlined_call_operand.vmem [shape: f32[1,8192], index: 4, kind: input, shape index: {}]
  %s5 = inlined_call_operand.vmem [shape: f32[2,8192], index: 5, kind: input, shape index: {}]
  %s6 = inlined_call_operand.hbm [shape: f32[1,1], index: 6, kind: output, shape index: {}]
  %s7 = sld [smem:[#allocation0]]
  $region84: #{agedr_forward.6} parent=0
    _
  %s9 = ssub.s32 1, %s7
  %s10 = scalar_select 0, %s9, %s7
  $region1: #{agedr_forward.6} parent=0
    #allocation3 [shape = 'u8[1048576]{0}', space=vmem, size = 0x100000, scoped, tag = 'input window, operand 3']
    #allocation4 [shape = 'u8[512]{0}', space=vmem, size = 0x400, scoped, tag = 'output window, operand 0, single buffered']
    #allocation5 [shape = 's32[2]{0}', space=sflag, size = 0x8, scoped, tag = 'scoped memory for agedr_forward.6']
    %11 = vsyncpa [#allocation5], 0
    loop: start=0, step=1, limit=6
    $region2: #{agedr_forward.6} parent=1 // loop_pre_header
      _
    $region3: #{agedr_forward.6} parent=1 // loop_header
      %s13 = sphi 0, %s17
      %p14 = scmp.ge.s32.totalorder %s13, 6
      %s21 = sphi 0, %s21
      %s23 = sphi 0, %s21
      %s24 = sphi 0, %s23
      %s38 = sphi 0, %s24
      %s42 = sphi 0, %s42
      %s44 = sphi 0, %s42
      %s45 = sphi 0, %s44
      %s59 = sphi 0, %s45
      %s63 = sphi 0, %s63
      %s65 = sphi 0, %s63
      %s66 = sphi 0, %s65
      %s80 = sphi 0, %s66
      %s86 = sphi 0, %s88
      %s89 = sphi 0, %s86
      %s90 = sphi 0, %s89
      %s106 = sphi 0, %s90
      %s112 = sphi 0, %s114
      %s115 = sphi 0, %s112
      %s116 = sphi 0, %s115
      %s132 = sphi 0, %s116
      %s138 = sphi 0, %s140
      %s141 = sphi 0, %s138
      %s142 = sphi 0, %s141
      %s158 = sphi 0, %s142
      %s162 = sphi 0, %s162
      %s164 = sphi 0, %s162
      %s165 = sphi 0, %s164
      %s179 = sphi 0, %s165
    $region4: #{agedr_forward.6} parent=1 // loop_header_branch
      %16 = sbr.rel (%p14) target = $region8
    $region5: #{agedr_forward.6} parent=1 // loop_body
      %s18 = ssub.s32 %s13, 1
      %s19 = ssub.s32 %s13, 2
      %s20 = sadd.s32 %s13, 1
      %s22 = sadd.s32 %s21, 1
      %p25 = scmp.eq.s32.totalorder %s13, 3
      %p26 = scmp.ne.s32.totalorder %s21, %s23
      %p27 = scmp.eq.s32.totalorder %s13, 0
      %p28 = por %p26, %p27
      %p29 = scmp.ne.s32.totalorder %s21, %s23
      %p30 = scmp.eq.s32.totalorder %s18, 3
      %p31 = por %p29, %p30
      %p32 = scmp.ne.s32.totalorder %s23, %s24
      %p33 = scmp.eq.s32.totalorder %s18, 0
      %p34 = por %p32, %p33
      %p35 = scmp.ne.s32.totalorder %s23, %s24
      %p36 = scmp.eq.s32.totalorder %s19, 3
      %p37 = por %p35, %p36
      %p39 = scmp.ne.s32.totalorder %s24, %s38
      %p40 = scmp.eq.s32.totalorder %s19, 0
      %p41 = por %p39, %p40
      %s43 = sadd.s32 %s42, 1
      %p46 = scmp.eq.s32.totalorder %s13, 3
      %p47 = scmp.ne.s32.totalorder %s42, %s44
      %p48 = scmp.eq.s32.totalorder %s13, 0
      %p49 = por %p47, %p48
      %p50 = scmp.ne.s32.totalorder %s42, %s44
      %p51 = scmp.eq.s32.totalorder %s18, 3
      %p52 = por %p50, %p51
      %p53 = scmp.ne.s32.totalorder %s44, %s45
      %p54 = scmp.eq.s32.totalorder %s18, 0
      %p55 = por %p53, %p54
      %p56 = scmp.ne.s32.totalorder %s44, %s45
      %p57 = scmp.eq.s32.totalorder %s19, 3
      %p58 = por %p56, %p57
      %p60 = scmp.ne.s32.totalorder %s45, %s59
      %p61 = scmp.eq.s32.totalorder %s19, 0
      %p62 = por %p60, %p61
      %s64 = sadd.s32 %s63, 1
      %p67 = scmp.eq.s32.totalorder %s13, 3
      %p68 = scmp.ne.s32.totalorder %s63, %s65
      %p69 = scmp.eq.s32.totalorder %s13, 0
      %p70 = por %p68, %p69
      %p71 = scmp.ne.s32.totalorder %s63, %s65
      %p72 = scmp.eq.s32.totalorder %s18, 3
      %p73 = por %p71, %p72
      %p74 = scmp.ne.s32.totalorder %s65, %s66
      %p75 = scmp.eq.s32.totalorder %s18, 0
      %p76 = por %p74, %p75
      %p77 = scmp.ne.s32.totalorder %s65, %s66
      %p78 = scmp.eq.s32.totalorder %s19, 3
      %p79 = por %p77, %p78
      %p81 = scmp.ne.s32.totalorder %s66, %s80
      %p82 = scmp.eq.s32.totalorder %s19, 0
      %p83 = por %p81, %p82
      %s84 = ssub.s32 %s13, %s20
      %p85 = scmp.eq.s32.totalorder %s84, 0
      %s87 = sadd.s32 %s86, 1
      %s88 = scalar_select %p85, %s86, %s87
      %p91 = pneg %p85
      %p92 = scmp.eq.s32.totalorder %s13, 3
      %p93 = por %p91, %p92
      %p94 = scmp.ne.s32.totalorder %s86, %s89
      %p95 = scmp.eq.s32.totalorder %s13, 0
      %p96 = por %p94, %p95
      %p97 = scmp.ne.s32.totalorder %s86, %s89
      %p98 = scmp.eq.s32.totalorder %s18, 3
      %p99 = por %p97, %p98
      %p100 = scmp.ne.s32.totalorder %s89, %s90
      %p101 = scmp.eq.s32.totalorder %s18, 0
      %p102 = por %p100, %p101
      %p103 = scmp.ne.s32.totalorder %s89, %s90
      %p104 = scmp.eq.s32.totalorder %s19, 3
      %p105 = por %p103, %p104
      %p107 = scmp.ne.s32.totalorder %s90, %s106
      %p108 = scmp.eq.s32.totalorder %s19, 0
      %p109 = por %p107, %p108
      %s110 = ssub.s32 %s13, %s20
      %p111 = scmp.eq.s32.totalorder %s110, 0
      %s113 = sadd.s32 %s112, 1
      %s114 = scalar_select %p111, %s112, %s113
      %p117 = pneg %p111
      %p118 = scmp.eq.s32.totalorder %s13, 3
      %p119 = por %p117, %p118
      %p120 = scmp.ne.s32.totalorder %s112, %s115
      %p121 = scmp.eq.s32.totalorder %s13, 0
      %p122 = por %p120, %p121
      %p123 = scmp.ne.s32.totalorder %s112, %s115
      %p124 = scmp.eq.s32.totalorder %s18, 3
      %p125 = por %p123, %p124
      %p126 = scmp.ne.s32.totalorder %s115, %s116
      %p127 = scmp.eq.s32.totalorder %s18, 0
      %p128 = por %p126, %p127
      %p129 = scmp.ne.s32.totalorder %s115, %s116
      %p130 = scmp.eq.s32.totalorder %s19, 3
      %p131 = por %p129, %p130
      %p133 = scmp.ne.s32.totalorder %s116, %s132
      %p134 = scmp.eq.s32.totalorder %s19, 0
      %p135 = por %p133, %p134
      %s136 = ssub.s32 %s13, %s20
      %p137 = scmp.eq.s32.totalorder %s136, 0
      %s139 = sadd.s32 %s138, 1
      %s140 = scalar_select %p137, %s138, %s139
      %p143 = pneg %p137
      %p144 = scmp.eq.s32.totalorder %s13, 3
      %p145 = por %p143, %p144
      %p146 = scmp.ne.s32.totalorder %s138, %s141
      %p147 = scmp.eq.s32.totalorder %s13, 0
      %p148 = por %p146, %p147
      %p149 = scmp.ne.s32.totalorder %s138, %s141
      %p150 = scmp.eq.s32.totalorder %s18, 3
      %p151 = por %p149, %p150
      %p152 = scmp.ne.s32.totalorder %s141, %s142
      %p153 = scmp.eq.s32.totalorder %s18, 0
      %p154 = por %p152, %p153
      %p155 = scmp.ne.s32.totalorder %s141, %s142
      %p156 = scmp.eq.s32.totalorder %s19, 3
      %p157 = por %p155, %p156
      %p159 = scmp.ne.s32.totalorder %s142, %s158
      %p160 = scmp.eq.s32.totalorder %s19, 0
      %p161 = por %p159, %p160
      %s163 = sadd.s32 %s162, 1
      %p166 = scmp.eq.s32.totalorder %s13, 3
      %p167 = scmp.ne.s32.totalorder %s162, %s164
      %p168 = scmp.eq.s32.totalorder %s13, 0
      %p169 = por %p167, %p168
      %p170 = scmp.ne.s32.totalorder %s162, %s164
      %p171 = scmp.eq.s32.totalorder %s18, 3
      %p172 = por %p170, %p171
      %p173 = scmp.ne.s32.totalorder %s164, %s165
      %p174 = scmp.eq.s32.totalorder %s18, 0
      %p175 = por %p173, %p174
      %p176 = scmp.ne.s32.totalorder %s164, %s165
      %p177 = scmp.eq.s32.totalorder %s19, 3
      %p178 = por %p176, %p177
      %p180 = scmp.ne.s32.totalorder %s165, %s179
      %p181 = scmp.eq.s32.totalorder %s19, 0
      %p182 = por %p180, %p181
      %p183 = scmp.le.s32.totalorder 1, %s13
      %p184 = scmp.lt.s32.totalorder %s13, 5
      %p185 = pnand %p183, %p184
      %p186 = pneg %p185
      // Predicated region
      $region9: #{agedr_forward.6} parent=5 // pred_check
        _
      $region10: #{agedr_forward.6} parent=5 // pred_check_branch
        %188 = sbr.rel (%p185) target = $region12
      $region11: #{agedr_forward.6} parent=5 // pred_region
        %s189 = ssub.s32 %s13, 1
        // Predicated region
        $region13: #{agedr_forward.6} parent=11 // pred_check
          %p190 = pneg %p34
        $region14: #{agedr_forward.6} parent=11 // pred_check_branch
          %192 = sbr.rel (%p190) target = $region16
        $region15: #{agedr_forward.6} parent=11 // pred_region
          _
        $region16: #{agedr_forward.6} parent=11 // pred_fallthru
          _
        // Predicated region
        $region17: #{agedr_forward.6} parent=11 // pred_check
          %p193 = pneg %p55
        $region18: #{agedr_forward.6} parent=11 // pred_check_branch
          %195 = sbr.rel (%p193) target = $region20
        $region19: #{agedr_forward.6} parent=11 // pred_region
          _
        $region20: #{agedr_forward.6} parent=11 // pred_fallthru
          _
        // Predicated region
        $region21: #{agedr_forward.6} parent=11 // pred_check
          %p196 = pneg %p76
        $region22: #{agedr_forward.6} parent=11 // pred_check_branch
          %198 = sbr.rel (%p196) target = $region24
        $region23: #{agedr_forward.6} parent=11 // pred_region
          _
        $region24: #{agedr_forward.6} parent=11 // pred_fallthru
          _
      $region12: #{agedr_forward.6} parent=5 // pred_fallthru
        _
      %p199 = scmp.lt.s32.totalorder %s13, 4
      // Predicated region
      $region25: #{agedr_forward.6} parent=5 // pred_check
        %p200 = pneg %p199
      $region26: #{agedr_forward.6} parent=5 // pred_check_branch
        %202 = sbr.rel (%p200) target = $region28
      $region27: #{agedr_forward.6} parent=5 // pred_region
        // Predicated region
        $region29: #{agedr_forward.6} parent=27 // pred_check
          %p203 = pneg %p96
        $region30: #{agedr_forward.6} parent=27 // pred_check_branch
          %205 = sbr.rel (%p203) target = $region32
        $region31: #{agedr_forward.6} parent=27 // pred_region
          %s206 = sand.u32 %s86, 1
          %s207 = sand.u32 %s86, 1
          %s208 = smul.addr %s207, 1024
          %s209 = scalar_lea.vmem [#allocation3], %s208
          %s210 = smul.u32 16, %s13
          %s211 = smul.addr %s210, 4
          %s212 = scalar_lea.vmem %s3, %s211
          // Predicated region
          $region33: #{agedr_forward.6} parent=31 // pred_check
            _
          $region34: #{agedr_forward.6} parent=31 // pred_check_branch
            %214 = sbr.rel (0) target = $region36
          $region35: #{agedr_forward.6} parent=31 // pred_region
            // Predicated region
            $region37: #{agedr_forward.6} parent=35 // pred_check
              _
            $region38: #{agedr_forward.6} parent=35 // pred_check_branch
              %216 = sbr.rel (0) target = $region40
            $region39: #{agedr_forward.6} parent=35 // pred_region
              loop: start=0, step=1, limit=1
              $region41: #{agedr_forward.6} parent=39 // loop_pre_header
                _
              $region42: #{agedr_forward.6} parent=39 // loop_header
                %s218 = sphi 0, %s222
                %p219 = scmp.ge.s32.totalorder %s218, 1
                %s223 = sphi %s212, %s212
                %s224 = sphi %s209, %s209
              $region43: #{agedr_forward.6} parent=39 // loop_header_branch
                %221 = sbr.rel (%p219) target = $region47
              $region44: #{agedr_forward.6} parent=39 // loop_body
                %v225 = vld [vmem:[%s223] sm:$0xff]
                %226 = vst [vmem:[%s224] sm:$0xff] %v225
                %v227 = vld [vmem:[%s223 + $0x8] sm:$0xff]
                %228 = vst [vmem:[%s224 + $0x8] sm:$0xff] %v227
                %v229 = vld [vmem:[%s223 + $0x10] sm:$0xff]
                %230 = vst [vmem:[%s224 + $0x10] sm:$0xff] %v229
                %v231 = vld [vmem:[%s223 + $0x18] sm:$0xff]
                %232 = vst [vmem:[%s224 + $0x18] sm:$0xff] %v231
                %v233 = vld [vmem:[%s223 + $0x20] sm:$0xff]
                %234 = vst [vmem:[%s224 + $0x20] sm:$0xff] %v233
                %v235 = vld [vmem:[%s223 + $0x28] sm:$0xff]
                %236 = vst [vmem:[%s224 + $0x28] sm:$0xff] %v235
                %v237 = vld [vmem:[%s223 + $0x30] sm:$0xff]
                %238 = vst [vmem:[%s224 + $0x30] sm:$0xff] %v237
                %v239 = vld [vmem:[%s223 + $0x38] sm:$0xff]
                %240 = vst [vmem:[%s224 + $0x38] sm:$0xff] %v239
                %v241 = vld [vmem:[%s223 + $0x100] sm:$0xff]
                %242 = vst [vmem:[%s224 + $0x40] sm:$0xff] %v241
                %v243 = vld [vmem:[%s223 + $0x108] sm:$0xff]
                %244 = vst [vmem:[%s224 + $0x48] sm:$0xff] %v243
                %v245 = vld [vmem:[%s223 + $0x110] sm:$0xff]
                %246 = vst [vmem:[%s224 + $0x50] sm:$0xff] %v245
                %v247 = vld [vmem:[%s223 + $0x118] sm:$0xff]
                %248 = vst [vmem:[%s224 + $0x58] sm:$0xff] %v247
                %v249 = vld [vmem:[%s223 + $0x120] sm:$0xff]
                %250 = vst [vmem:[%s224 + $0x60] sm:$0xff] %v249
                %v251 = vld [vmem:[%s223 + $0x128] sm:$0xff]
                %252 = vst [vmem:[%s224 + $0x68] sm:$0xff] %v251
                %v253 = vld [vmem:[%s223 + $0x130] sm:$0xff]
                %254 = vst [vmem:[%s224 + $0x70] sm:$0xff] %v253
                %v255 = vld [vmem:[%s223 + $0x138] sm:$0xff]
                %256 = vst [vmem:[%s224 + $0x78] sm:$0xff] %v255
                %v257 = vld [vmem:[%s223 + $0x200] sm:$0xff]
                %258 = vst [vmem:[%s224 + $0x80] sm:$0xff] %v257
                %v259 = vld [vmem:[%s223 + $0x208] sm:$0xff]
                %260 = vst [vmem:[%s224 + $0x88] sm:$0xff] %v259
                %v261 = vld [vmem:[%s223 + $0x210] sm:$0xff]
                %262 = vst [vmem:[%s224 + $0x90] sm:$0xff] %v261
                %v263 = vld [vmem:[%s223 + $0x218] sm:$0xff]
                %264 = vst [vmem:[%s224 + $0x98] sm:$0xff] %v263
                %v265 = vld [vmem:[%s223 + $0x220] sm:$0xff]
                %266 = vst [vmem:[%s224 + $0xa0] sm:$0xff] %v265
                %v267 = vld [vmem:[%s223 + $0x228] sm:$0xff]
                %268 = vst [vmem:[%s224 + $0xa8] sm:$0xff] %v267
                %v269 = vld [vmem:[%s223 + $0x230] sm:$0xff]
                %270 = vst [vmem:[%s224 + $0xb0] sm:$0xff] %v269
                %v271 = vld [vmem:[%s223 + $0x238] sm:$0xff]
                %272 = vst [vmem:[%s224 + $0xb8] sm:$0xff] %v271
                %v273 = vld [vmem:[%s223 + $0x300] sm:$0xff]
                %274 = vst [vmem:[%s224 + $0xc0] sm:$0xff] %v273
                %v275 = vld [vmem:[%s223 + $0x308] sm:$0xff]
                %276 = vst [vmem:[%s224 + $0xc8] sm:$0xff] %v275
                %v277 = vld [vmem:[%s223 + $0x310] sm:$0xff]
                %278 = vst [vmem:[%s224 + $0xd0] sm:$0xff] %v277
                %v279 = vld [vmem:[%s223 + $0x318] sm:$0xff]
                %280 = vst [vmem:[%s224 + $0xd8] sm:$0xff] %v279
                %v281 = vld [vmem:[%s223 + $0x320] sm:$0xff]
                %282 = vst [vmem:[%s224 + $0xe0] sm:$0xff] %v281
                %v283 = vld [vmem:[%s223 + $0x328] sm:$0xff]
                %284 = vst [vmem:[%s224 + $0xe8] sm:$0xff] %v283
                %v285 = vld [vmem:[%s223 + $0x330] sm:$0xff]
                %286 = vst [vmem:[%s224 + $0xf0] sm:$0xff] %v285
                %v287 = vld [vmem:[%s223 + $0x338] sm:$0xff]
                %288 = vst [vmem:[%s224 + $0xf8] sm:$0xff] %v287
                %v289 = vld [vmem:[%s223 + $0x400] sm:$0xff]
                %290 = vst [vmem:[%s224 + $0x100] sm:$0xff] %v289
                %v291 = vld [vmem:[%s223 + $0x408] sm:$0xff]
                %292 = vst [vmem:[%s224 + $0x108] sm:$0xff] %v291
                %v293 = vld [vmem:[%s223 + $0x410] sm:$0xff]
                %294 = vst [vmem:[%s224 + $0x110] sm:$0xff] %v293
                %v295 = vld [vmem:[%s223 + $0x418] sm:$0xff]
                %296 = vst [vmem:[%s224 + $0x118] sm:$0xff] %v295
                %v297 = vld [vmem:[%s223 + $0x420] sm:$0xff]
                %298 = vst [vmem:[%s224 + $0x120] sm:$0xff] %v297
                %v299 = vld [vmem:[%s223 + $0x428] sm:$0xff]
                %300 = vst [vmem:[%s224 + $0x128] sm:$0xff] %v299
                %v301 = vld [vmem:[%s223 + $0x430] sm:$0xff]
                %302 = vst [vmem:[%s224 + $0x130] sm:$0xff] %v301
                %v303 = vld [vmem:[%s223 + $0x438] sm:$0xff]
                %304 = vst [vmem:[%s224 + $0x138] sm:$0xff] %v303
                %v305 = vld [vmem:[%s223 + $0x500] sm:$0xff]
                %306 = vst [vmem:[%s224 + $0x140] sm:$0xff] %v305
                %v307 = vld [vmem:[%s223 + $0x508] sm:$0xff]
                %308 = vst [vmem:[%s224 + $0x148] sm:$0xff] %v307
                %v309 = vld [vmem:[%s223 + $0x510] sm:$0xff]
                %310 = vst [vmem:[%s224 + $0x150] sm:$0xff] %v309
                %v311 = vld [vmem:[%s223 + $0x518] sm:$0xff]
                %312 = vst [vmem:[%s224 + $0x158] sm:$0xff] %v311
                %v313 = vld [vmem:[%s223 + $0x520] sm:$0xff]
                %314 = vst [vmem:[%s224 + $0x160] sm:$0xff] %v313
                %v315 = vld [vmem:[%s223 + $0x528] sm:$0xff]
                %316 = vst [vmem:[%s224 + $0x168] sm:$0xff] %v315
                %v317 = vld [vmem:[%s223 + $0x530] sm:$0xff]
                %318 = vst [vmem:[%s224 + $0x170] sm:$0xff] %v317
                %v319 = vld [vmem:[%s223 + $0x538] sm:$0xff]
                %320 = vst [vmem:[%s224 + $0x178] sm:$0xff] %v319
                %v321 = vld [vmem:[%s223 + $0x600] sm:$0xff]
                %322 = vst [vmem:[%s224 + $0x180] sm:$0xff] %v321
                %v323 = vld [vmem:[%s223 + $0x608] sm:$0xff]
                %324 = vst [vmem:[%s224 + $0x188] sm:$0xff] %v323
                %v325 = vld [vmem:[%s223 + $0x610] sm:$0xff]
                %326 = vst [vmem:[%s224 + $0x190] sm:$0xff] %v325
                %v327 = vld [vmem:[%s223 + $0x618] sm:$0xff]
                %328 = vst [vmem:[%s224 + $0x198] sm:$0xff] %v327
                %v329 = vld [vmem:[%s223 + $0x620] sm:$0xff]
                %330 = vst [vmem:[%s224 + $0x1a0] sm:$0xff] %v329
                %v331 = vld [vmem:[%s223 + $0x628] sm:$0xff]
                %332 = vst [vmem:[%s224 + $0x1a8] sm:$0xff] %v331
                %v333 = vld [vmem:[%s223 + $0x630] sm:$0xff]
                %334 = vst [vmem:[%s224 + $0x1b0] sm:$0xff] %v333
                %v335 = vld [vmem:[%s223 + $0x638] sm:$0xff]
                %336 = vst [vmem:[%s224 + $0x1b8] sm:$0xff] %v335
                %v337 = vld [vmem:[%s223 + $0x700] sm:$0xff]
                %338 = vst [vmem:[%s224 + $0x1c0] sm:$0xff] %v337
                %v339 = vld [vmem:[%s223 + $0x708] sm:$0xff]
                %340 = vst [vmem:[%s224 + $0x1c8] sm:$0xff] %v339
                %v341 = vld [vmem:[%s223 + $0x710] sm:$0xff]
                %342 = vst [vmem:[%s224 + $0x1d0] sm:$0xff] %v341
                %v343 = vld [vmem:[%s223 + $0x718] sm:$0xff]
                %344 = vst [vmem:[%s224 + $0x1d8] sm:$0xff] %v343
                %v345 = vld [vmem:[%s223 + $0x720] sm:$0xff]
                %346 = vst [vmem:[%s224 + $0x1e0] sm:$0xff] %v345
                %v347 = vld [vmem:[%s223 + $0x728] sm:$0xff]
                %348 = vst [vmem:[%s224 + $0x1e8] sm:$0xff] %v347
                %v349 = vld [vmem:[%s223 + $0x730] sm:$0xff]
                %350 = vst [vmem:[%s224 + $0x1f0] sm:$0xff] %v349
                %v351 = vld [vmem:[%s223 + $0x738] sm:$0xff]
                %352 = vst [vmem:[%s224 + $0x1f8] sm:$0xff] %v351
                %v353 = vld [vmem:[%s223 + $0x800] sm:$0xff]
                %354 = vst [vmem:[%s224 + $0x200] sm:$0xff] %v353
                %v355 = vld [vmem:[%s223 + $0x808] sm:$0xff]
                %356 = vst [vmem:[%s224 + $0x208] sm:$0xff] %v355
                %v357 = vld [vmem:[%s223 + $0x810] sm:$0xff]
                %358 = vst [vmem:[%s224 + $0x210] sm:$0xff] %v357
                %v359 = vld [vmem:[%s223 + $0x818] sm:$0xff]
                %360 = vst [vmem:[%s224 + $0x218] sm:$0xff] %v359
                %v361 = vld [vmem:[%s223 + $0x820] sm:$0xff]
                %362 = vst [vmem:[%s224 + $0x220] sm:$0xff] %v361
                %v363 = vld [vmem:[%s223 + $0x828] sm:$0xff]
                %364 = vst [vmem:[%s224 + $0x228] sm:$0xff] %v363
                %v365 = vld [vmem:[%s223 + $0x830] sm:$0xff]
                %366 = vst [vmem:[%s224 + $0x230] sm:$0xff] %v365
                %v367 = vld [vmem:[%s223 + $0x838] sm:$0xff]
                %368 = vst [vmem:[%s224 + $0x238] sm:$0xff] %v367
                %v369 = vld [vmem:[%s223 + $0x900] sm:$0xff]
                %370 = vst [vmem:[%s224 + $0x240] sm:$0xff] %v369
                %v371 = vld [vmem:[%s223 + $0x908] sm:$0xff]
                %372 = vst [vmem:[%s224 + $0x248] sm:$0xff] %v371
                %v373 = vld [vmem:[%s223 + $0x910] sm:$0xff]
                %374 = vst [vmem:[%s224 + $0x250] sm:$0xff] %v373
                %v375 = vld [vmem:[%s223 + $0x918] sm:$0xff]
                %376 = vst [vmem:[%s224 + $0x258] sm:$0xff] %v375
                %v377 = vld [vmem:[%s223 + $0x920] sm:$0xff]
                %378 = vst [vmem:[%s224 + $0x260] sm:$0xff] %v377
                %v379 = vld [vmem:[%s223 + $0x928] sm:$0xff]
                %380 = vst [vmem:[%s224 + $0x268] sm:$0xff] %v379
                %v381 = vld [vmem:[%s223 + $0x930] sm:$0xff]
                %382 = vst [vmem:[%s224 + $0x270] sm:$0xff] %v381
                %v383 = vld [vmem:[%s223 + $0x938] sm:$0xff]
                %384 = vst [vmem:[%s224 + $0x278] sm:$0xff] %v383
                %v385 = vld [vmem:[%s223 + $0xa00] sm:$0xff]
                %386 = vst [vmem:[%s224 + $0x280] sm:$0xff] %v385
                %v387 = vld [vmem:[%s223 + $0xa08] sm:$0xff]
                %388 = vst [vmem:[%s224 + $0x288] sm:$0xff] %v387
                %v389 = vld [vmem:[%s223 + $0xa10] sm:$0xff]
                %390 = vst [vmem:[%s224 + $0x290] sm:$0xff] %v389
                %v391 = vld [vmem:[%s223 + $0xa18] sm:$0xff]
                %392 = vst [vmem:[%s224 + $0x298] sm:$0xff] %v391
                %v393 = vld [vmem:[%s223 + $0xa20] sm:$0xff]
                %394 = vst [vmem:[%s224 + $0x2a0] sm:$0xff] %v393
                %v395 = vld [vmem:[%s223 + $0xa28] sm:$0xff]
                %396 = vst [vmem:[%s224 + $0x2a8] sm:$0xff] %v395
                %v397 = vld [vmem:[%s223 + $0xa30] sm:$0xff]
                %398 = vst [vmem:[%s224 + $0x2b0] sm:$0xff] %v397
                %v399 = vld [vmem:[%s223 + $0xa38] sm:$0xff]
                %400 = vst [vmem:[%s224 + $0x2b8] sm:$0xff] %v399
                %v401 = vld [vmem:[%s223 + $0xb00] sm:$0xff]
                %402 = vst [vmem:[%s224 + $0x2c0] sm:$0xff] %v401
                %v403 = vld [vmem:[%s223 + $0xb08] sm:$0xff]
                %404 = vst [vmem:[%s224 + $0x2c8] sm:$0xff] %v403
                %v405 = vld [vmem:[%s223 + $0xb10] sm:$0xff]
                %406 = vst [vmem:[%s224 + $0x2d0] sm:$0xff] %v405
                %v407 = vld [vmem:[%s223 + $0xb18] sm:$0xff]
                %408 = vst [vmem:[%s224 + $0x2d8] sm:$0xff] %v407
                %v409 = vld [vmem:[%s223 + $0xb20] sm:$0xff]
                %410 = vst [vmem:[%s224 + $0x2e0] sm:$0xff] %v409
                %v411 = vld [vmem:[%s223 + $0xb28] sm:$0xff]
                %412 = vst [vmem:[%s224 + $0x2e8] sm:$0xff] %v411
                %v413 = vld [vmem:[%s223 + $0xb30] sm:$0xff]
                %414 = vst [vmem:[%s224 + $0x2f0] sm:$0xff] %v413
                %v415 = vld [vmem:[%s223 + $0xb38] sm:$0xff]
                %416 = vst [vmem:[%s224 + $0x2f8] sm:$0xff] %v415
                %v417 = vld [vmem:[%s223 + $0xc00] sm:$0xff]
                %418 = vst [vmem:[%s224 + $0x300] sm:$0xff] %v417
                %v419 = vld [vmem:[%s223 + $0xc08] sm:$0xff]
                %420 = vst [vmem:[%s224 + $0x308] sm:$0xff] %v419
                %v421 = vld [vmem:[%s223 + $0xc10] sm:$0xff]
                %422 = vst [vmem:[%s224 + $0x310] sm:$0xff] %v421
                %v423 = vld [vmem:[%s223 + $0xc18] sm:$0xff]
                %424 = vst [vmem:[%s224 + $0x318] sm:$0xff] %v423
                %v425 = vld [vmem:[%s223 + $0xc20] sm:$0xff]
                %426 = vst [vmem:[%s224 + $0x320] sm:$0xff] %v425
                %v427 = vld [vmem:[%s223 + $0xc28] sm:$0xff]
                %428 = vst [vmem:[%s224 + $0x328] sm:$0xff] %v427
                %v429 = vld [vmem:[%s223 + $0xc30] sm:$0xff]
                %430 = vst [vmem:[%s224 + $0x330] sm:$0xff] %v429
                %v431 = vld [vmem:[%s223 + $0xc38] sm:$0xff]
                %432 = vst [vmem:[%s224 + $0x338] sm:$0xff] %v431
                %v433 = vld [vmem:[%s223 + $0xd00] sm:$0xff]
                %434 = vst [vmem:[%s224 + $0x340] sm:$0xff] %v433
                %v435 = vld [vmem:[%s223 + $0xd08] sm:$0xff]
                %436 = vst [vmem:[%s224 + $0x348] sm:$0xff] %v435
                %v437 = vld [vmem:[%s223 + $0xd10] sm:$0xff]
                %438 = vst [vmem:[%s224 + $0x350] sm:$0xff] %v437
                %v439 = vld [vmem:[%s223 + $0xd18] sm:$0xff]
                %440 = vst [vmem:[%s224 + $0x358] sm:$0xff] %v439
                %v441 = vld [vmem:[%s223 + $0xd20] sm:$0xff]
                %442 = vst [vmem:[%s224 + $0x360] sm:$0xff] %v441
                %v443 = vld [vmem:[%s223 + $0xd28] sm:$0xff]
                %444 = vst [vmem:[%s224 + $0x368] sm:$0xff] %v443
                %v445 = vld [vmem:[%s223 + $0xd30] sm:$0xff]
                %446 = vst [vmem:[%s224 + $0x370] sm:$0xff] %v445
                %v447 = vld [vmem:[%s223 + $0xd38] sm:$0xff]
                %448 = vst [vmem:[%s224 + $0x378] sm:$0xff] %v447
                %v449 = vld [vmem:[%s223 + $0xe00] sm:$0xff]
                %450 = vst [vmem:[%s224 + $0x380] sm:$0xff] %v449
                %v451 = vld [vmem:[%s223 + $0xe08] sm:$0xff]
                %452 = vst [vmem:[%s224 + $0x388] sm:$0xff] %v451
                %v453 = vld [vmem:[%s223 + $0xe10] sm:$0xff]
                %454 = vst [vmem:[%s224 + $0x390] sm:$0xff] %v453
                %v455 = vld [vmem:[%s223 + $0xe18] sm:$0xff]
                %456 = vst [vmem:[%s224 + $0x398] sm:$0xff] %v455
                %v457 = vld [vmem:[%s223 + $0xe20] sm:$0xff]
                %458 = vst [vmem:[%s224 + $0x3a0] sm:$0xff] %v457
                %v459 = vld [vmem:[%s223 + $0xe28] sm:$0xff]
                %460 = vst [vmem:[%s224 + $0x3a8] sm:$0xff] %v459
                %v461 = vld [vmem:[%s223 + $0xe30] sm:$0xff]
                %462 = vst [vmem:[%s224 + $0x3b0] sm:$0xff] %v461
                %v463 = vld [vmem:[%s223 + $0xe38] sm:$0xff]
                %464 = vst [vmem:[%s224 + $0x3b8] sm:$0xff] %v463
                %v465 = vld [vmem:[%s223 + $0xf00] sm:$0xff]
                %466 = vst [vmem:[%s224 + $0x3c0] sm:$0xff] %v465
                %v467 = vld [vmem:[%s223 + $0xf08] sm:$0xff]
                %468 = vst [vmem:[%s224 + $0x3c8] sm:$0xff] %v467
                %v469 = vld [vmem:[%s223 + $0xf10] sm:$0xff]
                %470 = vst [vmem:[%s224 + $0x3d0] sm:$0xff] %v469
                %v471 = vld [vmem:[%s223 + $0xf18] sm:$0xff]
                %472 = vst [vmem:[%s224 + $0x3d8] sm:$0xff] %v471
                %v473 = vld [vmem:[%s223 + $0xf20] sm:$0xff]
                %474 = vst [vmem:[%s224 + $0x3e0] sm:$0xff] %v473
                %v475 = vld [vmem:[%s223 + $0xf28] sm:$0xff]
                %476 = vst [vmem:[%s224 + $0x3e8] sm:$0xff] %v475
                %v477 = vld [vmem:[%s223 + $0xf30] sm:$0xff]
                %478 = vst [vmem:[%s224 + $0x3f0] sm:$0xff] %v477
                %v479 = vld [vmem:[%s223 + $0xf38] sm:$0xff]
                %480 = vst [vmem:[%s224 + $0x3f8] sm:$0xff] %v479
              $region45: #{agedr_forward.6} parent=39 // loop_footer
                %s222 = sadd.s32 1, %s218
              $region46: #{agedr_forward.6} parent=39 // loop_footer_branch
                %217 = sbr.rel target = $region42
              $region47: #{agedr_forward.6} parent=39 // loop_exit
                _
            $region40: #{agedr_forward.6} parent=35 // pred_fallthru
              _
            // Predicated region
            $region48: #{agedr_forward.6} parent=35 // pred_check
              _
            $region49: #{agedr_forward.6} parent=35 // pred_check_branch
              %482 = sbr.rel target = $region51
            $region50: #{agedr_forward.6} parent=35 // pred_region
              _
            $region51: #{agedr_forward.6} parent=35 // pred_fallthru
              _
          $region36: #{agedr_forward.6} parent=31 // pred_fallthru
            _
          %483 = vnop
        $region32: #{agedr_forward.6} parent=27 // pred_fallthru
          _
        // Predicated region
        $region52: #{agedr_forward.6} parent=27 // pred_check
          %p484 = pneg %p122
        $region53: #{agedr_forward.6} parent=27 // pred_check_branch
          %486 = sbr.rel (%p484) target = $region55
        $region54: #{agedr_forward.6} parent=27 // pred_region
          %s487 = smul.u32 16, %s13
          %p488 = scmp.lt.s32.totalorder %s487, 63
          %s489 = scalar_select %p488, %s487, 63
          %s490 = scalar_lea.vmem %s4, %s489
          %s491 = smul.u32 16, %s13
        $region55: #{agedr_forward.6} parent=27 // pred_fallthru
          _
        // Predicated region
        $region56: #{agedr_forward.6} parent=27 // pred_check
          %p492 = pneg %p148
        $region57: #{agedr_forward.6} parent=27 // pred_check_branch
          %494 = sbr.rel (%p492) target = $region59
        $region58: #{agedr_forward.6} parent=27 // pred_region
          %s495 = smul.u32 16, %s13
          %p496 = scmp.lt.s32.totalorder %s495, 63
          %s497 = scalar_select %p496, %s495, 63
          %s498 = smul.addr %s497, 2
          %s499 = scalar_lea.vmem %s5, %s498
          %s500 = smul.u32 16, %s13
        $region59: #{agedr_forward.6} parent=27 // pred_fallthru
          _
      $region28: #{agedr_forward.6} parent=5 // pred_fallthru
        _
      %p501 = scmp.le.s32.totalorder 1, %s13
      %p502 = scmp.lt.s32.totalorder %s13, 5
      %p503 = pnand %p501, %p502
      %p504 = pneg %p503
      // Predicated region
      $region60: #{agedr_forward.6} parent=5 // pred_check
        _
      $region61: #{agedr_forward.6} parent=5 // pred_check_branch
        %506 = sbr.rel (%p503) target = $region63
      $region62: #{agedr_forward.6} parent=5 // pred_region
        %s507 = ssub.s32 %s13, 1
        %s508 = sand.u32 %s89, 1
        %s509 = sand.u32 %s89, 1
        %s510 = smul.addr %s509, 1024
        %s511 = scalar_lea.vmem [#allocation3], %s510
        // Predicated region
        $region64: #{agedr_forward.6} parent=62 // pred_check
          %p512 = pneg %p102
        $region65: #{agedr_forward.6} parent=62 // pred_check_branch
          %514 = sbr.rel (%p512) target = $region67
        $region66: #{agedr_forward.6} parent=62 // pred_region
          _
        $region67: #{agedr_forward.6} parent=62 // pred_fallthru
          _
        %p515 = pneg %p34
        %p516 = pneg %p31
        %p517 = pneg %p55
        %p518 = pneg %p52
        %p519 = pneg %p76
        %p520 = pneg %p73
        %s521 = sand.u32 %s89, 1
        %s522 = sand.u32 %s89, 1
        %s523 = smul.addr %s522, 1024
        %s524 = scalar_lea.vmem [#allocation3], %s523
        %p525 = pneg %p102
        %p526 = pneg %p99
        %s527 = smul.u32 16, %s18
        %p528 = scmp.lt.s32.totalorder %s527, 63
        %s529 = scalar_select %p528, %s527, 63
        %s530 = scalar_lea.vmem %s4, %s529
        %p531 = pneg %p128
        %p532 = pneg %p125
        %s533 = smul.u32 16, %s18
        %p534 = scmp.lt.s32.totalorder %s533, 63
        %s535 = scalar_select %p534, %s533, 63
        %s536 = smul.addr %s535, 2
        %s537 = scalar_lea.vmem %s5, %s536
        %p538 = pneg %p154
        %p539 = pneg %p151
        %p540 = pneg %p175
        %p541 = pneg %p172
        %s542 = smul.u32 16, %s18
        %s543 = smul.u32 16, %s18
        %p544 = scmp.lt.s32.totalorder %s543, 63
        %s545 = scalar_select %p544, %s543, 63
        %s546 = scalar_lea.vmem %s4, %s545
        %s547 = smul.u32 16, %s18
        %s548 = smul.u32 16, %s18
        %p549 = scmp.lt.s32.totalorder %s548, 63
        %s550 = scalar_select %p549, %s548, 63
        %s551 = smul.addr %s550, 2
        %s552 = scalar_lea.vmem %s5, %s551
        %s553 = smul.u32 16, %s18
        %p554 = scmp.eq.s32.totalorder %s18, 0
        // Predicated region
        $region68: #{agedr_forward.6} parent=62 // pred_check
          %p555 = pneg %p554
        $region69: #{agedr_forward.6} parent=62 // pred_check_branch
          %557 = sbr.rel (%p555) target = $region71
        $region70: #{agedr_forward.6} parent=62 // pred_region
          %v558 = vld [vmem:[%s0] sm:$0x3]
          %v559 = vld [vmem:[%s1] sm:$0xff]
          %v560 = vld [vmem:[%s1 + $0x8] sm:$0xff]
          %v561 = vld [vmem:[%s1 + $0x10] sm:$0xff]
          %v562 = vld [vmem:[%s1 + $0x18] sm:$0x3f]
          %v563 = vld [vmem:[%s2] sm:$0x1]
          %v565 = vperm.slane %v563, 0
          %vm567 = vcmask 244736
          %v569 = vsel %vm567, %v558, 0
          %vm571 = vcmask 1045504
          %v573 = vsel %vm571, %v562, 0
          %575 = vmatpush.msra.mxu0 0.0
          %576 = vmatpush.msra.mxu0 0.0
          %577 = vmatpush.msra.mxu0 0.0
          %578 = vmatpush.msra.mxu0 0.0
          %579 = vmatpush.msra.mxu0 0.0
          %580 = vmatpush.msra.mxu0 0.0
          %581 = vmatpush.msra.mxu0 0.0
          %582 = vmatpush.msra.mxu0 0.0
          %583 = vmatpush.msra.mxu0 0.0
          %584 = vmatpush.msra.mxu0 0.0
          %585 = vmatpush.msra.mxu0 0.0
          %586 = vmatpush.msra.mxu0 0.0
          %587 = vmatpush.msra.mxu0 %v573
          %588 = vmatpush.msra.mxu0 %v561
          %589 = vmatpush.msra.mxu0 %v560
          %590 = vmatpush.msra.mxu0 %v559
          %591 = vmatmul.f32.gmra.mxu0 %v569
          %v592 = vpop.f32.mrf.mxu0
          %v593 = vadd.f32 %v565, %v592
          %594 = vdwg.mxu0
          %v595 = vmax.f32 %v593, 0.0
          %596 = vst [vmem:[#allocation2] sm:$0x3] %v595
          %vm597 = vcmask 0
          %598 = vst.msk [vmem:[#allocation4] sm:$0x1] %vm597, 0.0
        $region71: #{agedr_forward.6} parent=62 // pred_fallthru
          _
        %v599 = vld [vmem:[#allocation2] sm:$0x3]
        %v600 = vpack.c.bf16 %v599, %v599
        %v601 = vld [vmem:[%s511] sm:$0xff]
        %v602 = vld [vmem:[%s511 + $0x8] sm:$0xff]
        %v603 = vld [vmem:[%s511 + $0x10] sm:$0xff]
        %v604 = vld [vmem:[%s511 + $0x18] sm:$0xff]
        %v605 = vld [vmem:[%s511 + $0x20] sm:$0xff]
        %v606 = vld [vmem:[%s511 + $0x28] sm:$0xff]
        %v607 = vld [vmem:[%s511 + $0x30] sm:$0xff]
        %v608 = vld [vmem:[%s511 + $0x38] sm:$0xff]
        %v609 = vld [vmem:[%s511 + $0x40] sm:$0xff]
        %v610 = vld [vmem:[%s511 + $0x48] sm:$0xff]
        %v611 = vld [vmem:[%s511 + $0x50] sm:$0xff]
        %v612 = vld [vmem:[%s511 + $0x58] sm:$0xff]
        %v613 = vld [vmem:[%s511 + $0x60] sm:$0xff]
        %v614 = vld [vmem:[%s511 + $0x68] sm:$0xff]
        %v615 = vld [vmem:[%s511 + $0x70] sm:$0xff]
        %v616 = vld [vmem:[%s511 + $0x78] sm:$0xff]
        %v617 = vld [vmem:[%s511 + $0x80] sm:$0xff]
        %v618 = vld [vmem:[%s511 + $0x88] sm:$0xff]
        %v619 = vld [vmem:[%s511 + $0x90] sm:$0xff]
        %v620 = vld [vmem:[%s511 + $0x98] sm:$0xff]
        %v621 = vld [vmem:[%s511 + $0xa0] sm:$0xff]
        %v622 = vld [vmem:[%s511 + $0xa8] sm:$0xff]
        %v623 = vld [vmem:[%s511 + $0xb0] sm:$0xff]
        %v624 = vld [vmem:[%s511 + $0xb8] sm:$0xff]
        %v625 = vld [vmem:[%s511 + $0xc0] sm:$0xff]
        %v626 = vld [vmem:[%s511 + $0xc8] sm:$0xff]
        %v627 = vld [vmem:[%s511 + $0xd0] sm:$0xff]
        %v628 = vld [vmem:[%s511 + $0xd8] sm:$0xff]
        %v629 = vld [vmem:[%s511 + $0xe0] sm:$0xff]
        %v630 = vld [vmem:[%s511 + $0xe8] sm:$0xff]
        %v631 = vld [vmem:[%s511 + $0xf0] sm:$0xff]
        %v632 = vld [vmem:[%s511 + $0xf8] sm:$0xff]
        %v633 = vld [vmem:[%s511 + $0x100] sm:$0xff]
        %v634 = vld [vmem:[%s511 + $0x108] sm:$0xff]
        %v635 = vld [vmem:[%s511 + $0x110] sm:$0xff]
        %v636 = vld [vmem:[%s511 + $0x118] sm:$0xff]
        %v637 = vld [vmem:[%s511 + $0x120] sm:$0xff]
        %v638 = vld [vmem:[%s511 + $0x128] sm:$0xff]
        %v639 = vld [vmem:[%s511 + $0x130] sm:$0xff]
        %v640 = vld [vmem:[%s511 + $0x138] sm:$0xff]
        %v641 = vld [vmem:[%s511 + $0x140] sm:$0xff]
        %v642 = vld [vmem:[%s511 + $0x148] sm:$0xff]
        %v643 = vld [vmem:[%s511 + $0x150] sm:$0xff]
        %v644 = vld [vmem:[%s511 + $0x158] sm:$0xff]
        %v645 = vld [vmem:[%s511 + $0x160] sm:$0xff]
        %v646 = vld [vmem:[%s511 + $0x168] sm:$0xff]
        %v647 = vld [vmem:[%s511 + $0x170] sm:$0xff]
        %v648 = vld [vmem:[%s511 + $0x178] sm:$0xff]
        %v649 = vld [vmem:[%s511 + $0x180] sm:$0xff]
        %v650 = vld [vmem:[%s511 + $0x188] sm:$0xff]
        %v651 = vld [vmem:[%s511 + $0x190] sm:$0xff]
        %v652 = vld [vmem:[%s511 + $0x198] sm:$0xff]
        %v653 = vld [vmem:[%s511 + $0x1a0] sm:$0xff]
        %v654 = vld [vmem:[%s511 + $0x1a8] sm:$0xff]
        %v655 = vld [vmem:[%s511 + $0x1b0] sm:$0xff]
        %v656 = vld [vmem:[%s511 + $0x1b8] sm:$0xff]
        %v657 = vld [vmem:[%s511 + $0x1c0] sm:$0xff]
        %v658 = vld [vmem:[%s511 + $0x1c8] sm:$0xff]
        %v659 = vld [vmem:[%s511 + $0x1d0] sm:$0xff]
        %v660 = vld [vmem:[%s511 + $0x1d8] sm:$0xff]
        %v661 = vld [vmem:[%s511 + $0x1e0] sm:$0xff]
        %v662 = vld [vmem:[%s511 + $0x1e8] sm:$0xff]
        %v663 = vld [vmem:[%s511 + $0x1f0] sm:$0xff]
        %v664 = vld [vmem:[%s511 + $0x1f8] sm:$0xff]
        %v665 = vld [vmem:[%s511 + $0x200] sm:$0xff]
        %v666 = vld [vmem:[%s511 + $0x208] sm:$0xff]
        %v667 = vld [vmem:[%s511 + $0x210] sm:$0xff]
        %v668 = vld [vmem:[%s511 + $0x218] sm:$0xff]
        %v669 = vld [vmem:[%s511 + $0x220] sm:$0xff]
        %v670 = vld [vmem:[%s511 + $0x228] sm:$0xff]
        %v671 = vld [vmem:[%s511 + $0x230] sm:$0xff]
        %v672 = vld [vmem:[%s511 + $0x238] sm:$0xff]
        %v673 = vld [vmem:[%s511 + $0x240] sm:$0xff]
        %v674 = vld [vmem:[%s511 + $0x248] sm:$0xff]
        %v675 = vld [vmem:[%s511 + $0x250] sm:$0xff]
        %v676 = vld [vmem:[%s511 + $0x258] sm:$0xff]
        %v677 = vld [vmem:[%s511 + $0x260] sm:$0xff]
        %v678 = vld [vmem:[%s511 + $0x268] sm:$0xff]
        %v679 = vld [vmem:[%s511 + $0x270] sm:$0xff]
        %v680 = vld [vmem:[%s511 + $0x278] sm:$0xff]
        %v681 = vld [vmem:[%s511 + $0x280] sm:$0xff]
        %v682 = vld [vmem:[%s511 + $0x288] sm:$0xff]
        %v683 = vld [vmem:[%s511 + $0x290] sm:$0xff]
        %v684 = vld [vmem:[%s511 + $0x298] sm:$0xff]
        %v685 = vld [vmem:[%s511 + $0x2a0] sm:$0xff]
        %v686 = vld [vmem:[%s511 + $0x2a8] sm:$0xff]
        %v687 = vld [vmem:[%s511 + $0x2b0] sm:$0xff]
        %v688 = vld [vmem:[%s511 + $0x2b8] sm:$0xff]
        %v689 = vld [vmem:[%s511 + $0x2c0] sm:$0xff]
        %v690 = vld [vmem:[%s511 + $0x2c8] sm:$0xff]
        %v691 = vld [vmem:[%s511 + $0x2d0] sm:$0xff]
        %v692 = vld [vmem:[%s511 + $0x2d8] sm:$0xff]
        %v693 = vld [vmem:[%s511 + $0x2e0] sm:$0xff]
        %v694 = vld [vmem:[%s511 + $0x2e8] sm:$0xff]
        %v695 = vld [vmem:[%s511 + $0x2f0] sm:$0xff]
        %v696 = vld [vmem:[%s511 + $0x2f8] sm:$0xff]
        %v697 = vld [vmem:[%s511 + $0x300] sm:$0xff]
        %v698 = vld [vmem:[%s511 + $0x308] sm:$0xff]
        %v699 = vld [vmem:[%s511 + $0x310] sm:$0xff]
        %v700 = vld [vmem:[%s511 + $0x318] sm:$0xff]
        %v701 = vld [vmem:[%s511 + $0x320] sm:$0xff]
        %v702 = vld [vmem:[%s511 + $0x328] sm:$0xff]
        %v703 = vld [vmem:[%s511 + $0x330] sm:$0xff]
        %v704 = vld [vmem:[%s511 + $0x338] sm:$0xff]
        %v705 = vld [vmem:[%s511 + $0x340] sm:$0xff]
        %v706 = vld [vmem:[%s511 + $0x348] sm:$0xff]
        %v707 = vld [vmem:[%s511 + $0x350] sm:$0xff]
        %v708 = vld [vmem:[%s511 + $0x358] sm:$0xff]
        %v709 = vld [vmem:[%s511 + $0x360] sm:$0xff]
        %v710 = vld [vmem:[%s511 + $0x368] sm:$0xff]
        %v711 = vld [vmem:[%s511 + $0x370] sm:$0xff]
        %v712 = vld [vmem:[%s511 + $0x378] sm:$0xff]
        %v713 = vld [vmem:[%s511 + $0x380] sm:$0xff]
        %v714 = vld [vmem:[%s511 + $0x388] sm:$0xff]
        %v715 = vld [vmem:[%s511 + $0x390] sm:$0xff]
        %v716 = vld [vmem:[%s511 + $0x398] sm:$0xff]
        %v717 = vld [vmem:[%s511 + $0x3a0] sm:$0xff]
        %v718 = vld [vmem:[%s511 + $0x3a8] sm:$0xff]
        %v719 = vld [vmem:[%s511 + $0x3b0] sm:$0xff]
        %v720 = vld [vmem:[%s511 + $0x3b8] sm:$0xff]
        %v721 = vld [vmem:[%s511 + $0x3c0] sm:$0xff]
        %v722 = vld [vmem:[%s511 + $0x3c8] sm:$0xff]
        %v723 = vld [vmem:[%s511 + $0x3d0] sm:$0xff]
        %v724 = vld [vmem:[%s511 + $0x3d8] sm:$0xff]
        %v725 = vld [vmem:[%s511 + $0x3e0] sm:$0xff]
        %v726 = vld [vmem:[%s511 + $0x3e8] sm:$0xff]
        %v727 = vld [vmem:[%s511 + $0x3f0] sm:$0xff]
        %v728 = vld [vmem:[%s511 + $0x3f8] sm:$0xff]
        %v729 = vld [vmem:[%s546] sm:$0xff]
        %v730 = vld [vmem:[%s546 + $0x8] sm:$0xff]
        %v733 = vperm.slane %v729, 0
        %v734 = vperm.slane %v729, 1
        %v735 = vperm.slane %v729, 2
        %v736 = vperm.slane %v729, 3
        %v737 = vperm.slane %v729, 4
        %v738 = vperm.slane %v729, 5
        %v739 = vperm.slane %v729, 6
        %v740 = vperm.slane %v729, 7
        %v741 = vperm.slane %v730, 0
        %v742 = vperm.slane %v730, 1
        %v743 = vperm.slane %v730, 2
        %v744 = vperm.slane %v730, 3
        %v745 = vperm.slane %v730, 4
        %v746 = vperm.slane %v730, 5
        %v747 = vperm.slane %v730, 6
        %v748 = vperm.slane %v730, 7
        %v893 = vunpack.c.l.b16 %v601
        %v894 = vunpack.c.h.b16 %v601
        %v895 = vunpack.c.l.b16 %v602
        %v896 = vunpack.c.h.b16 %v602
        %v897 = vunpack.c.l.b16 %v603
        %v898 = vunpack.c.h.b16 %v603
        %v899 = vunpack.c.l.b16 %v604
        %v900 = vunpack.c.h.b16 %v604
        %v901 = vunpack.c.l.b16 %v605
        %v902 = vunpack.c.h.b16 %v605
        %v903 = vunpack.c.l.b16 %v606
        %v904 = vunpack.c.h.b16 %v606
        %v905 = vunpack.c.l.b16 %v607
        %v906 = vunpack.c.h.b16 %v607
        %v907 = vunpack.c.l.b16 %v608
        %v908 = vunpack.c.h.b16 %v608
        %v909 = vunpack.c.l.b16 %v609
        %v910 = vunpack.c.h.b16 %v609
        %v911 = vunpack.c.l.b16 %v610
        %v912 = vunpack.c.h.b16 %v610
        %v913 = vunpack.c.l.b16 %v611
        %v914 = vunpack.c.h.b16 %v611
        %v915 = vunpack.c.l.b16 %v612
        %v916 = vunpack.c.h.b16 %v612
        %v917 = vunpack.c.l.b16 %v613
        %v918 = vunpack.c.h.b16 %v613
        %v919 = vunpack.c.l.b16 %v614
        %v920 = vunpack.c.h.b16 %v614
        %v921 = vunpack.c.l.b16 %v615
        %v922 = vunpack.c.h.b16 %v615
        %v923 = vunpack.c.l.b16 %v616
        %v924 = vunpack.c.h.b16 %v616
        %v925 = vunpack.c.l.b16 %v617
        %v926 = vunpack.c.h.b16 %v617
        %v927 = vunpack.c.l.b16 %v618
        %v928 = vunpack.c.h.b16 %v618
        %v929 = vunpack.c.l.b16 %v619
        %v930 = vunpack.c.h.b16 %v619
        %v931 = vunpack.c.l.b16 %v620
        %v932 = vunpack.c.h.b16 %v620
        %v933 = vunpack.c.l.b16 %v621
        %v934 = vunpack.c.h.b16 %v621
        %v935 = vunpack.c.l.b16 %v622
        %v936 = vunpack.c.h.b16 %v622
        %v937 = vunpack.c.l.b16 %v623
        %v938 = vunpack.c.h.b16 %v623
        %v939 = vunpack.c.l.b16 %v624
        %v940 = vunpack.c.h.b16 %v624
        %v941 = vunpack.c.l.b16 %v625
        %v942 = vunpack.c.h.b16 %v625
        %v943 = vunpack.c.l.b16 %v626
        %v944 = vunpack.c.h.b16 %v626
        %v945 = vunpack.c.l.b16 %v627
        %v946 = vunpack.c.h.b16 %v627
        %v947 = vunpack.c.l.b16 %v628
        %v948 = vunpack.c.h.b16 %v628
        %v949 = vunpack.c.l.b16 %v629
        %v950 = vunpack.c.h.b16 %v629
        %v951 = vunpack.c.l.b16 %v630
        %v952 = vunpack.c.h.b16 %v630
        %v953 = vunpack.c.l.b16 %v631
        %v954 = vunpack.c.h.b16 %v631
        %v955 = vunpack.c.l.b16 %v632
        %v956 = vunpack.c.h.b16 %v632
        %v957 = vunpack.c.l.b16 %v633
        %v958 = vunpack.c.h.b16 %v633
        %v959 = vunpack.c.l.b16 %v634
        %v960 = vunpack.c.h.b16 %v634
        %v961 = vunpack.c.l.b16 %v635
        %v962 = vunpack.c.h.b16 %v635
        %v963 = vunpack.c.l.b16 %v636
        %v964 = vunpack.c.h.b16 %v636
        %v965 = vunpack.c.l.b16 %v637
        %v966 = vunpack.c.h.b16 %v637
        %v967 = vunpack.c.l.b16 %v638
        %v968 = vunpack.c.h.b16 %v638
        %v969 = vunpack.c.l.b16 %v639
        %v970 = vunpack.c.h.b16 %v639
        %v971 = vunpack.c.l.b16 %v640
        %v972 = vunpack.c.h.b16 %v640
        %v973 = vunpack.c.l.b16 %v641
        %v974 = vunpack.c.h.b16 %v641
        %v975 = vunpack.c.l.b16 %v642
        %v976 = vunpack.c.h.b16 %v642
        %v977 = vunpack.c.l.b16 %v643
        %v978 = vunpack.c.h.b16 %v643
        %v979 = vunpack.c.l.b16 %v644
        %v980 = vunpack.c.h.b16 %v644
        %v981 = vunpack.c.l.b16 %v645
        %v982 = vunpack.c.h.b16 %v645
        %v983 = vunpack.c.l.b16 %v646
        %v984 = vunpack.c.h.b16 %v646
        %v985 = vunpack.c.l.b16 %v647
        %v986 = vunpack.c.h.b16 %v647
        %v987 = vunpack.c.l.b16 %v648
        %v988 = vunpack.c.h.b16 %v648
        %v989 = vunpack.c.l.b16 %v649
        %v990 = vunpack.c.h.b16 %v649
        %v991 = vunpack.c.l.b16 %v650
        %v992 = vunpack.c.h.b16 %v650
        %v993 = vunpack.c.l.b16 %v651
        %v994 = vunpack.c.h.b16 %v651
        %v995 = vunpack.c.l.b16 %v652
        %v996 = vunpack.c.h.b16 %v652
        %v997 = vunpack.c.l.b16 %v653
        %v998 = vunpack.c.h.b16 %v653
        %v999 = vunpack.c.l.b16 %v654
        %v1000 = vunpack.c.h.b16 %v654
        %v1001 = vunpack.c.l.b16 %v655
        %v1002 = vunpack.c.h.b16 %v655
        %v1003 = vunpack.c.l.b16 %v656
        %v1004 = vunpack.c.h.b16 %v656
        %v1005 = vunpack.c.l.b16 %v657
        %v1006 = vunpack.c.h.b16 %v657
        %v1007 = vunpack.c.l.b16 %v658
        %v1008 = vunpack.c.h.b16 %v658
        %v1009 = vunpack.c.l.b16 %v659
        %v1010 = vunpack.c.h.b16 %v659
        %v1011 = vunpack.c.l.b16 %v660
        %v1012 = vunpack.c.h.b16 %v660
        %v1013 = vunpack.c.l.b16 %v661
        %v1014 = vunpack.c.h.b16 %v661
        %v1015 = vunpack.c.l.b16 %v662
        %v1016 = vunpack.c.h.b16 %v662
        %v1017 = vunpack.c.l.b16 %v663
        %v1018 = vunpack.c.h.b16 %v663
        %v1019 = vunpack.c.l.b16 %v664
        %v1020 = vunpack.c.h.b16 %v664
        %v1021 = vunpack.c.l.b16 %v665
        %v1022 = vunpack.c.h.b16 %v665
        %v1023 = vunpack.c.l.b16 %v666
        %v1024 = vunpack.c.h.b16 %v666
        %v1025 = vunpack.c.l.b16 %v667
        %v1026 = vunpack.c.h.b16 %v667
        %v1027 = vunpack.c.l.b16 %v668
        %v1028 = vunpack.c.h.b16 %v668
        %v1029 = vunpack.c.l.b16 %v669
        %v1030 = vunpack.c.h.b16 %v669
        %v1031 = vunpack.c.l.b16 %v670
        %v1032 = vunpack.c.h.b16 %v670
        %v1033 = vunpack.c.l.b16 %v671
        %v1034 = vunpack.c.h.b16 %v671
        %v1035 = vunpack.c.l.b16 %v672
        %v1036 = vunpack.c.h.b16 %v672
        %v1037 = vunpack.c.l.b16 %v673
        %v1038 = vunpack.c.h.b16 %v673
        %v1039 = vunpack.c.l.b16 %v674
        %v1040 = vunpack.c.h.b16 %v674
        %v1041 = vunpack.c.l.b16 %v675
        %v1042 = vunpack.c.h.b16 %v675
        %v1043 = vunpack.c.l.b16 %v676
        %v1044 = vunpack.c.h.b16 %v676
        %v1045 = vunpack.c.l.b16 %v677
        %v1046 = vunpack.c.h.b16 %v677
        %v1047 = vunpack.c.l.b16 %v678
        %v1048 = vunpack.c.h.b16 %v678
        %v1049 = vunpack.c.l.b16 %v679
        %v1050 = vunpack.c.h.b16 %v679
        %v1051 = vunpack.c.l.b16 %v680
        %v1052 = vunpack.c.h.b16 %v680
        %v1053 = vunpack.c.l.b16 %v681
        %v1054 = vunpack.c.h.b16 %v681
        %v1055 = vunpack.c.l.b16 %v682
        %v1056 = vunpack.c.h.b16 %v682
        %v1057 = vunpack.c.l.b16 %v683
        %v1058 = vunpack.c.h.b16 %v683
        %v1059 = vunpack.c.l.b16 %v684
        %v1060 = vunpack.c.h.b16 %v684
        %v1061 = vunpack.c.l.b16 %v685
        %v1062 = vunpack.c.h.b16 %v685
        %v1063 = vunpack.c.l.b16 %v686
        %v1064 = vunpack.c.h.b16 %v686
        %v1065 = vunpack.c.l.b16 %v687
        %v1066 = vunpack.c.h.b16 %v687
        %v1067 = vunpack.c.l.b16 %v688
        %v1068 = vunpack.c.h.b16 %v688
        %v1069 = vunpack.c.l.b16 %v689
        %v1070 = vunpack.c.h.b16 %v689
        %v1071 = vunpack.c.l.b16 %v690
        %v1072 = vunpack.c.h.b16 %v690
        %v1073 = vunpack.c.l.b16 %v691
        %v1074 = vunpack.c.h.b16 %v691
        %v1075 = vunpack.c.l.b16 %v692
        %v1076 = vunpack.c.h.b16 %v692
        %v1077 = vunpack.c.l.b16 %v693
        %v1078 = vunpack.c.h.b16 %v693
        %v1079 = vunpack.c.l.b16 %v694
        %v1080 = vunpack.c.h.b16 %v694
        %v1081 = vunpack.c.l.b16 %v695
        %v1082 = vunpack.c.h.b16 %v695
        %v1083 = vunpack.c.l.b16 %v696
        %v1084 = vunpack.c.h.b16 %v696
        %v1085 = vunpack.c.l.b16 %v697
        %v1086 = vunpack.c.h.b16 %v697
        %v1087 = vunpack.c.l.b16 %v698
        %v1088 = vunpack.c.h.b16 %v698
        %v1089 = vunpack.c.l.b16 %v699
        %v1090 = vunpack.c.h.b16 %v699
        %v1091 = vunpack.c.l.b16 %v700
        %v1092 = vunpack.c.h.b16 %v700
        %v1093 = vunpack.c.l.b16 %v701
        %v1094 = vunpack.c.h.b16 %v701
        %v1095 = vunpack.c.l.b16 %v702
        %v1096 = vunpack.c.h.b16 %v702
        %v1097 = vunpack.c.l.b16 %v703
        %v1098 = vunpack.c.h.b16 %v703
        %v1099 = vunpack.c.l.b16 %v704
        %v1100 = vunpack.c.h.b16 %v704
        %v1101 = vunpack.c.l.b16 %v705
        %v1102 = vunpack.c.h.b16 %v705
        %v1103 = vunpack.c.l.b16 %v706
        %v1104 = vunpack.c.h.b16 %v706
        %v1105 = vunpack.c.l.b16 %v707
        %v1106 = vunpack.c.h.b16 %v707
        %v1107 = vunpack.c.l.b16 %v708
        %v1108 = vunpack.c.h.b16 %v708
        %v1109 = vunpack.c.l.b16 %v709
        %v1110 = vunpack.c.h.b16 %v709
        %v1111 = vunpack.c.l.b16 %v710
        %v1112 = vunpack.c.h.b16 %v710
        %v1113 = vunpack.c.l.b16 %v711
        %v1114 = vunpack.c.h.b16 %v711
        %v1115 = vunpack.c.l.b16 %v712
        %v1116 = vunpack.c.h.b16 %v712
        %v1117 = vunpack.c.l.b16 %v713
        %v1118 = vunpack.c.h.b16 %v713
        %v1119 = vunpack.c.l.b16 %v714
        %v1120 = vunpack.c.h.b16 %v714
        %v1121 = vunpack.c.l.b16 %v715
        %v1122 = vunpack.c.h.b16 %v715
        %v1123 = vunpack.c.l.b16 %v716
        %v1124 = vunpack.c.h.b16 %v716
        %v1125 = vunpack.c.l.b16 %v717
        %v1126 = vunpack.c.h.b16 %v717
        %v1127 = vunpack.c.l.b16 %v718
        %v1128 = vunpack.c.h.b16 %v718
        %v1129 = vunpack.c.l.b16 %v719
        %v1130 = vunpack.c.h.b16 %v719
        %v1131 = vunpack.c.l.b16 %v720
        %v1132 = vunpack.c.h.b16 %v720
        %v1133 = vunpack.c.l.b16 %v721
        %v1134 = vunpack.c.h.b16 %v721
        %v1135 = vunpack.c.l.b16 %v722
        %v1136 = vunpack.c.h.b16 %v722
        %v1137 = vunpack.c.l.b16 %v723
        %v1138 = vunpack.c.h.b16 %v723
        %v1139 = vunpack.c.l.b16 %v724
        %v1140 = vunpack.c.h.b16 %v724
        %v1141 = vunpack.c.l.b16 %v725
        %v1142 = vunpack.c.h.b16 %v725
        %v1143 = vunpack.c.l.b16 %v726
        %v1144 = vunpack.c.h.b16 %v726
        %v1145 = vunpack.c.l.b16 %v727
        %v1146 = vunpack.c.h.b16 %v727
        %v1147 = vunpack.c.l.b16 %v728
        %v1148 = vunpack.c.h.b16 %v728
        %v1149 = vpack.c.b16 %v909, %v893
        %v1150 = vpack.c.b16 %v910, %v894
        %v1151 = vpack.c.b16 %v911, %v895
        %v1152 = vpack.c.b16 %v912, %v896
        %v1153 = vpack.c.b16 %v913, %v897
        %v1154 = vpack.c.b16 %v914, %v898
        %v1155 = vpack.c.b16 %v915, %v899
        %v1156 = vpack.c.b16 %v916, %v900
        %v1157 = vpack.c.b16 %v917, %v901
        %v1158 = vpack.c.b16 %v918, %v902
        %v1159 = vpack.c.b16 %v919, %v903
        %v1160 = vpack.c.b16 %v920, %v904
        %v1161 = vpack.c.b16 %v921, %v905
        %v1162 = vpack.c.b16 %v922, %v906
        %v1163 = vpack.c.b16 %v923, %v907
        %v1164 = vpack.c.b16 %v924, %v908
        %v1165 = vpack.c.b16 %v941, %v925
        %v1166 = vpack.c.b16 %v942, %v926
        %v1167 = vpack.c.b16 %v943, %v927
        %v1168 = vpack.c.b16 %v944, %v928
        %v1169 = vpack.c.b16 %v945, %v929
        %v1170 = vpack.c.b16 %v946, %v930
        %v1171 = vpack.c.b16 %v947, %v931
        %v1172 = vpack.c.b16 %v948, %v932
        %v1173 = vpack.c.b16 %v949, %v933
        %v1174 = vpack.c.b16 %v950, %v934
        %v1175 = vpack.c.b16 %v951, %v935
        %v1176 = vpack.c.b16 %v952, %v936
        %v1177 = vpack.c.b16 %v953, %v937
        %v1178 = vpack.c.b16 %v954, %v938
        %v1179 = vpack.c.b16 %v955, %v939
        %v1180 = vpack.c.b16 %v956, %v940
        %v1181 = vpack.c.b16 %v973, %v957
        %v1182 = vpack.c.b16 %v974, %v958
        %v1183 = vpack.c.b16 %v975, %v959
        %v1184 = vpack.c.b16 %v976, %v960
        %v1185 = vpack.c.b16 %v977, %v961
        %v1186 = vpack.c.b16 %v978, %v962
        %v1187 = vpack.c.b16 %v979, %v963
        %v1188 = vpack.c.b16 %v980, %v964
        %v1189 = vpack.c.b16 %v981, %v965
        %v1190 = vpack.c.b16 %v982, %v966
        %v1191 = vpack.c.b16 %v983, %v967
        %v1192 = vpack.c.b16 %v984, %v968
        %v1193 = vpack.c.b16 %v985, %v969
        %v1194 = vpack.c.b16 %v986, %v970
        %v1195 = vpack.c.b16 %v987, %v971
        %v1196 = vpack.c.b16 %v988, %v972
        %v1197 = vpack.c.b16 %v1005, %v989
        %v1198 = vpack.c.b16 %v1006, %v990
        %v1199 = vpack.c.b16 %v1007, %v991
        %v1200 = vpack.c.b16 %v1008, %v992
        %v1201 = vpack.c.b16 %v1009, %v993
        %v1202 = vpack.c.b16 %v1010, %v994
        %v1203 = vpack.c.b16 %v1011, %v995
        %v1204 = vpack.c.b16 %v1012, %v996
        %v1205 = vpack.c.b16 %v1013, %v997
        %v1206 = vpack.c.b16 %v1014, %v998
        %v1207 = vpack.c.b16 %v1015, %v999
        %v1208 = vpack.c.b16 %v1016, %v1000
        %v1209 = vpack.c.b16 %v1017, %v1001
        %v1210 = vpack.c.b16 %v1018, %v1002
        %v1211 = vpack.c.b16 %v1019, %v1003
        %v1212 = vpack.c.b16 %v1020, %v1004
        %v1213 = vpack.c.b16 %v1037, %v1021
        %v1214 = vpack.c.b16 %v1038, %v1022
        %v1215 = vpack.c.b16 %v1039, %v1023
        %v1216 = vpack.c.b16 %v1040, %v1024
        %v1217 = vpack.c.b16 %v1041, %v1025
        %v1218 = vpack.c.b16 %v1042, %v1026
        %v1219 = vpack.c.b16 %v1043, %v1027
        %v1220 = vpack.c.b16 %v1044, %v1028
        %v1221 = vpack.c.b16 %v1045, %v1029
        %v1222 = vpack.c.b16 %v1046, %v1030
        %v1223 = vpack.c.b16 %v1047, %v1031
        %v1224 = vpack.c.b16 %v1048, %v1032
        %v1225 = vpack.c.b16 %v1049, %v1033
        %v1226 = vpack.c.b16 %v1050, %v1034
        %v1227 = vpack.c.b16 %v1051, %v1035
        %v1228 = vpack.c.b16 %v1052, %v1036
        %v1229 = vpack.c.b16 %v1069, %v1053
        %v1230 = vpack.c.b16 %v1070, %v1054
        %v1231 = vpack.c.b16 %v1071, %v1055
        %v1232 = vpack.c.b16 %v1072, %v1056
        %v1233 = vpack.c.b16 %v1073, %v1057
        %v1234 = vpack.c.b16 %v1074, %v1058
        %v1235 = vpack.c.b16 %v1075, %v1059
        %v1236 = vpack.c.b16 %v1076, %v1060
        %v1237 = vpack.c.b16 %v1077, %v1061
        %v1238 = vpack.c.b16 %v1078, %v1062
        %v1239 = vpack.c.b16 %v1079, %v1063
        %v1240 = vpack.c.b16 %v1080, %v1064
        %v1241 = vpack.c.b16 %v1081, %v1065
        %v1242 = vpack.c.b16 %v1082, %v1066
        %v1243 = vpack.c.b16 %v1083, %v1067
        %v1244 = vpack.c.b16 %v1084, %v1068
        %v1245 = vpack.c.b16 %v1101, %v1085
        %v1246 = vpack.c.b16 %v1102, %v1086
        %v1247 = vpack.c.b16 %v1103, %v1087
        %v1248 = vpack.c.b16 %v1104, %v1088
        %v1249 = vpack.c.b16 %v1105, %v1089
        %v1250 = vpack.c.b16 %v1106, %v1090
        %v1251 = vpack.c.b16 %v1107, %v1091
        %v1252 = vpack.c.b16 %v1108, %v1092
        %v1253 = vpack.c.b16 %v1109, %v1093
        %v1254 = vpack.c.b16 %v1110, %v1094
        %v1255 = vpack.c.b16 %v1111, %v1095
        %v1256 = vpack.c.b16 %v1112, %v1096
        %v1257 = vpack.c.b16 %v1113, %v1097
        %v1258 = vpack.c.b16 %v1114, %v1098
        %v1259 = vpack.c.b16 %v1115, %v1099
        %v1260 = vpack.c.b16 %v1116, %v1100
        %v1261 = vpack.c.b16 %v1133, %v1117
        %v1262 = vpack.c.b16 %v1134, %v1118
        %v1263 = vpack.c.b16 %v1135, %v1119
        %v1264 = vpack.c.b16 %v1136, %v1120
        %v1265 = vpack.c.b16 %v1137, %v1121
        %v1266 = vpack.c.b16 %v1138, %v1122
        %v1267 = vpack.c.b16 %v1139, %v1123
        %v1268 = vpack.c.b16 %v1140, %v1124
        %v1269 = vpack.c.b16 %v1141, %v1125
        %v1270 = vpack.c.b16 %v1142, %v1126
        %v1271 = vpack.c.b16 %v1143, %v1127
        %v1272 = vpack.c.b16 %v1144, %v1128
        %v1273 = vpack.c.b16 %v1145, %v1129
        %v1274 = vpack.c.b16 %v1146, %v1130
        %v1275 = vpack.c.b16 %v1147, %v1131
        %v1276 = vpack.c.b16 %v1148, %v1132
        %1405 = vmatpush.bf16.msra.mxu0 %v1261
        %1406 = vmatpush.bf16.msra.mxu0 %v1245
        %1407 = vmatpush.bf16.msra.mxu0 %v1229
        %1408 = vmatpush.bf16.msra.mxu0 %v1213
        %1409 = vmatpush.bf16.msra.mxu0 %v1197
        %1410 = vmatpush.bf16.msra.mxu0 %v1181
        %1411 = vmatpush.bf16.msra.mxu0 %v1165
        %1412 = vmatpush.bf16.msra.mxu0 %v1149
        %1413 = vmatmul.bf16.gmra.mxu0 %v600
        %v1414 = vpop.f32.mrf.mxu0
        %v1415 = vadd.f32 %v733, %v1414
        %v1416 = vpop.f32.mrf.mxu0
        %1417 = vdwg.mxu0
        %1418 = vmatpush.bf16.msra.mxu0 %v1262
        %1419 = vmatpush.bf16.msra.mxu0 %v1246
        %1420 = vmatpush.bf16.msra.mxu0 %v1230
        %1421 = vmatpush.bf16.msra.mxu0 %v1214
        %1422 = vmatpush.bf16.msra.mxu0 %v1198
        %1423 = vmatpush.bf16.msra.mxu0 %v1182
        %1424 = vmatpush.bf16.msra.mxu0 %v1166
        %1425 = vmatpush.bf16.msra.mxu0 %v1150
        %1426 = vmatmul.bf16.gmra.mxu0 %v600
        %v1427 = vpop.f32.mrf.mxu0
        %v1428 = vadd.f32 %v734, %v1427
        %v1429 = vpop.f32.mrf.mxu0
        %1430 = vdwg.mxu0
        %1431 = vmatpush.bf16.msra.mxu0 %v1263
        %1432 = vmatpush.bf16.msra.mxu0 %v1247
        %1433 = vmatpush.bf16.msra.mxu0 %v1231
        %1434 = vmatpush.bf16.msra.mxu0 %v1215
        %1435 = vmatpush.bf16.msra.mxu0 %v1199
        %1436 = vmatpush.bf16.msra.mxu0 %v1183
        %1437 = vmatpush.bf16.msra.mxu0 %v1167
        %1438 = vmatpush.bf16.msra.mxu0 %v1151
        %1439 = vmatmul.bf16.gmra.mxu0 %v600
        %v1440 = vpop.f32.mrf.mxu0
        %v1441 = vadd.f32 %v735, %v1440
        %v1442 = vpop.f32.mrf.mxu0
        %1443 = vdwg.mxu0
        %1444 = vmatpush.bf16.msra.mxu0 %v1264
        %1445 = vmatpush.bf16.msra.mxu0 %v1248
        %1446 = vmatpush.bf16.msra.mxu0 %v1232
        %1447 = vmatpush.bf16.msra.mxu0 %v1216
        %1448 = vmatpush.bf16.msra.mxu0 %v1200
        %1449 = vmatpush.bf16.msra.mxu0 %v1184
        %1450 = vmatpush.bf16.msra.mxu0 %v1168
        %1451 = vmatpush.bf16.msra.mxu0 %v1152
        %1452 = vmatmul.bf16.gmra.mxu0 %v600
        %v1453 = vpop.f32.mrf.mxu0
        %v1454 = vadd.f32 %v736, %v1453
        %v1455 = vpop.f32.mrf.mxu0
        %1456 = vdwg.mxu0
        %1457 = vmatpush.bf16.msra.mxu0 %v1265
        %1458 = vmatpush.bf16.msra.mxu0 %v1249
        %1459 = vmatpush.bf16.msra.mxu0 %v1233
        %1460 = vmatpush.bf16.msra.mxu0 %v1217
        %1461 = vmatpush.bf16.msra.mxu0 %v1201
        %1462 = vmatpush.bf16.msra.mxu0 %v1185
        %1463 = vmatpush.bf16.msra.mxu0 %v1169
        %1464 = vmatpush.bf16.msra.mxu0 %v1153
        %1465 = vmatmul.bf16.gmra.mxu0 %v600
        %v1466 = vpop.f32.mrf.mxu0
        %v1467 = vadd.f32 %v737, %v1466
        %v1468 = vpop.f32.mrf.mxu0
        %1469 = vdwg.mxu0
        %1470 = vmatpush.bf16.msra.mxu0 %v1266
        %1471 = vmatpush.bf16.msra.mxu0 %v1250
        %1472 = vmatpush.bf16.msra.mxu0 %v1234
        %1473 = vmatpush.bf16.msra.mxu0 %v1218
        %1474 = vmatpush.bf16.msra.mxu0 %v1202
        %1475 = vmatpush.bf16.msra.mxu0 %v1186
        %1476 = vmatpush.bf16.msra.mxu0 %v1170
        %1477 = vmatpush.bf16.msra.mxu0 %v1154
        %1478 = vmatmul.bf16.gmra.mxu0 %v600
        %v1479 = vpop.f32.mrf.mxu0
        %v1480 = vadd.f32 %v738, %v1479
        %v1481 = vpop.f32.mrf.mxu0
        %1482 = vdwg.mxu0
        %1483 = vmatpush.bf16.msra.mxu0 %v1267
        %1484 = vmatpush.bf16.msra.mxu0 %v1251
        %1485 = vmatpush.bf16.msra.mxu0 %v1235
        %1486 = vmatpush.bf16.msra.mxu0 %v1219
        %1487 = vmatpush.bf16.msra.mxu0 %v1203
        %1488 = vmatpush.bf16.msra.mxu0 %v1187
        %1489 = vmatpush.bf16.msra.mxu0 %v1171
        %1490 = vmatpush.bf16.msra.mxu0 %v1155
        %1491 = vmatmul.bf16.gmra.mxu0 %v600
        %v1492 = vpop.f32.mrf.mxu0
        %v1493 = vadd.f32 %v739, %v1492
        %v1494 = vpop.f32.mrf.mxu0
        %1495 = vdwg.mxu0
        %1496 = vmatpush.bf16.msra.mxu0 %v1268
        %1497 = vmatpush.bf16.msra.mxu0 %v1252
        %1498 = vmatpush.bf16.msra.mxu0 %v1236
        %1499 = vmatpush.bf16.msra.mxu0 %v1220
        %1500 = vmatpush.bf16.msra.mxu0 %v1204
        %1501 = vmatpush.bf16.msra.mxu0 %v1188
        %1502 = vmatpush.bf16.msra.mxu0 %v1172
        %1503 = vmatpush.bf16.msra.mxu0 %v1156
        %1504 = vmatmul.bf16.gmra.mxu0 %v600
        %v1505 = vpop.f32.mrf.mxu0
        %v1506 = vadd.f32 %v740, %v1505
        %v1507 = vpop.f32.mrf.mxu0
        %1508 = vdwg.mxu0
        %1509 = vmatpush.bf16.msra.mxu0 %v1269
        %1510 = vmatpush.bf16.msra.mxu0 %v1253
        %1511 = vmatpush.bf16.msra.mxu0 %v1237
        %1512 = vmatpush.bf16.msra.mxu0 %v1221
        %1513 = vmatpush.bf16.msra.mxu0 %v1205
        %1514 = vmatpush.bf16.msra.mxu0 %v1189
        %1515 = vmatpush.bf16.msra.mxu0 %v1173
        %1516 = vmatpush.bf16.msra.mxu0 %v1157
        %1517 = vmatmul.bf16.gmra.mxu0 %v600
        %v1518 = vpop.f32.mrf.mxu0
        %v1519 = vadd.f32 %v741, %v1518
        %v1520 = vpop.f32.mrf.mxu0
        %1521 = vdwg.mxu0
        %1522 = vmatpush.bf16.msra.mxu0 %v1270
        %1523 = vmatpush.bf16.msra.mxu0 %v1254
        %1524 = vmatpush.bf16.msra.mxu0 %v1238
        %1525 = vmatpush.bf16.msra.mxu0 %v1222
        %1526 = vmatpush.bf16.msra.mxu0 %v1206
        %1527 = vmatpush.bf16.msra.mxu0 %v1190
        %1528 = vmatpush.bf16.msra.mxu0 %v1174
        %1529 = vmatpush.bf16.msra.mxu0 %v1158
        %1530 = vmatmul.bf16.gmra.mxu0 %v600
        %v1531 = vpop.f32.mrf.mxu0
        %v1532 = vadd.f32 %v742, %v1531
        %v1533 = vpop.f32.mrf.mxu0
        %1534 = vdwg.mxu0
        %1535 = vmatpush.bf16.msra.mxu0 %v1271
        %1536 = vmatpush.bf16.msra.mxu0 %v1255
        %1537 = vmatpush.bf16.msra.mxu0 %v1239
        %1538 = vmatpush.bf16.msra.mxu0 %v1223
        %1539 = vmatpush.bf16.msra.mxu0 %v1207
        %1540 = vmatpush.bf16.msra.mxu0 %v1191
        %1541 = vmatpush.bf16.msra.mxu0 %v1175
        %1542 = vmatpush.bf16.msra.mxu0 %v1159
        %1543 = vmatmul.bf16.gmra.mxu0 %v600
        %v1544 = vpop.f32.mrf.mxu0
        %v1545 = vadd.f32 %v743, %v1544
        %v1546 = vpop.f32.mrf.mxu0
        %1547 = vdwg.mxu0
        %1548 = vmatpush.bf16.msra.mxu0 %v1272
        %1549 = vmatpush.bf16.msra.mxu0 %v1256
        %1550 = vmatpush.bf16.msra.mxu0 %v1240
        %1551 = vmatpush.bf16.msra.mxu0 %v1224
        %1552 = vmatpush.bf16.msra.mxu0 %v1208
        %1553 = vmatpush.bf16.msra.mxu0 %v1192
        %1554 = vmatpush.bf16.msra.mxu0 %v1176
        %1555 = vmatpush.bf16.msra.mxu0 %v1160
        %1556 = vmatmul.bf16.gmra.mxu0 %v600
        %v1557 = vpop.f32.mrf.mxu0
        %v1558 = vadd.f32 %v744, %v1557
        %v1559 = vpop.f32.mrf.mxu0
        %1560 = vdwg.mxu0
        %1561 = vmatpush.bf16.msra.mxu0 %v1273
        %1562 = vmatpush.bf16.msra.mxu0 %v1257
        %1563 = vmatpush.bf16.msra.mxu0 %v1241
        %1564 = vmatpush.bf16.msra.mxu0 %v1225
        %1565 = vmatpush.bf16.msra.mxu0 %v1209
        %1566 = vmatpush.bf16.msra.mxu0 %v1193
        %1567 = vmatpush.bf16.msra.mxu0 %v1177
        %1568 = vmatpush.bf16.msra.mxu0 %v1161
        %1569 = vmatmul.bf16.gmra.mxu0 %v600
        %v1570 = vpop.f32.mrf.mxu0
        %v1571 = vadd.f32 %v745, %v1570
        %v1572 = vpop.f32.mrf.mxu0
        %1573 = vdwg.mxu0
        %1574 = vmatpush.bf16.msra.mxu0 %v1274
        %1575 = vmatpush.bf16.msra.mxu0 %v1258
        %1576 = vmatpush.bf16.msra.mxu0 %v1242
        %1577 = vmatpush.bf16.msra.mxu0 %v1226
        %1578 = vmatpush.bf16.msra.mxu0 %v1210
        %1579 = vmatpush.bf16.msra.mxu0 %v1194
        %1580 = vmatpush.bf16.msra.mxu0 %v1178
        %1581 = vmatpush.bf16.msra.mxu0 %v1162
        %1582 = vmatmul.bf16.gmra.mxu0 %v600
        %v1583 = vpop.f32.mrf.mxu0
        %v1584 = vadd.f32 %v746, %v1583
        %v1585 = vpop.f32.mrf.mxu0
        %1586 = vdwg.mxu0
        %1587 = vmatpush.bf16.msra.mxu0 %v1275
        %1588 = vmatpush.bf16.msra.mxu0 %v1259
        %1589 = vmatpush.bf16.msra.mxu0 %v1243
        %1590 = vmatpush.bf16.msra.mxu0 %v1227
        %1591 = vmatpush.bf16.msra.mxu0 %v1211
        %1592 = vmatpush.bf16.msra.mxu0 %v1195
        %1593 = vmatpush.bf16.msra.mxu0 %v1179
        %1594 = vmatpush.bf16.msra.mxu0 %v1163
        %1595 = vmatmul.bf16.gmra.mxu0 %v600
        %v1596 = vpop.f32.mrf.mxu0
        %v1597 = vadd.f32 %v747, %v1596
        %v1598 = vpop.f32.mrf.mxu0
        %1599 = vdwg.mxu0
        %1600 = vmatpush.bf16.msra.mxu0 %v1276
        %1601 = vmatpush.bf16.msra.mxu0 %v1260
        %1602 = vmatpush.bf16.msra.mxu0 %v1244
        %1603 = vmatpush.bf16.msra.mxu0 %v1228
        %1604 = vmatpush.bf16.msra.mxu0 %v1212
        %1605 = vmatpush.bf16.msra.mxu0 %v1196
        %1606 = vmatpush.bf16.msra.mxu0 %v1180
        %1607 = vmatpush.bf16.msra.mxu0 %v1164
        %1608 = vmatmul.bf16.gmra.mxu0 %v600
        %v1609 = vpop.f32.mrf.mxu0
        %v1610 = vadd.f32 %v748, %v1609
        %v1611 = vpop.f32.mrf.mxu0
        %1612 = vdwg.mxu0
        %v1613 = vxor.u32 %v1415, 2147483648
        %v1614 = vxor.u32 %v1428, 2147483648
        %v1615 = vxor.u32 %v1441, 2147483648
        %v1616 = vxor.u32 %v1454, 2147483648
        %v1617 = vxor.u32 %v1467, 2147483648
        %v1618 = vxor.u32 %v1480, 2147483648
        %v1619 = vxor.u32 %v1493, 2147483648
        %v1620 = vxor.u32 %v1506, 2147483648
        %v1621 = vxor.u32 %v1519, 2147483648
        %v1622 = vxor.u32 %v1532, 2147483648
        %v1623 = vxor.u32 %v1545, 2147483648
        %v1624 = vxor.u32 %v1558, 2147483648
        %v1625 = vxor.u32 %v1571, 2147483648
        %v1626 = vxor.u32 %v1584, 2147483648
        %v1627 = vxor.u32 %v1597, 2147483648
        %v1628 = vxor.u32 %v1610, 2147483648
        %v1629 = vmul.f32 %v1613, 1.442695
        %v1630 = vpow.pop %v1629
        %v1631 = vmul.f32 %v1614, 1.442695
        %v1632 = vpow.pop %v1631
        %v1633 = vmul.f32 %v1615, 1.442695
        %v1634 = vpow.pop %v1633
        %v1635 = vmul.f32 %v1616, 1.442695
        %v1636 = vpow.pop %v1635
        %v1637 = vmul.f32 %v1617, 1.442695
        %v1638 = vpow.pop %v1637
        %v1639 = vmul.f32 %v1618, 1.442695
        %v1640 = vpow.pop %v1639
        %v1641 = vmul.f32 %v1619, 1.442695
        %v1642 = vpow.pop %v1641
        %v1643 = vmul.f32 %v1620, 1.442695
        %v1644 = vpow.pop %v1643
        %v1645 = vmul.f32 %v1621, 1.442695
        %v1646 = vpow.pop %v1645
        %v1647 = vmul.f32 %v1622, 1.442695
        %v1648 = vpow.pop %v1647
        %v1649 = vmul.f32 %v1623, 1.442695
        %v1650 = vpow.pop %v1649
        %v1651 = vmul.f32 %v1624, 1.442695
        %v1652 = vpow.pop %v1651
        %v1653 = vmul.f32 %v1625, 1.442695
        %v1654 = vpow.pop %v1653
        %v1655 = vmul.f32 %v1626, 1.442695
        %v1656 = vpow.pop %v1655
        %v1657 = vmul.f32 %v1627, 1.442695
        %v1658 = vpow.pop %v1657
        %v1659 = vmul.f32 %v1628, 1.442695
        %v1660 = vpow.pop %v1659
        %v1661 = vadd.f32 %v1630, 1.0
        %v1662 = vadd.f32 %v1632, 1.0
        %v1663 = vadd.f32 %v1634, 1.0
        %v1664 = vadd.f32 %v1636, 1.0
        %v1665 = vadd.f32 %v1638, 1.0
        %v1666 = vadd.f32 %v1640, 1.0
        %v1667 = vadd.f32 %v1642, 1.0
        %v1668 = vadd.f32 %v1644, 1.0
        %v1669 = vadd.f32 %v1646, 1.0
        %v1670 = vadd.f32 %v1648, 1.0
        %v1671 = vadd.f32 %v1650, 1.0
        %v1672 = vadd.f32 %v1652, 1.0
        %v1673 = vadd.f32 %v1654, 1.0
        %v1674 = vadd.f32 %v1656, 1.0
        %v1675 = vadd.f32 %v1658, 1.0
        %v1676 = vadd.f32 %v1660, 1.0
        %v1677 = vrcp.pop %v1661
        %v1678 = vmul.f32 %v1661, %v1677
        %v1679 = vsub.f32 1.0, %v1678
        %v1680 = vmul.f32 %v1677, %v1679
        %v1681 = vadd.f32 %v1677, %v1680
        %vm1682 = vweird.f32 %v1661
        %vm1683 = vweird.f32 %v1677
        %vm1684 = vmor %vm1682, %vm1683
        %v1685 = vsel %vm1684, %v1677, %v1681
        %v1686 = vand.u32 2147483647, %v1661
        %vm1687 = vcmp.eq.f32.partialorder %v1686, 8.507059e+37
        %v1688 = vand.u32 %v1661, 2147483648
        %v1689 = vor.u32 1.1754944e-38, %v1688
        %v1690 = vsel %vm1687, %v1689, %v1685
        %v1691 = vmul.f32 1.0, %v1690
        %v1692 = vrcp.pop %v1662
        %v1693 = vmul.f32 %v1662, %v1692
        %v1694 = vsub.f32 1.0, %v1693
        %v1695 = vmul.f32 %v1692, %v1694
        %v1696 = vadd.f32 %v1692, %v1695
        %vm1697 = vweird.f32 %v1662
        %vm1698 = vweird.f32 %v1692
        %vm1699 = vmor %vm1697, %vm1698
        %v1700 = vsel %vm1699, %v1692, %v1696
        %v1701 = vand.u32 2147483647, %v1662
        %vm1702 = vcmp.eq.f32.partialorder %v1701, 8.507059e+37
        %v1703 = vand.u32 %v1662, 2147483648
        %v1704 = vor.u32 1.1754944e-38, %v1703
        %v1705 = vsel %vm1702, %v1704, %v1700
        %v1706 = vmul.f32 1.0, %v1705
        %v1707 = vrcp.pop %v1663
        %v1708 = vmul.f32 %v1663, %v1707
        %v1709 = vsub.f32 1.0, %v1708
        %v1710 = vmul.f32 %v1707, %v1709
        %v1711 = vadd.f32 %v1707, %v1710
        %vm1712 = vweird.f32 %v1663
        %vm1713 = vweird.f32 %v1707
        %vm1714 = vmor %vm1712, %vm1713
        %v1715 = vsel %vm1714, %v1707, %v1711
        %v1716 = vand.u32 2147483647, %v1663
        %vm1717 = vcmp.eq.f32.partialorder %v1716, 8.507059e+37
        %v1718 = vand.u32 %v1663, 2147483648
        %v1719 = vor.u32 1.1754944e-38, %v1718
        %v1720 = vsel %vm1717, %v1719, %v1715
        %v1721 = vmul.f32 1.0, %v1720
        %v1722 = vrcp.pop %v1664
        %v1723 = vmul.f32 %v1664, %v1722
        %v1724 = vsub.f32 1.0, %v1723
        %v1725 = vmul.f32 %v1722, %v1724
        %v1726 = vadd.f32 %v1722, %v1725
        %vm1727 = vweird.f32 %v1664
        %vm1728 = vweird.f32 %v1722
        %vm1729 = vmor %vm1727, %vm1728
        %v1730 = vsel %vm1729, %v1722, %v1726
        %v1731 = vand.u32 2147483647, %v1664
        %vm1732 = vcmp.eq.f32.partialorder %v1731, 8.507059e+37
        %v1733 = vand.u32 %v1664, 2147483648
        %v1734 = vor.u32 1.1754944e-38, %v1733
        %v1735 = vsel %vm1732, %v1734, %v1730
        %v1736 = vmul.f32 1.0, %v1735
        %v1737 = vrcp.pop %v1665
        %v1738 = vmul.f32 %v1665, %v1737
        %v1739 = vsub.f32 1.0, %v1738
        %v1740 = vmul.f32 %v1737, %v1739
        %v1741 = vadd.f32 %v1737, %v1740
        %vm1742 = vweird.f32 %v1665
        %vm1743 = vweird.f32 %v1737
        %vm1744 = vmor %vm1742, %vm1743
        %v1745 = vsel %vm1744, %v1737, %v1741
        %v1746 = vand.u32 2147483647, %v1665
        %vm1747 = vcmp.eq.f32.partialorder %v1746, 8.507059e+37
        %v1748 = vand.u32 %v1665, 2147483648
        %v1749 = vor.u32 1.1754944e-38, %v1748
        %v1750 = vsel %vm1747, %v1749, %v1745
        %v1751 = vmul.f32 1.0, %v1750
        %v1752 = vrcp.pop %v1666
        %v1753 = vmul.f32 %v1666, %v1752
        %v1754 = vsub.f32 1.0, %v1753
        %v1755 = vmul.f32 %v1752, %v1754
        %v1756 = vadd.f32 %v1752, %v1755
        %vm1757 = vweird.f32 %v1666
        %vm1758 = vweird.f32 %v1752
        %vm1759 = vmor %vm1757, %vm1758
        %v1760 = vsel %vm1759, %v1752, %v1756
        %v1761 = vand.u32 2147483647, %v1666
        %vm1762 = vcmp.eq.f32.partialorder %v1761, 8.507059e+37
        %v1763 = vand.u32 %v1666, 2147483648
        %v1764 = vor.u32 1.1754944e-38, %v1763
        %v1765 = vsel %vm1762, %v1764, %v1760
        %v1766 = vmul.f32 1.0, %v1765
        %v1767 = vrcp.pop %v1667
        %v1768 = vmul.f32 %v1667, %v1767
        %v1769 = vsub.f32 1.0, %v1768
        %v1770 = vmul.f32 %v1767, %v1769
        %v1771 = vadd.f32 %v1767, %v1770
        %vm1772 = vweird.f32 %v1667
        %vm1773 = vweird.f32 %v1767
        %vm1774 = vmor %vm1772, %vm1773
        %v1775 = vsel %vm1774, %v1767, %v1771
        %v1776 = vand.u32 2147483647, %v1667
        %vm1777 = vcmp.eq.f32.partialorder %v1776, 8.507059e+37
        %v1778 = vand.u32 %v1667, 2147483648
        %v1779 = vor.u32 1.1754944e-38, %v1778
        %v1780 = vsel %vm1777, %v1779, %v1775
        %v1781 = vmul.f32 1.0, %v1780
        %v1782 = vrcp.pop %v1668
        %v1783 = vmul.f32 %v1668, %v1782
        %v1784 = vsub.f32 1.0, %v1783
        %v1785 = vmul.f32 %v1782, %v1784
        %v1786 = vadd.f32 %v1782, %v1785
        %vm1787 = vweird.f32 %v1668
        %vm1788 = vweird.f32 %v1782
        %vm1789 = vmor %vm1787, %vm1788
        %v1790 = vsel %vm1789, %v1782, %v1786
        %v1791 = vand.u32 2147483647, %v1668
        %vm1792 = vcmp.eq.f32.partialorder %v1791, 8.507059e+37
        %v1793 = vand.u32 %v1668, 2147483648
        %v1794 = vor.u32 1.1754944e-38, %v1793
        %v1795 = vsel %vm1792, %v1794, %v1790
        %v1796 = vmul.f32 1.0, %v1795
        %v1797 = vrcp.pop %v1669
        %v1798 = vmul.f32 %v1669, %v1797
        %v1799 = vsub.f32 1.0, %v1798
        %v1800 = vmul.f32 %v1797, %v1799
        %v1801 = vadd.f32 %v1797, %v1800
        %vm1802 = vweird.f32 %v1669
        %vm1803 = vweird.f32 %v1797
        %vm1804 = vmor %vm1802, %vm1803
        %v1805 = vsel %vm1804, %v1797, %v1801
        %v1806 = vand.u32 2147483647, %v1669
        %vm1807 = vcmp.eq.f32.partialorder %v1806, 8.507059e+37
        %v1808 = vand.u32 %v1669, 2147483648
        %v1809 = vor.u32 1.1754944e-38, %v1808
        %v1810 = vsel %vm1807, %v1809, %v1805
        %v1811 = vmul.f32 1.0, %v1810
        %v1812 = vrcp.pop %v1670
        %v1813 = vmul.f32 %v1670, %v1812
        %v1814 = vsub.f32 1.0, %v1813
        %v1815 = vmul.f32 %v1812, %v1814
        %v1816 = vadd.f32 %v1812, %v1815
        %vm1817 = vweird.f32 %v1670
        %vm1818 = vweird.f32 %v1812
        %vm1819 = vmor %vm1817, %vm1818
        %v1820 = vsel %vm1819, %v1812, %v1816
        %v1821 = vand.u32 2147483647, %v1670
        %vm1822 = vcmp.eq.f32.partialorder %v1821, 8.507059e+37
        %v1823 = vand.u32 %v1670, 2147483648
        %v1824 = vor.u32 1.1754944e-38, %v1823
        %v1825 = vsel %vm1822, %v1824, %v1820
        %v1826 = vmul.f32 1.0, %v1825
        %v1827 = vrcp.pop %v1671
        %v1828 = vmul.f32 %v1671, %v1827
        %v1829 = vsub.f32 1.0, %v1828
        %v1830 = vmul.f32 %v1827, %v1829
        %v1831 = vadd.f32 %v1827, %v1830
        %vm1832 = vweird.f32 %v1671
        %vm1833 = vweird.f32 %v1827
        %vm1834 = vmor %vm1832, %vm1833
        %v1835 = vsel %vm1834, %v1827, %v1831
        %v1836 = vand.u32 2147483647, %v1671
        %vm1837 = vcmp.eq.f32.partialorder %v1836, 8.507059e+37
        %v1838 = vand.u32 %v1671, 2147483648
        %v1839 = vor.u32 1.1754944e-38, %v1838
        %v1840 = vsel %vm1837, %v1839, %v1835
        %v1841 = vmul.f32 1.0, %v1840
        %v1842 = vrcp.pop %v1672
        %v1843 = vmul.f32 %v1672, %v1842
        %v1844 = vsub.f32 1.0, %v1843
        %v1845 = vmul.f32 %v1842, %v1844
        %v1846 = vadd.f32 %v1842, %v1845
        %vm1847 = vweird.f32 %v1672
        %vm1848 = vweird.f32 %v1842
        %vm1849 = vmor %vm1847, %vm1848
        %v1850 = vsel %vm1849, %v1842, %v1846
        %v1851 = vand.u32 2147483647, %v1672
        %vm1852 = vcmp.eq.f32.partialorder %v1851, 8.507059e+37
        %v1853 = vand.u32 %v1672, 2147483648
        %v1854 = vor.u32 1.1754944e-38, %v1853
        %v1855 = vsel %vm1852, %v1854, %v1850
        %v1856 = vmul.f32 1.0, %v1855
        %v1857 = vrcp.pop %v1673
        %v1858 = vmul.f32 %v1673, %v1857
        %v1859 = vsub.f32 1.0, %v1858
        %v1860 = vmul.f32 %v1857, %v1859
        %v1861 = vadd.f32 %v1857, %v1860
        %vm1862 = vweird.f32 %v1673
        %vm1863 = vweird.f32 %v1857
        %vm1864 = vmor %vm1862, %vm1863
        %v1865 = vsel %vm1864, %v1857, %v1861
        %v1866 = vand.u32 2147483647, %v1673
        %vm1867 = vcmp.eq.f32.partialorder %v1866, 8.507059e+37
        %v1868 = vand.u32 %v1673, 2147483648
        %v1869 = vor.u32 1.1754944e-38, %v1868
        %v1870 = vsel %vm1867, %v1869, %v1865
        %v1871 = vmul.f32 1.0, %v1870
        %v1872 = vrcp.pop %v1674
        %v1873 = vmul.f32 %v1674, %v1872
        %v1874 = vsub.f32 1.0, %v1873
        %v1875 = vmul.f32 %v1872, %v1874
        %v1876 = vadd.f32 %v1872, %v1875
        %vm1877 = vweird.f32 %v1674
        %vm1878 = vweird.f32 %v1872
        %vm1879 = vmor %vm1877, %vm1878
        %v1880 = vsel %vm1879, %v1872, %v1876
        %v1881 = vand.u32 2147483647, %v1674
        %vm1882 = vcmp.eq.f32.partialorder %v1881, 8.507059e+37
        %v1883 = vand.u32 %v1674, 2147483648
        %v1884 = vor.u32 1.1754944e-38, %v1883
        %v1885 = vsel %vm1882, %v1884, %v1880
        %v1886 = vmul.f32 1.0, %v1885
        %v1887 = vrcp.pop %v1675
        %v1888 = vmul.f32 %v1675, %v1887
        %v1889 = vsub.f32 1.0, %v1888
        %v1890 = vmul.f32 %v1887, %v1889
        %v1891 = vadd.f32 %v1887, %v1890
        %vm1892 = vweird.f32 %v1675
        %vm1893 = vweird.f32 %v1887
        %vm1894 = vmor %vm1892, %vm1893
        %v1895 = vsel %vm1894, %v1887, %v1891
        %v1896 = vand.u32 2147483647, %v1675
        %vm1897 = vcmp.eq.f32.partialorder %v1896, 8.507059e+37
        %v1898 = vand.u32 %v1675, 2147483648
        %v1899 = vor.u32 1.1754944e-38, %v1898
        %v1900 = vsel %vm1897, %v1899, %v1895
        %v1901 = vmul.f32 1.0, %v1900
        %v1902 = vrcp.pop %v1676
        %v1903 = vmul.f32 %v1676, %v1902
        %v1904 = vsub.f32 1.0, %v1903
        %v1905 = vmul.f32 %v1902, %v1904
        %v1906 = vadd.f32 %v1902, %v1905
        %vm1907 = vweird.f32 %v1676
        %vm1908 = vweird.f32 %v1902
        %vm1909 = vmor %vm1907, %vm1908
        %v1910 = vsel %vm1909, %v1902, %v1906
        %v1911 = vand.u32 2147483647, %v1676
        %vm1912 = vcmp.eq.f32.partialorder %v1911, 8.507059e+37
        %v1913 = vand.u32 %v1676, 2147483648
        %v1914 = vor.u32 1.1754944e-38, %v1913
        %v1915 = vsel %vm1912, %v1914, %v1910
        %v1916 = vmul.f32 1.0, %v1915
        %v1917 = vld [vmem:[%s552] sm:$0xff]
        %v1918 = vld [vmem:[%s552 + $0x8] sm:$0xff]
        %v1919 = vld [vmem:[%s552 + $0x10] sm:$0xff]
        %v1920 = vld [vmem:[%s552 + $0x18] sm:$0xff]
        %1925 = vst [vmem:[#allocation1] ss:$4 sm:$0xff] %v1917
        %s1926 = scalar_lea.vmem [#allocation1], 32
        %1927 = vst [vmem:[%s1926] ss:$4 sm:$0xff] %v1918
        %v1928 = vld.sshfl [vmem:[#allocation1] sm:$0xff pattern:$0x73625140]
        %v1929 = vld.sshfl [vmem:[#allocation1 + $0x8] sm:$0xff pattern:$0x73625140]
        %v1930 = vld.sshfl [vmem:[#allocation1 + $0x10] sm:$0xff pattern:$0x73625140]
        %v1931 = vld.sshfl [vmem:[#allocation1 + $0x18] sm:$0xff pattern:$0x73625140]
        %v1932 = vld.sshfl [vmem:[#allocation1 + $0x20] sm:$0xff pattern:$0x73625140]
        %v1933 = vld.sshfl [vmem:[#allocation1 + $0x28] sm:$0xff pattern:$0x73625140]
        %v1934 = vld.sshfl [vmem:[#allocation1 + $0x30] sm:$0xff pattern:$0x73625140]
        %v1935 = vld.sshfl [vmem:[#allocation1 + $0x38] sm:$0xff pattern:$0x73625140]
        %1936 = vst [vmem:[#allocation1] ss:$4 sm:$0xff] %v1919
        %1937 = vst [vmem:[%s1926] ss:$4 sm:$0xff] %v1920
        %v1938 = vld.sshfl [vmem:[#allocation1] sm:$0xff pattern:$0x73625140]
        %v1939 = vld.sshfl [vmem:[#allocation1 + $0x8] sm:$0xff pattern:$0x73625140]
        %v1940 = vld.sshfl [vmem:[#allocation1 + $0x10] sm:$0xff pattern:$0x73625140]
        %v1941 = vld.sshfl [vmem:[#allocation1 + $0x18] sm:$0xff pattern:$0x73625140]
        %v1942 = vld.sshfl [vmem:[#allocation1 + $0x20] sm:$0xff pattern:$0x73625140]
        %v1943 = vld.sshfl [vmem:[#allocation1 + $0x28] sm:$0xff pattern:$0x73625140]
        %v1944 = vld.sshfl [vmem:[#allocation1 + $0x30] sm:$0xff pattern:$0x73625140]
        %v1945 = vld.sshfl [vmem:[#allocation1 + $0x38] sm:$0xff pattern:$0x73625140]
        %v1962 = vsub.f32 %v1691, %v1928
        %v1963 = vsub.f32 %v1706, %v1929
        %v1964 = vsub.f32 %v1721, %v1930
        %v1965 = vsub.f32 %v1736, %v1931
        %v1966 = vsub.f32 %v1751, %v1932
        %v1967 = vsub.f32 %v1766, %v1933
        %v1968 = vsub.f32 %v1781, %v1934
        %v1969 = vsub.f32 %v1796, %v1935
        %v1970 = vsub.f32 %v1811, %v1938
        %v1971 = vsub.f32 %v1826, %v1939
        %v1972 = vsub.f32 %v1841, %v1940
        %v1973 = vsub.f32 %v1856, %v1941
        %v1974 = vsub.f32 %v1871, %v1942
        %v1975 = vsub.f32 %v1886, %v1943
        %v1976 = vsub.f32 %v1901, %v1944
        %v1977 = vsub.f32 %v1916, %v1945
        %v1978 = vld [vmem:[#allocation4] sm:$0x1]
        %v1979 = vmul.f32 %v1962, %v1962
        %v1980 = vmul.f32 %v1963, %v1963
        %v1981 = vmul.f32 %v1964, %v1964
        %v1982 = vmul.f32 %v1965, %v1965
        %v1983 = vmul.f32 %v1966, %v1966
        %v1984 = vmul.f32 %v1967, %v1967
        %v1985 = vmul.f32 %v1968, %v1968
        %v1986 = vmul.f32 %v1969, %v1969
        %v1987 = vmul.f32 %v1970, %v1970
        %v1988 = vmul.f32 %v1971, %v1971
        %v1989 = vmul.f32 %v1972, %v1972
        %v1990 = vmul.f32 %v1973, %v1973
        %v1991 = vmul.f32 %v1974, %v1974
        %v1992 = vmul.f32 %v1975, %v1975
        %v1993 = vmul.f32 %v1976, %v1976
        %v1994 = vmul.f32 %v1977, %v1977
        %vm1995 = vcmask 1041408
        %v1996 = vsel %vm1995, %v1979, 0.0
        %v1997 = vsel %vm1995, %v1980, 0.0
        %v1998 = vadd.f32 %v1996, %v1997
        %v1999 = vsel %vm1995, %v1981, 0.0
        %v2000 = vadd.f32 %v1998, %v1999
        %v2001 = vsel %vm1995, %v1982, 0.0
        %v2002 = vadd.f32 %v2000, %v2001
        %v2003 = vsel %vm1995, %v1983, 0.0
        %v2004 = vadd.f32 %v2002, %v2003
        %v2005 = vsel %vm1995, %v1984, 0.0
        %v2006 = vadd.f32 %v2004, %v2005
        %v2007 = vsel %vm1995, %v1985, 0.0
        %v2008 = vadd.f32 %v2006, %v2007
        %v2009 = vsel %vm1995, %v1986, 0.0
        %v2010 = vadd.f32 %v2008, %v2009
        %v2011 = vsel %vm1995, %v1987, 0.0
        %v2012 = vadd.f32 %v2010, %v2011
        %v2013 = vsel %vm1995, %v1988, 0.0
        %v2014 = vadd.f32 %v2012, %v2013
        %v2015 = vsel %vm1995, %v1989, 0.0
        %v2016 = vadd.f32 %v2014, %v2015
        %v2017 = vsel %vm1995, %v1990, 0.0
        %v2018 = vadd.f32 %v2016, %v2017
        %v2019 = vsel %vm1995, %v1991, 0.0
        %v2020 = vadd.f32 %v2018, %v2019
        %v2021 = vsel %vm1995, %v1992, 0.0
        %v2022 = vadd.f32 %v2020, %v2021
        %v2023 = vsel %vm1995, %v1993, 0.0
        %v2024 = vadd.f32 %v2022, %v2023
        %v2025 = vsel %vm1995, %v1994, 0.0
        %v2026 = vadd.f32 %v2024, %v2025
        %2027 = vadd.xlane.f32.xlu0 %v2026
        %v2028 = vpop.xlane.xlu0 %2027
        %v2029 = vrot.slane %v2028, 4
        %v2030 = vadd.f32 %v2028, %v2029
        %v2031 = vrot.slane %v2030, 2
        %v2032 = vadd.f32 %v2030, %v2031
        %v2033 = vrot.slane %v2032, 1
        %v2034 = vadd.f32 %v2032, %v2033
        %s2035 = vtos %v2034
        %v2036 = vstv %s2035
        %v2037 = vadd.f32 %v1978, %v2036
        %vm2038 = vcmask 0
        %2039 = vst.msk [vmem:[#allocation4] sm:$0x1] %vm2038, %v2037
        // Predicated region
        $region72: #{agedr_forward.6} parent=62 // pred_check
          %p2040 = pneg %p172
        $region73: #{agedr_forward.6} parent=62 // pred_check_branch
          %2042 = sbr.rel (%p2040) target = $region75
        $region74: #{agedr_forward.6} parent=62 // pred_region
          %2044 = vsyncadd [#allocation5], 0
          %s2046 = sshll.u32 [#allocation4], 4
          %s2047 = int_to_ptr.vmem [resolvable:$true] %s2046
          %s2048 = sshll.u32 %s6, 4
          %s2049 = int_to_ptr.hbm [resolvable:$true] %s2048
          %2051 = dma.vmem_to_hbm [thread:$0]  %s2047, 16, %s2049, [#allocation5]
        $region75: #{agedr_forward.6} parent=62 // pred_fallthru
          _
        // Predicated region
        $region76: #{agedr_forward.6} parent=62 // pred_check
          %p2052 = pneg %p172
        $region77: #{agedr_forward.6} parent=62 // pred_check_branch
          %2054 = sbr.rel (%p2052) target = $region79
        $region78: #{agedr_forward.6} parent=62 // pred_region
          %2056 = dma.done [#allocation5], 16
        $region79: #{agedr_forward.6} parent=62 // pred_fallthru
          _
      $region63: #{agedr_forward.6} parent=5 // pred_fallthru
        _
      %p2057 = scmp.le.s32.totalorder 2, %s13
      // Predicated region
      $region80: #{agedr_forward.6} parent=5 // pred_check
        %p2058 = pneg %p2057
      $region81: #{agedr_forward.6} parent=5 // pred_check_branch
        %2060 = sbr.rel (%p2058) target = $region83
      $region82: #{agedr_forward.6} parent=5 // pred_region
        %s2061 = ssub.s32 %s13, 2
      $region83: #{agedr_forward.6} parent=5 // pred_fallthru
        _
    $region6: #{agedr_forward.6} parent=1 // loop_footer
      %s17 = sadd.s32 1, %s13
    $region7: #{agedr_forward.6} parent=1 // loop_footer_branch
      %12 = sbr.rel target = $region3
    $region8: #{agedr_forward.6} parent=1 // loop_exit
      _
    %2062 = vsyncpa [#allocation5], 1
    %s2063 = scalar_lea.sflag [#allocation5], 1
    %2064 = vsyncpa %s2063, 1

// kernel: agedr_forward.7
$region0: #{agedr_forward.7}
  #allocation0 [shape = 'u32[]', space=smem, size = 0x4, offset = 0x4, fixed_abs, tag = 'smem constant byte address 0x4 - core index']
  #allocation1 [shape = 'u32[72,128]{1,0:T(1,128)}', space=vmem, size = 0x9000, scoped, tag = 'internal scratch']
  %s0 = inlined_call_operand.vmem [shape: f32[2,30], index: 0, kind: input, shape index: {}]
  %s1 = inlined_call_operand.vmem [shape: f32[30,32], index: 1, kind: input, shape index: {}]
  %s2 = inlined_call_operand.vmem [shape: f32[1,32], index: 2, kind: input, shape index: {}]
  %s3 = inlined_call_operand.vmem [shape: f32[1,32], index: 3, kind: input, shape index: {}]
  %s4 = inlined_call_operand.vmem [shape: f32[1,32], index: 4, kind: input, shape index: {}]
  %s5 = inlined_call_operand.vmem [shape: f32[32,3], index: 5, kind: input, shape index: {}]
  %s6 = inlined_call_operand.vmem [shape: f32[1,3], index: 6, kind: input, shape index: {}]
  %s7 = inlined_call_operand.vmem [shape: f32[2,3], index: 7, kind: output, shape index: {}]
  %s8 = sld [smem:[#allocation0]]
  $region38: #{agedr_forward.7} parent=0
    _
  %s10 = ssub.s32 1, %s8
  %s11 = scalar_select 0, %s10, %s8
  // Predicated region
  $region2: #{agedr_forward.7} parent=0 // pred_check
    _
  $region3: #{agedr_forward.7} parent=0 // pred_check_branch
    %13 = sbr.rel (0) target = $region5
  $region4: #{agedr_forward.7} parent=0 // pred_region
    _
  $region5: #{agedr_forward.7} parent=0 // pred_fallthru
    _
  // Predicated region
  $region6: #{agedr_forward.7} parent=0 // pred_check
    _
  $region7: #{agedr_forward.7} parent=0 // pred_check_branch
    %15 = sbr.rel (0) target = $region9
  $region8: #{agedr_forward.7} parent=0 // pred_region
    _
  $region9: #{agedr_forward.7} parent=0 // pred_fallthru
    _
  // Predicated region
  $region10: #{agedr_forward.7} parent=0 // pred_check
    _
  $region11: #{agedr_forward.7} parent=0 // pred_check_branch
    %17 = sbr.rel (0) target = $region13
  $region12: #{agedr_forward.7} parent=0 // pred_region
    _
  $region13: #{agedr_forward.7} parent=0 // pred_fallthru
    _
  // Predicated region
  $region14: #{agedr_forward.7} parent=0 // pred_check
    _
  $region15: #{agedr_forward.7} parent=0 // pred_check_branch
    %19 = sbr.rel (0) target = $region17
  $region16: #{agedr_forward.7} parent=0 // pred_region
    _
  $region17: #{agedr_forward.7} parent=0 // pred_fallthru
    _
  // Predicated region
  $region18: #{agedr_forward.7} parent=0 // pred_check
    _
  $region19: #{agedr_forward.7} parent=0 // pred_check_branch
    %21 = sbr.rel (0) target = $region21
  $region20: #{agedr_forward.7} parent=0 // pred_region
    _
  $region21: #{agedr_forward.7} parent=0 // pred_fallthru
    _
  // Predicated region
  $region22: #{agedr_forward.7} parent=0 // pred_check
    _
  $region23: #{agedr_forward.7} parent=0 // pred_check_branch
    %23 = sbr.rel (0) target = $region25
  $region24: #{agedr_forward.7} parent=0 // pred_region
    _
  $region25: #{agedr_forward.7} parent=0 // pred_fallthru
    _
  // Predicated region
  $region26: #{agedr_forward.7} parent=0 // pred_check
    _
  $region27: #{agedr_forward.7} parent=0 // pred_check_branch
    %25 = sbr.rel (0) target = $region29
  $region28: #{agedr_forward.7} parent=0 // pred_region
    _
  $region29: #{agedr_forward.7} parent=0 // pred_fallthru
    _
  %v26 = vld [vmem:[%s0] sm:$0x3]
  %v27 = vld [vmem:[%s1] sm:$0xff]
  %v28 = vld [vmem:[%s1 + $0x8] sm:$0xff]
  %v29 = vld [vmem:[%s1 + $0x10] sm:$0xff]
  %v30 = vld [vmem:[%s1 + $0x18] sm:$0x3f]
  %v31 = vld [vmem:[%s2] sm:$0x1]
  %v33 = vperm.slane %v31, 0
  %vm35 = vcmask 244736
  %v37 = vsel %vm35, %v26, 0
  %vm39 = vcmask 1045504
  %v41 = vsel %vm39, %v30, 0
  %43 = vmatpush.msra.mxu0 0.0
  %44 = vmatpush.msra.mxu0 0.0
  %45 = vmatpush.msra.mxu0 0.0
  %46 = vmatpush.msra.mxu0 0.0
  %47 = vmatpush.msra.mxu0 0.0
  %48 = vmatpush.msra.mxu0 0.0
  %49 = vmatpush.msra.mxu0 0.0
  %50 = vmatpush.msra.mxu0 0.0
  %51 = vmatpush.msra.mxu0 0.0
  %52 = vmatpush.msra.mxu0 0.0
  %53 = vmatpush.msra.mxu0 0.0
  %54 = vmatpush.msra.mxu0 0.0
  %55 = vmatpush.msra.mxu0 %v41
  %56 = vmatpush.msra.mxu0 %v29
  %57 = vmatpush.msra.mxu0 %v28
  %58 = vmatpush.msra.mxu0 %v27
  %59 = vmatmul.f32.gmra.mxu0 %v37
  %v60 = vpop.f32.mrf.mxu0
  %v61 = vadd.f32 %v33, %v60
  %62 = vdwg.mxu0
  %vm63 = vcmask 254976
  %v64 = vsel %vm63, %v61, 0.0
  %v65 = vrot.slane %v64, 4
  %v66 = vadd.f32 %v64, %v65
  %v67 = vrot.slane %v66, 2
  %v68 = vadd.f32 %v66, %v67
  %v69 = vrot.slane %v68, 1
  %v70 = vadd.f32 %v68, %v69
  %v71 = vrcp.pop 2.0
  %v72 = vmul.f32 2.0, %v71
  %v73 = vsub.f32 1.0, %v72
  %v74 = vmul.f32 %v71, %v73
  %v75 = vadd.f32 %v71, %v74
  %vm76 = vweird.f32 %v71
  %v77 = vsel %vm76, %v71, %v75
  %v78 = vmul.f32 %v70, %v77
  %v79 = vsub.f32 %v61, %v78
  %v80 = vmul.f32 %v79, %v79
  %v81 = vsel %vm63, %v80, 0.0
  %v82 = vrot.slane %v81, 4
  %v83 = vadd.f32 %v81, %v82
  %v84 = vrot.slane %v83, 2
  %v85 = vadd.f32 %v83, %v84
  %v86 = vrot.slane %v85, 1
  %v87 = vadd.f32 %v85, %v86
  %v88 = vmul.f32 %v87, %v77
  %v89 = vadd.f32 %v88, 1e-05
  %v90 = vrsqrt.pop %v89
  %v91 = vmul.f32 %v90, %v89
  %v92 = vmul.f32 %v91, %v90
  %v93 = vmul.f32 0.5, %v92
  %v94 = vsub.f32 1.5, %v93
  %v95 = vmul.f32 %v90, %v94
  %vm96 = vweird.f32 %v89
  %vm97 = vweird.f32 %v90
  %vm98 = vmor %vm96, %vm97
  %v99 = vsel %vm98, %v90, %v95
  %v100 = vmul.f32 %v79, %v99
  %v101 = vld [vmem:[%s3] sm:$0x1]
  %v103 = vperm.slane %v101, 0
  %v105 = vmul.f32 %v100, %v103
  %v106 = vld [vmem:[%s4] sm:$0x1]
  %v108 = vperm.slane %v106, 0
  %v110 = vadd.f32 %v105, %v108
  %v111 = vmax.f32 %v110, 0.0
  %v112 = vld [vmem:[%s5] sm:$0xff]
  %v113 = vld [vmem:[%s5 + $0x8] sm:$0xff]
  %v114 = vld [vmem:[%s5 + $0x10] sm:$0xff]
  %v115 = vld [vmem:[%s5 + $0x18] sm:$0xff]
  %v116 = vld [vmem:[%s6] sm:$0x1]
  %v118 = vperm.slane %v116, 0
  %vm120 = vcmask 261120
  %v122 = vsel %vm120, %v111, 0
  %124 = vmatpush.msra.mxu0 0.0
  %125 = vmatpush.msra.mxu0 0.0
  %126 = vmatpush.msra.mxu0 0.0
  %127 = vmatpush.msra.mxu0 0.0
  %128 = vmatpush.msra.mxu0 0.0
  %129 = vmatpush.msra.mxu0 0.0
  %130 = vmatpush.msra.mxu0 0.0
  %131 = vmatpush.msra.mxu0 0.0
  %132 = vmatpush.msra.mxu0 0.0
  %133 = vmatpush.msra.mxu0 0.0
  %134 = vmatpush.msra.mxu0 0.0
  %135 = vmatpush.msra.mxu0 0.0
  %136 = vmatpush.msra.mxu0 %v115
  %137 = vmatpush.msra.mxu0 %v114
  %138 = vmatpush.msra.mxu0 %v113
  %139 = vmatpush.msra.mxu0 %v112
  %140 = vmatmul.f32.gmra.mxu0 %v122
  %v141 = vpop.f32.mrf.mxu0
  %v142 = vadd.f32 %v118, %v141
  %143 = vdwg.mxu0
  %vm144 = vcmask 17408
  %145 = vst.msk [vmem:[%s7] sm:$0x3] %vm144, %v142
  // Predicated region
  $region30: #{agedr_forward.7} parent=0 // pred_check
    _
  $region31: #{agedr_forward.7} parent=0 // pred_check_branch
    %147 = sbr.rel (0) target = $region33
  $region32: #{agedr_forward.7} parent=0 // pred_region
    _
  $region33: #{agedr_forward.7} parent=0 // pred_fallthru
    _
  // Predicated region
  $region34: #{agedr_forward.7} parent=0 // pred_check
    _
  $region35: #{agedr_forward.7} parent=0 // pred_check_branch
    %149 = sbr.rel (0) target = $region37
  $region36: #{agedr_forward.7} parent=0 // pred_region
    _
  $region37: #{agedr_forward.7} parent=0 // pred_fallthru
    _

</llo_original>
